<compile_context>
chip_gen: v7x
topology: tpu7x:2x2x1
jax: 0.10.0
libtpu: 0.0.40
codegen_flags: <defaults>
</compile_context>

<pallas_src>
import functools

import jax
import jax.numpy as jnp
from jax import lax
from jax.experimental import pallas as pl
from jax.experimental.pallas import tpu as pltpu


def _glove_kernel(seq_len, vocab, ids_ref, emb_ref, tok_out_ref, pool_out_ref):
    """One grid step == TB captions.

    ids_ref     : VMEM (TB*S, 1) int32 — token ids for this step's captions.
    emb_ref     : VMEM (V, Dp) — resident GloVe table (same block every step,
                  single-buffered, DMA'd once and reused).
    tok_out_ref : VMEM (TB, S, Dp) — per-token embeddings.
    pool_out_ref: VMEM (TB, Dp) f32 — mean-pooled caption embeddings.
    """
    tb, _, d_pad = tok_out_ref.shape
    n = tb * seq_len

    ids_col = ids_ref[...]                                         # (N, 1) int32
    # One-hot LHS built on the VPU; OOB ids produce an all-zero row (safe).
    onehot = (lax.broadcasted_iota(jnp.int32, (n, vocab), 1) == ids_col
              ).astype(emb_ref.dtype)                              # (N, V)

    # Gather == one MXU matmul.  HIGHEST precision keeps the f32 table values
    # exact through the multi-pass f32 MXU path.
    tok = jnp.dot(onehot, emb_ref[...],
                  preferred_element_type=jnp.float32,
                  precision=lax.Precision.HIGHEST)                 # (N, Dp) f32

    tok3 = tok.reshape(tb, seq_len, d_pad)                         # sublane-aligned split
    tok_out_ref[...] = tok3.astype(tok_out_ref.dtype)

    # Mean-pool: cross-sublane reduce (XLU) + one sublane/lane-dense store.
    pool_out_ref[...] = (jnp.sum(tok3, axis=1) * (1.0 / seq_len)
                         ).astype(pool_out_ref.dtype)


def glove_embedding_transform(caption_ids, emb_table, *, tok_dtype=None, tb=None):
    """caption_ids: (B, S) int32 token ids.  emb_table: (V, D) float32.

    Returns (token_embeddings (B, S, D), pooled_caption_embedding (B, D)).
    tok_dtype=jnp.bfloat16 halves the dominant per-token writeback bytes.
    """
    B, S = caption_ids.shape
    V, D = emb_table.shape
    tok_dtype = emb_table.dtype if tok_dtype is None else jnp.dtype(tok_dtype)

    # Lane-dense padding of the embedding dim (e.g. D=300 -> 384).
    D_pad = ((D + 127) // 128) * 128
    emb_p = emb_table if D_pad == D else jnp.pad(emb_table, ((0, 0), (0, D_pad - D)))

    # Captions per grid step: TB*S >= 256 rows fills the MXU LHS; TB is a
    # multiple of 8 so both output blocks are sublane-dense.
    if tb is None:
        tb = max(8, ((pl.cdiv(256, S) + 7) // 8) * 8)
    B_pad = pl.cdiv(B, tb) * tb
    grid = (B_pad // tb,)   # on v7x, >=2 steps lets both TensorCores run ("parallel")

    ids = caption_ids.astype(jnp.int32)
    if B_pad != B:
        ids = jnp.pad(ids, ((0, B_pad - B), (0, 0)))   # pad with id 0 (valid row)
    ids_flat = ids.reshape(B_pad * S, 1)               # lane/sublane-friendly ids layout

    # ---- VMEM accounting (generation-aware) -------------------------------
    table_bytes = V * D_pad * emb_p.dtype.itemsize          # Buffered(1): 1 copy
    ids_bytes = 2 * tb * S * 128 * 4                         # (TB*S, 1) padded lanes, 2 bufs
    tok_bytes = 2 * tb * S * D_pad * jnp.dtype(tok_dtype).itemsize
    pool_bytes = 2 * tb * D_pad * 4
    onehot_bytes = tb * S * max(V, 128) * 4                  # in-kernel one-hot LHS
    needed = table_bytes + ids_bytes + tok_bytes + pool_bytes + onehot_bytes + (4 << 20)

    try:
        vmem_cap = int(pltpu.get_tpu_info().vmem_capacity_bytes)
    except Exception:
        vmem_cap = 64 << 20    # conservative: v7x per-TensorCore VMEM
    vmem_budget = int(vmem_cap * 0.9)
    # VMEM-resident table path only. See TODO(synk): large-vocab manual-DMA path.
    assert needed <= vmem_budget, (
        f"embedding table too large for VMEM-resident path "
        f"(need {needed>>20} MiB, budget {vmem_budget>>20} MiB)")
    vmem_limit = min(vmem_budget, max(needed, 32 << 20))

    # ---- cost estimate (one-hot matmul dominates flops; writeback dominates bytes)
    cost = pl.CostEstimate(
        flops=2 * B_pad * S * V * D_pad + B_pad * S * D_pad,
        transcendentals=0,
        bytes_accessed=(table_bytes
                        + B_pad * S * 4
                        + B_pad * S * D_pad * jnp.dtype(tok_dtype).itemsize
                        + B_pad * D_pad * 4),
    )

    kernel = functools.partial(_glove_kernel, S, V)

    tok, pooled = pl.pallas_call(
        kernel,
        out_shape=(
            jax.ShapeDtypeStruct((B_pad, S, D_pad), tok_dtype),
            jax.ShapeDtypeStruct((B_pad, D_pad), jnp.float32),
        ),
        grid_spec=pltpu.PrefetchScalarGridSpec(
            num_scalar_prefetch=0,
            grid=grid,
            in_specs=[
                # TB captions' worth of ids per step.
                pl.BlockSpec((tb * S, 1), lambda g: (g, 0)),
                # Whole table, same block every step, single-buffered -> resident.
                pl.BlockSpec((V, D_pad), lambda g: (0, 0),
                             pipeline_mode=pl.Buffered(1)),
            ],
            out_specs=(
                pl.BlockSpec((tb, S, D_pad), lambda g: (g, 0, 0)),
                pl.BlockSpec((tb, D_pad), lambda g: (g, 0)),
            ),
        ),
        compiler_params=pltpu.CompilerParams(
            # Each step writes disjoint output blocks -> safe to shard across cores.
            dimension_semantics=("parallel",),
            vmem_limit_bytes=int(vmem_limit),
        ),
        cost_estimate=cost,
    )(ids_flat, emb_p)

    tok = tok[:B, :, :D]
    pooled = pooled[:B, :D]
    return tok, pooled


if __name__ == "__main__":
    key = jax.random.PRNGKey(0)
    k_ids, k_emb = jax.random.split(key)

    B, S = 2, 8          # batch, caption length
    V, D = 256, 128      # vocab size, emb_dim

    emb_table = jax.random.normal(k_emb, (V, D), dtype=jnp.float32)
    caption = jax.random.randint(k_ids, (B, S), 0, V, dtype=jnp.int32)

    tok_emb, pooled = glove_embedding_transform(caption, emb_table)
    jax.block_until_ready((tok_emb, pooled))

    # correctness check against plain JAX reference
    ref_tok = jnp.take(emb_table, caption.reshape(-1), axis=0).reshape(B, S, D)
    ref_pool = ref_tok.mean(axis=1)
    assert tok_emb.shape == (B, S, D) and pooled.shape == (B, D)
    assert jnp.allclose(tok_emb, ref_tok, atol=1e-5, rtol=1e-5), "token gather mismatch"
    assert jnp.allclose(pooled, ref_pool, atol=1e-5, rtol=1e-5), "mean-pool mismatch"

    print("KERNEL_OK")
</pallas_src>

<mosaic_0001>
module attributes {stable_mosaic.version = 11 : i64} {
  func.func @_glove_kernel(%arg0: i32, %arg1: memref<256x1xi32, #tpu.memory_space<vmem>>, %arg2: memref<256x128xf32, #tpu.memory_space<vmem>>, %arg3: memref<32x8x128xf32, #tpu.memory_space<vmem>>, %arg4: memref<32x128xf32, #tpu.memory_space<vmem>>) attributes {dimension_semantics = [#tpu.dimension_semantics<parallel>], iteration_bounds = array<i64: 1>, scalar_prefetch = 0 : i64, scratch_operands = 0 : i64, tpu.core_type = #tpu.core_type<tc>, window_params = [{transform_indices = @transform_0, window_bounds = array<i64: 256, 1>}, {pipeline_mode = #tpu.pipeline_mode<synchronous>, transform_indices = @transform_1, window_bounds = array<i64: 256, 128>}, {transform_indices = @transform_2, window_bounds = array<i64: 32, 8, 128>}, {transform_indices = @transform_3, window_bounds = array<i64: 32, 128>}]} {
    %c0 = arith.constant 0 : index
    %c0_0 = arith.constant 0 : index
    %0 = vector.load %arg1[%c0, %c0_0] : memref<256x1xi32, #tpu.memory_space<vmem>>, vector<256x1xi32>
    %1 = tpu.iota {dimensions = array<i32: 1>} : vector<256x256xi32>
    %2 = vector.broadcast %0 : vector<256x1xi32> to vector<256x256xi32>
    %3 = arith.cmpi eq, %1, %2 : vector<256x256xi32>
    %4 = arith.extui %3 : vector<256x256xi1> to vector<256x256xi32>
    %5 = arith.sitofp %4 : vector<256x256xi32> to vector<256x256xf32>
    %c0_1 = arith.constant 0 : index
    %c0_2 = arith.constant 0 : index
    %6 = vector.load %arg2[%c0_1, %c0_2] : memref<256x128xf32, #tpu.memory_space<vmem>>, vector<256x128xf32>
    %cst = arith.constant dense<0.000000e+00> : vector<256x128xf32>
    %7 = tpu.matmul %5, %6, %cst {dimension_numbers = #tpu.dot_dimension_numbers<[1], [0], [0], [1], [0, 0, 1, 1], [], []>, precision = #tpu.contract_precision<fp32>} : vector<256x256xf32>, vector<256x128xf32>, vector<256x128xf32> -> vector<256x128xf32>
    %8 = vector.shape_cast %7 : vector<256x128xf32> to vector<32x8x128xf32>
    %c0_3 = arith.constant 0 : index
    %c0_4 = arith.constant 0 : index
    %c0_5 = arith.constant 0 : index
    %9 = vector.load %arg3[%c0_3, %c0_4, %c0_5] : memref<32x8x128xf32, #tpu.memory_space<vmem>>, vector<32x8x128xf32>
    tpu.vector_store %arg3[%c0_3, %c0_4, %c0_5], %8 {strides = array<i32>} : memref<32x8x128xf32, #tpu.memory_space<vmem>>, vector<32x8x128xf32>,
    %cst_6 = arith.constant dense<0.000000e+00> : vector<32x128xf32>
    %10 = vector.multi_reduction <add>, %8, %cst_6 [1] : vector<32x8x128xf32> to vector<32x128xf32>
    %cst_7 = arith.constant 1.250000e-01 : f32
    %11 = vector.broadcast %cst_7 : f32 to vector<32x128xf32>
    %12 = arith.mulf %10, %11 : vector<32x128xf32>
    %c0_8 = arith.constant 0 : index
    %c0_9 = arith.constant 0 : index
    %13 = vector.load %arg4[%c0_8, %c0_9] : memref<32x128xf32, #tpu.memory_space<vmem>>, vector<32x128xf32>
    tpu.vector_store %arg4[%c0_8, %c0_9], %12 {strides = array<i32>} : memref<32x128xf32, #tpu.memory_space<vmem>>, vector<32x128xf32>,
    return
  }
  func.func @transform_0(%arg0: i32) -> (i32, i32) {
    %c0_i32 = arith.constant 0 : i32
    %c0_i32_0 = arith.constant 0 : i32
    return %arg0, %c0_i32 : i32, i32
  }
  func.func @transform_1(%arg0: i32) -> (i32, i32) {
    %c0_i32 = arith.constant 0 : i32
    %c0_i32_0 = arith.constant 0 : i32
    %c0_i32_1 = arith.constant 0 : i32
    return %c0_i32, %c0_i32_0 : i32, i32
  }
  func.func @transform_2(%arg0: i32) -> (i32, i32, i32) {
    %c0_i32 = arith.constant 0 : i32
    %c0_i32_0 = arith.constant 0 : i32
    %c0_i32_1 = arith.constant 0 : i32
    return %arg0, %c0_i32, %c0_i32_0 : i32, i32, i32
  }
  func.func @transform_3(%arg0: i32) -> (i32, i32) {
    %c0_i32 = arith.constant 0 : i32
    %c0_i32_0 = arith.constant 0 : i32
    return %arg0, %c0_i32 : i32, i32
  }
}

</mosaic_0001>

<llo_original>
// kernel: tpu_custom_call.1
$region0: #{tpu_custom_call.1}
  #allocation0 [shape = 'u32[]', space=smem, size = 0x4, offset = 0x4, fixed_abs, tag = 'smem constant byte address 0x4 - core index']
  #allocation1 [shape = 'u32[144,128]{1,0:T(1,128)}', space=vmem, size = 0x12000, scoped, tag = 'internal scratch']
  %s0 = inlined_call_operand.vmem [shape: s32[256,1], index: 0, kind: input, shape index: {}]
  %s1 = inlined_call_operand.vmem [shape: f32[256,128], index: 1, kind: input, shape index: {}]
  %s2 = inlined_call_operand.hbm [shape: f32[32,8,128], index: 2, kind: output, shape index: {0}]
  %s3 = inlined_call_operand.hbm [shape: f32[32,128], index: 3, kind: output, shape index: {1}]
  %4 = xla_tuple %s2, %s3
  %s5 = sld [smem:[#allocation0]]
  $region26: #{tpu_custom_call.1} parent=0
    _
  %s7 = ssub.s32 1, %s5
  %s8 = scalar_select 0, %s7, %s5
  $region1: #{tpu_custom_call.1} parent=0
    #allocation2 [shape = 'u8[131072]{0}', space=vmem, size = 0x20000, scoped, tag = 'output window, operand 0, single buffered']
    #allocation3 [shape = 's32[1]{0}', space=sflag, size = 0x4, scoped, tag = 'scoped memory for tpu_custom_call.1']
    #allocation4 [shape = 'u8[16384]{0}', space=vmem, size = 0x4000, scoped, tag = 'output window, operand 1, single buffered']
    #allocation5 [shape = 's32[1]{0}', space=sflag, size = 0x4, scoped, tag = 'scoped memory for tpu_custom_call.1']
    %9 = vsyncpa [#allocation3], 0
    %10 = vsyncpa [#allocation5], 0
    // Predicated region
    $region2: #{tpu_custom_call.1} parent=1 // pred_check
      _
    $region3: #{tpu_custom_call.1} parent=1 // pred_check_branch
      %12 = sbr.rel (0) target = $region5
    $region4: #{tpu_custom_call.1} parent=1 // pred_region
      _
    $region5: #{tpu_custom_call.1} parent=1 // pred_fallthru
      _
    // Predicated region
    $region6: #{tpu_custom_call.1} parent=1 // pred_check
      _
    $region7: #{tpu_custom_call.1} parent=1 // pred_check_branch
      %14 = sbr.rel (0) target = $region9
    $region8: #{tpu_custom_call.1} parent=1 // pred_region
      _
    $region9: #{tpu_custom_call.1} parent=1 // pred_fallthru
      _
    %v15 = vld [vmem:[%s0] sm:$0xff]
    %v16 = vld [vmem:[%s0 + $0x8] sm:$0xff]
    %v17 = vld [vmem:[%s0 + $0x10] sm:$0xff]
    %v18 = vld [vmem:[%s0 + $0x18] sm:$0xff]
    %v19 = vld [vmem:[%s0 + $0x20] sm:$0xff]
    %v20 = vld [vmem:[%s0 + $0x28] sm:$0xff]
    %v21 = vld [vmem:[%s0 + $0x30] sm:$0xff]
    %v22 = vld [vmem:[%s0 + $0x38] sm:$0xff]
    %v23 = vld [vmem:[%s0 + $0x40] sm:$0xff]
    %v24 = vld [vmem:[%s0 + $0x48] sm:$0xff]
    %v25 = vld [vmem:[%s0 + $0x50] sm:$0xff]
    %v26 = vld [vmem:[%s0 + $0x58] sm:$0xff]
    %v27 = vld [vmem:[%s0 + $0x60] sm:$0xff]
    %v28 = vld [vmem:[%s0 + $0x68] sm:$0xff]
    %v29 = vld [vmem:[%s0 + $0x70] sm:$0xff]
    %v30 = vld [vmem:[%s0 + $0x78] sm:$0xff]
    %v31 = vld [vmem:[%s0 + $0x80] sm:$0xff]
    %v32 = vld [vmem:[%s0 + $0x88] sm:$0xff]
    %v33 = vld [vmem:[%s0 + $0x90] sm:$0xff]
    %v34 = vld [vmem:[%s0 + $0x98] sm:$0xff]
    %v35 = vld [vmem:[%s0 + $0xa0] sm:$0xff]
    %v36 = vld [vmem:[%s0 + $0xa8] sm:$0xff]
    %v37 = vld [vmem:[%s0 + $0xb0] sm:$0xff]
    %v38 = vld [vmem:[%s0 + $0xb8] sm:$0xff]
    %v39 = vld [vmem:[%s0 + $0xc0] sm:$0xff]
    %v40 = vld [vmem:[%s0 + $0xc8] sm:$0xff]
    %v41 = vld [vmem:[%s0 + $0xd0] sm:$0xff]
    %v42 = vld [vmem:[%s0 + $0xd8] sm:$0xff]
    %v43 = vld [vmem:[%s0 + $0xe0] sm:$0xff]
    %v44 = vld [vmem:[%s0 + $0xe8] sm:$0xff]
    %v45 = vld [vmem:[%s0 + $0xf0] sm:$0xff]
    %v46 = vld [vmem:[%s0 + $0xf8] sm:$0xff]
    %v47 = vlaneseq
    %v48 = vand.u32 %v47, 127
    %v49 = vadd.s32 %v48, 128
    %50 = vset.pattern.permute.xlu0 0
    %51 = vperm.xlu0 %50, %v15
    %v52 = vpop.permute.xlu0 %51
    %53 = vset.pattern.permute.xlu0 0
    %54 = vperm.xlu0 %53, %v16
    %v55 = vpop.permute.xlu0 %54
    %56 = vset.pattern.permute.xlu0 0
    %57 = vperm.xlu0 %56, %v17
    %v58 = vpop.permute.xlu0 %57
    %59 = vset.pattern.permute.xlu0 0
    %60 = vperm.xlu0 %59, %v18
    %v61 = vpop.permute.xlu0 %60
    %62 = vset.pattern.permute.xlu0 0
    %63 = vperm.xlu0 %62, %v19
    %v64 = vpop.permute.xlu0 %63
    %65 = vset.pattern.permute.xlu0 0
    %66 = vperm.xlu0 %65, %v20
    %v67 = vpop.permute.xlu0 %66
    %68 = vset.pattern.permute.xlu0 0
    %69 = vperm.xlu0 %68, %v21
    %v70 = vpop.permute.xlu0 %69
    %71 = vset.pattern.permute.xlu0 0
    %72 = vperm.xlu0 %71, %v22
    %v73 = vpop.permute.xlu0 %72
    %74 = vset.pattern.permute.xlu0 0
    %75 = vperm.xlu0 %74, %v23
    %v76 = vpop.permute.xlu0 %75
    %77 = vset.pattern.permute.xlu0 0
    %78 = vperm.xlu0 %77, %v24
    %v79 = vpop.permute.xlu0 %78
    %80 = vset.pattern.permute.xlu0 0
    %81 = vperm.xlu0 %80, %v25
    %v82 = vpop.permute.xlu0 %81
    %83 = vset.pattern.permute.xlu0 0
    %84 = vperm.xlu0 %83, %v26
    %v85 = vpop.permute.xlu0 %84
    %86 = vset.pattern.permute.xlu0 0
    %87 = vperm.xlu0 %86, %v27
    %v88 = vpop.permute.xlu0 %87
    %89 = vset.pattern.permute.xlu0 0
    %90 = vperm.xlu0 %89, %v28
    %v91 = vpop.permute.xlu0 %90
    %92 = vset.pattern.permute.xlu0 0
    %93 = vperm.xlu0 %92, %v29
    %v94 = vpop.permute.xlu0 %93
    %95 = vset.pattern.permute.xlu0 0
    %96 = vperm.xlu0 %95, %v30
    %v97 = vpop.permute.xlu0 %96
    %98 = vset.pattern.permute.xlu0 0
    %99 = vperm.xlu0 %98, %v31
    %v100 = vpop.permute.xlu0 %99
    %101 = vset.pattern.permute.xlu0 0
    %102 = vperm.xlu0 %101, %v32
    %v103 = vpop.permute.xlu0 %102
    %104 = vset.pattern.permute.xlu0 0
    %105 = vperm.xlu0 %104, %v33
    %v106 = vpop.permute.xlu0 %105
    %107 = vset.pattern.permute.xlu0 0
    %108 = vperm.xlu0 %107, %v34
    %v109 = vpop.permute.xlu0 %108
    %110 = vset.pattern.permute.xlu0 0
    %111 = vperm.xlu0 %110, %v35
    %v112 = vpop.permute.xlu0 %111
    %113 = vset.pattern.permute.xlu0 0
    %114 = vperm.xlu0 %113, %v36
    %v115 = vpop.permute.xlu0 %114
    %116 = vset.pattern.permute.xlu0 0
    %117 = vperm.xlu0 %116, %v37
    %v118 = vpop.permute.xlu0 %117
    %119 = vset.pattern.permute.xlu0 0
    %120 = vperm.xlu0 %119, %v38
    %v121 = vpop.permute.xlu0 %120
    %122 = vset.pattern.permute.xlu0 0
    %123 = vperm.xlu0 %122, %v39
    %v124 = vpop.permute.xlu0 %123
    %125 = vset.pattern.permute.xlu0 0
    %126 = vperm.xlu0 %125, %v40
    %v127 = vpop.permute.xlu0 %126
    %128 = vset.pattern.permute.xlu0 0
    %129 = vperm.xlu0 %128, %v41
    %v130 = vpop.permute.xlu0 %129
    %131 = vset.pattern.permute.xlu0 0
    %132 = vperm.xlu0 %131, %v42
    %v133 = vpop.permute.xlu0 %132
    %134 = vset.pattern.permute.xlu0 0
    %135 = vperm.xlu0 %134, %v43
    %v136 = vpop.permute.xlu0 %135
    %137 = vset.pattern.permute.xlu0 0
    %138 = vperm.xlu0 %137, %v44
    %v139 = vpop.permute.xlu0 %138
    %140 = vset.pattern.permute.xlu0 0
    %141 = vperm.xlu0 %140, %v45
    %v142 = vpop.permute.xlu0 %141
    %143 = vset.pattern.permute.xlu0 0
    %144 = vperm.xlu0 %143, %v46
    %v145 = vpop.permute.xlu0 %144
    %vm146 = vcmp.eq.s32.totalorder %v48, %v52
    %vm147 = vcmp.eq.s32.totalorder %v49, %v52
    %vm148 = vcmp.eq.s32.totalorder %v48, %v55
    %vm149 = vcmp.eq.s32.totalorder %v49, %v55
    %vm150 = vcmp.eq.s32.totalorder %v48, %v58
    %vm151 = vcmp.eq.s32.totalorder %v49, %v58
    %vm152 = vcmp.eq.s32.totalorder %v48, %v61
    %vm153 = vcmp.eq.s32.totalorder %v49, %v61
    %vm154 = vcmp.eq.s32.totalorder %v48, %v64
    %vm155 = vcmp.eq.s32.totalorder %v49, %v64
    %vm156 = vcmp.eq.s32.totalorder %v48, %v67
    %vm157 = vcmp.eq.s32.totalorder %v49, %v67
    %vm158 = vcmp.eq.s32.totalorder %v48, %v70
    %vm159 = vcmp.eq.s32.totalorder %v49, %v70
    %vm160 = vcmp.eq.s32.totalorder %v48, %v73
    %vm161 = vcmp.eq.s32.totalorder %v49, %v73
    %vm162 = vcmp.eq.s32.totalorder %v48, %v76
    %vm163 = vcmp.eq.s32.totalorder %v49, %v76
    %vm164 = vcmp.eq.s32.totalorder %v48, %v79
    %vm165 = vcmp.eq.s32.totalorder %v49, %v79
    %vm166 = vcmp.eq.s32.totalorder %v48, %v82
    %vm167 = vcmp.eq.s32.totalorder %v49, %v82
    %vm168 = vcmp.eq.s32.totalorder %v48, %v85
    %vm169 = vcmp.eq.s32.totalorder %v49, %v85
    %vm170 = vcmp.eq.s32.totalorder %v48, %v88
    %vm171 = vcmp.eq.s32.totalorder %v49, %v88
    %vm172 = vcmp.eq.s32.totalorder %v48, %v91
    %vm173 = vcmp.eq.s32.totalorder %v49, %v91
    %vm174 = vcmp.eq.s32.totalorder %v48, %v94
    %vm175 = vcmp.eq.s32.totalorder %v49, %v94
    %vm176 = vcmp.eq.s32.totalorder %v48, %v97
    %vm177 = vcmp.eq.s32.totalorder %v49, %v97
    %vm178 = vcmp.eq.s32.totalorder %v48, %v100
    %vm179 = vcmp.eq.s32.totalorder %v49, %v100
    %vm180 = vcmp.eq.s32.totalorder %v48, %v103
    %vm181 = vcmp.eq.s32.totalorder %v49, %v103
    %vm182 = vcmp.eq.s32.totalorder %v48, %v106
    %vm183 = vcmp.eq.s32.totalorder %v49, %v106
    %vm184 = vcmp.eq.s32.totalorder %v48, %v109
    %vm185 = vcmp.eq.s32.totalorder %v49, %v109
    %vm186 = vcmp.eq.s32.totalorder %v48, %v112
    %vm187 = vcmp.eq.s32.totalorder %v49, %v112
    %vm188 = vcmp.eq.s32.totalorder %v48, %v115
    %vm189 = vcmp.eq.s32.totalorder %v49, %v115
    %vm190 = vcmp.eq.s32.totalorder %v48, %v118
    %vm191 = vcmp.eq.s32.totalorder %v49, %v118
    %vm192 = vcmp.eq.s32.totalorder %v48, %v121
    %vm193 = vcmp.eq.s32.totalorder %v49, %v121
    %vm194 = vcmp.eq.s32.totalorder %v48, %v124
    %vm195 = vcmp.eq.s32.totalorder %v49, %v124
    %vm196 = vcmp.eq.s32.totalorder %v48, %v127
    %vm197 = vcmp.eq.s32.totalorder %v49, %v127
    %vm198 = vcmp.eq.s32.totalorder %v48, %v130
    %vm199 = vcmp.eq.s32.totalorder %v49, %v130
    %vm200 = vcmp.eq.s32.totalorder %v48, %v133
    %vm201 = vcmp.eq.s32.totalorder %v49, %v133
    %vm202 = vcmp.eq.s32.totalorder %v48, %v136
    %vm203 = vcmp.eq.s32.totalorder %v49, %v136
    %vm204 = vcmp.eq.s32.totalorder %v48, %v139
    %vm205 = vcmp.eq.s32.totalorder %v49, %v139
    %vm206 = vcmp.eq.s32.totalorder %v48, %v142
    %vm207 = vcmp.eq.s32.totalorder %v49, %v142
    %vm208 = vcmp.eq.s32.totalorder %v48, %v145
    %vm209 = vcmp.eq.s32.totalorder %v49, %v145
    %v210 = vsel %vm146, 1, 0
    %v211 = vsel %vm147, 1, 0
    %v212 = vsel %vm148, 1, 0
    %v213 = vsel %vm149, 1, 0
    %v214 = vsel %vm150, 1, 0
    %v215 = vsel %vm151, 1, 0
    %v216 = vsel %vm152, 1, 0
    %v217 = vsel %vm153, 1, 0
    %v218 = vsel %vm154, 1, 0
    %v219 = vsel %vm155, 1, 0
    %v220 = vsel %vm156, 1, 0
    %v221 = vsel %vm157, 1, 0
    %v222 = vsel %vm158, 1, 0
    %v223 = vsel %vm159, 1, 0
    %v224 = vsel %vm160, 1, 0
    %v225 = vsel %vm161, 1, 0
    %v226 = vsel %vm162, 1, 0
    %v227 = vsel %vm163, 1, 0
    %v228 = vsel %vm164, 1, 0
    %v229 = vsel %vm165, 1, 0
    %v230 = vsel %vm166, 1, 0
    %v231 = vsel %vm167, 1, 0
    %v232 = vsel %vm168, 1, 0
    %v233 = vsel %vm169, 1, 0
    %v234 = vsel %vm170, 1, 0
    %v235 = vsel %vm171, 1, 0
    %v236 = vsel %vm172, 1, 0
    %v237 = vsel %vm173, 1, 0
    %v238 = vsel %vm174, 1, 0
    %v239 = vsel %vm175, 1, 0
    %v240 = vsel %vm176, 1, 0
    %v241 = vsel %vm177, 1, 0
    %v242 = vsel %vm178, 1, 0
    %v243 = vsel %vm179, 1, 0
    %v244 = vsel %vm180, 1, 0
    %v245 = vsel %vm181, 1, 0
    %v246 = vsel %vm182, 1, 0
    %v247 = vsel %vm183, 1, 0
    %v248 = vsel %vm184, 1, 0
    %v249 = vsel %vm185, 1, 0
    %v250 = vsel %vm186, 1, 0
    %v251 = vsel %vm187, 1, 0
    %v252 = vsel %vm188, 1, 0
    %v253 = vsel %vm189, 1, 0
    %v254 = vsel %vm190, 1, 0
    %v255 = vsel %vm191, 1, 0
    %v256 = vsel %vm192, 1, 0
    %v257 = vsel %vm193, 1, 0
    %v258 = vsel %vm194, 1, 0
    %v259 = vsel %vm195, 1, 0
    %v260 = vsel %vm196, 1, 0
    %v261 = vsel %vm197, 1, 0
    %v262 = vsel %vm198, 1, 0
    %v263 = vsel %vm199, 1, 0
    %v264 = vsel %vm200, 1, 0
    %v265 = vsel %vm201, 1, 0
    %v266 = vsel %vm202, 1, 0
    %v267 = vsel %vm203, 1, 0
    %v268 = vsel %vm204, 1, 0
    %v269 = vsel %vm205, 1, 0
    %v270 = vsel %vm206, 1, 0
    %v271 = vsel %vm207, 1, 0
    %v272 = vsel %vm208, 1, 0
    %v273 = vsel %vm209, 1, 0
    %v274 = vcvt.s32.f32 %v210
    %v275 = vcvt.s32.f32 %v211
    %v276 = vcvt.s32.f32 %v212
    %v277 = vcvt.s32.f32 %v213
    %v278 = vcvt.s32.f32 %v214
    %v279 = vcvt.s32.f32 %v215
    %v280 = vcvt.s32.f32 %v216
    %v281 = vcvt.s32.f32 %v217
    %v282 = vcvt.s32.f32 %v218
    %v283 = vcvt.s32.f32 %v219
    %v284 = vcvt.s32.f32 %v220
    %v285 = vcvt.s32.f32 %v221
    %v286 = vcvt.s32.f32 %v222
    %v287 = vcvt.s32.f32 %v223
    %v288 = vcvt.s32.f32 %v224
    %v289 = vcvt.s32.f32 %v225
    %v290 = vcvt.s32.f32 %v226
    %v291 = vcvt.s32.f32 %v227
    %v292 = vcvt.s32.f32 %v228
    %v293 = vcvt.s32.f32 %v229
    %v294 = vcvt.s32.f32 %v230
    %v295 = vcvt.s32.f32 %v231
    %v296 = vcvt.s32.f32 %v232
    %v297 = vcvt.s32.f32 %v233
    %v298 = vcvt.s32.f32 %v234
    %v299 = vcvt.s32.f32 %v235
    %v300 = vcvt.s32.f32 %v236
    %v301 = vcvt.s32.f32 %v237
    %v302 = vcvt.s32.f32 %v238
    %v303 = vcvt.s32.f32 %v239
    %v304 = vcvt.s32.f32 %v240
    %v305 = vcvt.s32.f32 %v241
    %v306 = vcvt.s32.f32 %v242
    %v307 = vcvt.s32.f32 %v243
    %v308 = vcvt.s32.f32 %v244
    %v309 = vcvt.s32.f32 %v245
    %v310 = vcvt.s32.f32 %v246
    %v311 = vcvt.s32.f32 %v247
    %v312 = vcvt.s32.f32 %v248
    %v313 = vcvt.s32.f32 %v249
    %v314 = vcvt.s32.f32 %v250
    %v315 = vcvt.s32.f32 %v251
    %v316 = vcvt.s32.f32 %v252
    %v317 = vcvt.s32.f32 %v253
    %v318 = vcvt.s32.f32 %v254
    %v319 = vcvt.s32.f32 %v255
    %v320 = vcvt.s32.f32 %v256
    %v321 = vcvt.s32.f32 %v257
    %v322 = vcvt.s32.f32 %v258
    %v323 = vcvt.s32.f32 %v259
    %v324 = vcvt.s32.f32 %v260
    %v325 = vcvt.s32.f32 %v261
    %v326 = vcvt.s32.f32 %v262
    %v327 = vcvt.s32.f32 %v263
    %v328 = vcvt.s32.f32 %v264
    %v329 = vcvt.s32.f32 %v265
    %v330 = vcvt.s32.f32 %v266
    %v331 = vcvt.s32.f32 %v267
    %v332 = vcvt.s32.f32 %v268
    %v333 = vcvt.s32.f32 %v269
    %v334 = vcvt.s32.f32 %v270
    %v335 = vcvt.s32.f32 %v271
    %v336 = vcvt.s32.f32 %v272
    %v337 = vcvt.s32.f32 %v273
    %v338 = vld [vmem:[%s1] sm:$0xff]
    %v339 = vld [vmem:[%s1 + $0x8] sm:$0xff]
    %v340 = vld [vmem:[%s1 + $0x10] sm:$0xff]
    %v341 = vld [vmem:[%s1 + $0x18] sm:$0xff]
    %v342 = vld [vmem:[%s1 + $0x20] sm:$0xff]
    %v343 = vld [vmem:[%s1 + $0x28] sm:$0xff]
    %v344 = vld [vmem:[%s1 + $0x30] sm:$0xff]
    %v345 = vld [vmem:[%s1 + $0x38] sm:$0xff]
    %v346 = vld [vmem:[%s1 + $0x40] sm:$0xff]
    %v347 = vld [vmem:[%s1 + $0x48] sm:$0xff]
    %v348 = vld [vmem:[%s1 + $0x50] sm:$0xff]
    %v349 = vld [vmem:[%s1 + $0x58] sm:$0xff]
    %v350 = vld [vmem:[%s1 + $0x60] sm:$0xff]
    %v351 = vld [vmem:[%s1 + $0x68] sm:$0xff]
    %v352 = vld [vmem:[%s1 + $0x70] sm:$0xff]
    %v353 = vld [vmem:[%s1 + $0x78] sm:$0xff]
    %v354 = vld [vmem:[%s1 + $0x80] sm:$0xff]
    %v355 = vld [vmem:[%s1 + $0x88] sm:$0xff]
    %v356 = vld [vmem:[%s1 + $0x90] sm:$0xff]
    %v357 = vld [vmem:[%s1 + $0x98] sm:$0xff]
    %v358 = vld [vmem:[%s1 + $0xa0] sm:$0xff]
    %v359 = vld [vmem:[%s1 + $0xa8] sm:$0xff]
    %v360 = vld [vmem:[%s1 + $0xb0] sm:$0xff]
    %v361 = vld [vmem:[%s1 + $0xb8] sm:$0xff]
    %v362 = vld [vmem:[%s1 + $0xc0] sm:$0xff]
    %v363 = vld [vmem:[%s1 + $0xc8] sm:$0xff]
    %v364 = vld [vmem:[%s1 + $0xd0] sm:$0xff]
    %v365 = vld [vmem:[%s1 + $0xd8] sm:$0xff]
    %v366 = vld [vmem:[%s1 + $0xe0] sm:$0xff]
    %v367 = vld [vmem:[%s1 + $0xe8] sm:$0xff]
    %v368 = vld [vmem:[%s1 + $0xf0] sm:$0xff]
    %v369 = vld [vmem:[%s1 + $0xf8] sm:$0xff]
    %370 = vmatprep.subr.mxu0 0.0
    %v371 = vand.u32 %v338, 4294901760
    %372 = vmatpush1.msra.mxu0 %v371
    %373 = vmatprep.subr.mxu0 0.0
    %v374 = vand.u32 %v339, 4294901760
    %375 = vmatpush1.msra.mxu0 %v374
    %376 = vmatprep.subr.mxu0 0.0
    %v377 = vand.u32 %v340, 4294901760
    %378 = vmatpush1.msra.mxu0 %v377
    %379 = vmatprep.subr.mxu0 0.0
    %v380 = vand.u32 %v341, 4294901760
    %381 = vmatpush1.msra.mxu0 %v380
    %382 = vmatprep.subr.mxu0 0.0
    %v383 = vand.u32 %v342, 4294901760
    %384 = vmatpush1.msra.mxu0 %v383
    %385 = vmatprep.subr.mxu0 0.0
    %v386 = vand.u32 %v343, 4294901760
    %387 = vmatpush1.msra.mxu0 %v386
    %388 = vmatprep.subr.mxu0 0.0
    %v389 = vand.u32 %v344, 4294901760
    %390 = vmatpush1.msra.mxu0 %v389
    %391 = vmatprep.subr.mxu0 0.0
    %v392 = vand.u32 %v345, 4294901760
    %393 = vmatpush1.msra.mxu0 %v392
    %394 = vmatprep.subr.mxu0 0.0
    %v395 = vand.u32 %v346, 4294901760
    %396 = vmatpush1.msra.mxu0 %v395
    %397 = vmatprep.subr.mxu0 0.0
    %v398 = vand.u32 %v347, 4294901760
    %399 = vmatpush1.msra.mxu0 %v398
    %400 = vmatprep.subr.mxu0 0.0
    %v401 = vand.u32 %v348, 4294901760
    %402 = vmatpush1.msra.mxu0 %v401
    %403 = vmatprep.subr.mxu0 0.0
    %v404 = vand.u32 %v349, 4294901760
    %405 = vmatpush1.msra.mxu0 %v404
    %406 = vmatprep.subr.mxu0 0.0
    %v407 = vand.u32 %v350, 4294901760
    %408 = vmatpush1.msra.mxu0 %v407
    %409 = vmatprep.subr.mxu0 0.0
    %v410 = vand.u32 %v351, 4294901760
    %411 = vmatpush1.msra.mxu0 %v410
    %412 = vmatprep.subr.mxu0 0.0
    %v413 = vand.u32 %v352, 4294901760
    %414 = vmatpush1.msra.mxu0 %v413
    %415 = vmatprep.subr.mxu0 0.0
    %v416 = vand.u32 %v353, 4294901760
    %417 = vmatpush1.msra.mxu0 %v416
    %418 = vmatprep.subr.mxu0 0.0
    %v419 = vand.u32 %v354, 4294901760
    %420 = vmatpush1.msra.mxu0 %v419
    %421 = vmatprep.subr.mxu0 0.0
    %v422 = vand.u32 %v355, 4294901760
    %423 = vmatpush1.msra.mxu0 %v422
    %424 = vmatprep.subr.mxu0 0.0
    %v425 = vand.u32 %v356, 4294901760
    %426 = vmatpush1.msra.mxu0 %v425
    %427 = vmatprep.subr.mxu0 0.0
    %v428 = vand.u32 %v357, 4294901760
    %429 = vmatpush1.msra.mxu0 %v428
    %430 = vmatprep.subr.mxu0 0.0
    %v431 = vand.u32 %v358, 4294901760
    %432 = vmatpush1.msra.mxu0 %v431
    %433 = vmatprep.subr.mxu0 0.0
    %v434 = vand.u32 %v359, 4294901760
    %435 = vmatpush1.msra.mxu0 %v434
    %436 = vmatprep.subr.mxu0 0.0
    %v437 = vand.u32 %v360, 4294901760
    %438 = vmatpush1.msra.mxu0 %v437
    %439 = vmatprep.subr.mxu0 0.0
    %v440 = vand.u32 %v361, 4294901760
    %441 = vmatpush1.msra.mxu0 %v440
    %442 = vmatprep.subr.mxu0 0.0
    %v443 = vand.u32 %v362, 4294901760
    %444 = vmatpush1.msra.mxu0 %v443
    %445 = vmatprep.subr.mxu0 0.0
    %v446 = vand.u32 %v363, 4294901760
    %447 = vmatpush1.msra.mxu0 %v446
    %448 = vmatprep.subr.mxu0 0.0
    %v449 = vand.u32 %v364, 4294901760
    %450 = vmatpush1.msra.mxu0 %v449
    %451 = vmatprep.subr.mxu0 0.0
    %v452 = vand.u32 %v365, 4294901760
    %453 = vmatpush1.msra.mxu0 %v452
    %454 = vmatprep.subr.mxu0 0.0
    %v455 = vand.u32 %v366, 4294901760
    %456 = vmatpush1.msra.mxu0 %v455
    %457 = vmatprep.subr.mxu0 0.0
    %v458 = vand.u32 %v367, 4294901760
    %459 = vmatpush1.msra.mxu0 %v458
    %460 = vmatprep.subr.mxu0 0.0
    %v461 = vand.u32 %v368, 4294901760
    %462 = vmatpush1.msra.mxu0 %v461
    %463 = vmatprep.subr.mxu0 0.0
    %v464 = vand.u32 %v369, 4294901760
    %465 = vmatpush1.msra.mxu0 %v464
    %v466 = vand.u32 %v275, 4294901760
    %v467 = vsub.f32 %v275, %v466
    %v468 = vand.u32 %v467, 4294901760
    %v469 = vsub.f32 %v467, %v468
    %v470 = vand.u32 %v469, 4294901760
    %471 = vmatprep.mubr.f32.mxu0 %v470
    %v472 = vand.u32 %v274, 4294901760
    %v473 = vsub.f32 %v274, %v472
    %v474 = vand.u32 %v473, 4294901760
    %v475 = vsub.f32 %v473, %v474
    %v476 = vand.u32 %v475, 4294901760
    %477 = vmatmul.mubr.f32.gmra.mrb[0].mxu0 %v476
    %v478 = vpop.f32.mrb[0].mxu0
    %v479 = vadd.f32 0.0, %v478
    %v480 = vpop.f32.mrb[0].mxu0
    %v481 = vand.u32 %v277, 4294901760
    %v482 = vsub.f32 %v277, %v481
    %v483 = vand.u32 %v482, 4294901760
    %v484 = vsub.f32 %v482, %v483
    %v485 = vand.u32 %v484, 4294901760
    %486 = vmatprep.mubr.f32.mxu0 %v485
    %v487 = vand.u32 %v276, 4294901760
    %v488 = vsub.f32 %v276, %v487
    %v489 = vand.u32 %v488, 4294901760
    %v490 = vsub.f32 %v488, %v489
    %v491 = vand.u32 %v490, 4294901760
    %492 = vmatmul.mubr.f32.gmra.mrb[0].mxu0 %v491
    %v493 = vpop.f32.mrb[0].mxu0
    %v494 = vadd.f32 0.0, %v493
    %v495 = vpop.f32.mrb[0].mxu0
    %v496 = vand.u32 %v279, 4294901760
    %v497 = vsub.f32 %v279, %v496
    %v498 = vand.u32 %v497, 4294901760
    %v499 = vsub.f32 %v497, %v498
    %v500 = vand.u32 %v499, 4294901760
    %501 = vmatprep.mubr.f32.mxu0 %v500
    %v502 = vand.u32 %v278, 4294901760
    %v503 = vsub.f32 %v278, %v502
    %v504 = vand.u32 %v503, 4294901760
    %v505 = vsub.f32 %v503, %v504
    %v506 = vand.u32 %v505, 4294901760
    %507 = vmatmul.mubr.f32.gmra.mrb[0].mxu0 %v506
    %v508 = vpop.f32.mrb[0].mxu0
    %v509 = vadd.f32 0.0, %v508
    %v510 = vpop.f32.mrb[0].mxu0
    %v511 = vand.u32 %v281, 4294901760
    %v512 = vsub.f32 %v281, %v511
    %v513 = vand.u32 %v512, 4294901760
    %v514 = vsub.f32 %v512, %v513
    %v515 = vand.u32 %v514, 4294901760
    %516 = vmatprep.mubr.f32.mxu0 %v515
    %v517 = vand.u32 %v280, 4294901760
    %v518 = vsub.f32 %v280, %v517
    %v519 = vand.u32 %v518, 4294901760
    %v520 = vsub.f32 %v518, %v519
    %v521 = vand.u32 %v520, 4294901760
    %522 = vmatmul.mubr.f32.gmra.mrb[0].mxu0 %v521
    %v523 = vpop.f32.mrb[0].mxu0
    %v524 = vadd.f32 0.0, %v523
    %v525 = vpop.f32.mrb[0].mxu0
    %v526 = vand.u32 %v283, 4294901760
    %v527 = vsub.f32 %v283, %v526
    %v528 = vand.u32 %v527, 4294901760
    %v529 = vsub.f32 %v527, %v528
    %v530 = vand.u32 %v529, 4294901760
    %531 = vmatprep.mubr.f32.mxu0 %v530
    %v532 = vand.u32 %v282, 4294901760
    %v533 = vsub.f32 %v282, %v532
    %v534 = vand.u32 %v533, 4294901760
    %v535 = vsub.f32 %v533, %v534
    %v536 = vand.u32 %v535, 4294901760
    %537 = vmatmul.mubr.f32.gmra.mrb[0].mxu0 %v536
    %v538 = vpop.f32.mrb[0].mxu0
    %v539 = vadd.f32 0.0, %v538
    %v540 = vpop.f32.mrb[0].mxu0
    %v541 = vand.u32 %v285, 4294901760
    %v542 = vsub.f32 %v285, %v541
    %v543 = vand.u32 %v542, 4294901760
    %v544 = vsub.f32 %v542, %v543
    %v545 = vand.u32 %v544, 4294901760
    %546 = vmatprep.mubr.f32.mxu0 %v545
    %v547 = vand.u32 %v284, 4294901760
    %v548 = vsub.f32 %v284, %v547
    %v549 = vand.u32 %v548, 4294901760
    %v550 = vsub.f32 %v548, %v549
    %v551 = vand.u32 %v550, 4294901760
    %552 = vmatmul.mubr.f32.gmra.mrb[0].mxu0 %v551
    %v553 = vpop.f32.mrb[0].mxu0
    %v554 = vadd.f32 0.0, %v553
    %v555 = vpop.f32.mrb[0].mxu0
    %v556 = vand.u32 %v287, 4294901760
    %v557 = vsub.f32 %v287, %v556
    %v558 = vand.u32 %v557, 4294901760
    %v559 = vsub.f32 %v557, %v558
    %v560 = vand.u32 %v559, 4294901760
    %561 = vmatprep.mubr.f32.mxu0 %v560
    %v562 = vand.u32 %v286, 4294901760
    %v563 = vsub.f32 %v286, %v562
    %v564 = vand.u32 %v563, 4294901760
    %v565 = vsub.f32 %v563, %v564
    %v566 = vand.u32 %v565, 4294901760
    %567 = vmatmul.mubr.f32.gmra.mrb[0].mxu0 %v566
    %v568 = vpop.f32.mrb[0].mxu0
    %v569 = vadd.f32 0.0, %v568
    %v570 = vpop.f32.mrb[0].mxu0
    %v571 = vand.u32 %v289, 4294901760
    %v572 = vsub.f32 %v289, %v571
    %v573 = vand.u32 %v572, 4294901760
    %v574 = vsub.f32 %v572, %v573
    %v575 = vand.u32 %v574, 4294901760
    %576 = vmatprep.mubr.f32.mxu0 %v575
    %v577 = vand.u32 %v288, 4294901760
    %v578 = vsub.f32 %v288, %v577
    %v579 = vand.u32 %v578, 4294901760
    %v580 = vsub.f32 %v578, %v579
    %v581 = vand.u32 %v580, 4294901760
    %582 = vmatmul.mubr.f32.gmra.mrb[0].mxu0 %v581
    %v583 = vpop.f32.mrb[0].mxu0
    %v584 = vadd.f32 0.0, %v583
    %v585 = vpop.f32.mrb[0].mxu0
    %v586 = vand.u32 %v291, 4294901760
    %v587 = vsub.f32 %v291, %v586
    %v588 = vand.u32 %v587, 4294901760
    %v589 = vsub.f32 %v587, %v588
    %v590 = vand.u32 %v589, 4294901760
    %591 = vmatprep.mubr.f32.mxu0 %v590
    %v592 = vand.u32 %v290, 4294901760
    %v593 = vsub.f32 %v290, %v592
    %v594 = vand.u32 %v593, 4294901760
    %v595 = vsub.f32 %v593, %v594
    %v596 = vand.u32 %v595, 4294901760
    %597 = vmatmul.mubr.f32.gmra.mrb[0].mxu0 %v596
    %v598 = vpop.f32.mrb[0].mxu0
    %v599 = vadd.f32 0.0, %v598
    %v600 = vpop.f32.mrb[0].mxu0
    %v601 = vand.u32 %v293, 4294901760
    %v602 = vsub.f32 %v293, %v601
    %v603 = vand.u32 %v602, 4294901760
    %v604 = vsub.f32 %v602, %v603
    %v605 = vand.u32 %v604, 4294901760
    %606 = vmatprep.mubr.f32.mxu0 %v605
    %v607 = vand.u32 %v292, 4294901760
    %v608 = vsub.f32 %v292, %v607
    %v609 = vand.u32 %v608, 4294901760
    %v610 = vsub.f32 %v608, %v609
    %v611 = vand.u32 %v610, 4294901760
    %612 = vmatmul.mubr.f32.gmra.mrb[0].mxu0 %v611
    %v613 = vpop.f32.mrb[0].mxu0
    %v614 = vadd.f32 0.0, %v613
    %v615 = vpop.f32.mrb[0].mxu0
    %v616 = vand.u32 %v295, 4294901760
    %v617 = vsub.f32 %v295, %v616
    %v618 = vand.u32 %v617, 4294901760
    %v619 = vsub.f32 %v617, %v618
    %v620 = vand.u32 %v619, 4294901760
    %621 = vmatprep.mubr.f32.mxu0 %v620
    %v622 = vand.u32 %v294, 4294901760
    %v623 = vsub.f32 %v294, %v622
    %v624 = vand.u32 %v623, 4294901760
    %v625 = vsub.f32 %v623, %v624
    %v626 = vand.u32 %v625, 4294901760
    %627 = vmatmul.mubr.f32.gmra.mrb[0].mxu0 %v626
    %v628 = vpop.f32.mrb[0].mxu0
    %v629 = vadd.f32 0.0, %v628
    %v630 = vpop.f32.mrb[0].mxu0
    %v631 = vand.u32 %v297, 4294901760
    %v632 = vsub.f32 %v297, %v631
    %v633 = vand.u32 %v632, 4294901760
    %v634 = vsub.f32 %v632, %v633
    %v635 = vand.u32 %v634, 4294901760
    %636 = vmatprep.mubr.f32.mxu0 %v635
    %v637 = vand.u32 %v296, 4294901760
    %v638 = vsub.f32 %v296, %v637
    %v639 = vand.u32 %v638, 4294901760
    %v640 = vsub.f32 %v638, %v639
    %v641 = vand.u32 %v640, 4294901760
    %642 = vmatmul.mubr.f32.gmra.mrb[0].mxu0 %v641
    %v643 = vpop.f32.mrb[0].mxu0
    %v644 = vadd.f32 0.0, %v643
    %v645 = vpop.f32.mrb[0].mxu0
    %v646 = vand.u32 %v299, 4294901760
    %v647 = vsub.f32 %v299, %v646
    %v648 = vand.u32 %v647, 4294901760
    %v649 = vsub.f32 %v647, %v648
    %v650 = vand.u32 %v649, 4294901760
    %651 = vmatprep.mubr.f32.mxu0 %v650
    %v652 = vand.u32 %v298, 4294901760
    %v653 = vsub.f32 %v298, %v652
    %v654 = vand.u32 %v653, 4294901760
    %v655 = vsub.f32 %v653, %v654
    %v656 = vand.u32 %v655, 4294901760
    %657 = vmatmul.mubr.f32.gmra.mrb[0].mxu0 %v656
    %v658 = vpop.f32.mrb[0].mxu0
    %v659 = vadd.f32 0.0, %v658
    %v660 = vpop.f32.mrb[0].mxu0
    %v661 = vand.u32 %v301, 4294901760
    %v662 = vsub.f32 %v301, %v661
    %v663 = vand.u32 %v662, 4294901760
    %v664 = vsub.f32 %v662, %v663
    %v665 = vand.u32 %v664, 4294901760
    %666 = vmatprep.mubr.f32.mxu0 %v665
    %v667 = vand.u32 %v300, 4294901760
    %v668 = vsub.f32 %v300, %v667
    %v669 = vand.u32 %v668, 4294901760
    %v670 = vsub.f32 %v668, %v669
    %v671 = vand.u32 %v670, 4294901760
    %672 = vmatmul.mubr.f32.gmra.mrb[0].mxu0 %v671
    %v673 = vpop.f32.mrb[0].mxu0
    %v674 = vadd.f32 0.0, %v673
    %v675 = vpop.f32.mrb[0].mxu0
    %v676 = vand.u32 %v303, 4294901760
    %v677 = vsub.f32 %v303, %v676
    %v678 = vand.u32 %v677, 4294901760
    %v679 = vsub.f32 %v677, %v678
    %v680 = vand.u32 %v679, 4294901760
    %681 = vmatprep.mubr.f32.mxu0 %v680
    %v682 = vand.u32 %v302, 4294901760
    %v683 = vsub.f32 %v302, %v682
    %v684 = vand.u32 %v683, 4294901760
    %v685 = vsub.f32 %v683, %v684
    %v686 = vand.u32 %v685, 4294901760
    %687 = vmatmul.mubr.f32.gmra.mrb[0].mxu0 %v686
    %v688 = vpop.f32.mrb[0].mxu0
    %v689 = vadd.f32 0.0, %v688
    %v690 = vpop.f32.mrb[0].mxu0
    %v691 = vand.u32 %v305, 4294901760
    %v692 = vsub.f32 %v305, %v691
    %v693 = vand.u32 %v692, 4294901760
    %v694 = vsub.f32 %v692, %v693
    %v695 = vand.u32 %v694, 4294901760
    %696 = vmatprep.mubr.f32.mxu0 %v695
    %v697 = vand.u32 %v304, 4294901760
    %v698 = vsub.f32 %v304, %v697
    %v699 = vand.u32 %v698, 4294901760
    %v700 = vsub.f32 %v698, %v699
    %v701 = vand.u32 %v700, 4294901760
    %702 = vmatmul.mubr.f32.gmra.mrb[0].mxu0 %v701
    %v703 = vpop.f32.mrb[0].mxu0
    %v704 = vadd.f32 0.0, %v703
    %v705 = vpop.f32.mrb[0].mxu0
    %v706 = vand.u32 %v307, 4294901760
    %v707 = vsub.f32 %v307, %v706
    %v708 = vand.u32 %v707, 4294901760
    %v709 = vsub.f32 %v707, %v708
    %v710 = vand.u32 %v709, 4294901760
    %711 = vmatprep.mubr.f32.mxu0 %v710
    %v712 = vand.u32 %v306, 4294901760
    %v713 = vsub.f32 %v306, %v712
    %v714 = vand.u32 %v713, 4294901760
    %v715 = vsub.f32 %v713, %v714
    %v716 = vand.u32 %v715, 4294901760
    %717 = vmatmul.mubr.f32.gmra.mrb[0].mxu0 %v716
    %v718 = vpop.f32.mrb[0].mxu0
    %v719 = vadd.f32 0.0, %v718
    %v720 = vpop.f32.mrb[0].mxu0
    %v721 = vand.u32 %v309, 4294901760
    %v722 = vsub.f32 %v309, %v721
    %v723 = vand.u32 %v722, 4294901760
    %v724 = vsub.f32 %v722, %v723
    %v725 = vand.u32 %v724, 4294901760
    %726 = vmatprep.mubr.f32.mxu0 %v725
    %v727 = vand.u32 %v308, 4294901760
    %v728 = vsub.f32 %v308, %v727
    %v729 = vand.u32 %v728, 4294901760
    %v730 = vsub.f32 %v728, %v729
    %v731 = vand.u32 %v730, 4294901760
    %732 = vmatmul.mubr.f32.gmra.mrb[0].mxu0 %v731
    %v733 = vpop.f32.mrb[0].mxu0
    %v734 = vadd.f32 0.0, %v733
    %v735 = vpop.f32.mrb[0].mxu0
    %v736 = vand.u32 %v311, 4294901760
    %v737 = vsub.f32 %v311, %v736
    %v738 = vand.u32 %v737, 4294901760
    %v739 = vsub.f32 %v737, %v738
    %v740 = vand.u32 %v739, 4294901760
    %741 = vmatprep.mubr.f32.mxu0 %v740
    %v742 = vand.u32 %v310, 4294901760
    %v743 = vsub.f32 %v310, %v742
    %v744 = vand.u32 %v743, 4294901760
    %v745 = vsub.f32 %v743, %v744
    %v746 = vand.u32 %v745, 4294901760
    %747 = vmatmul.mubr.f32.gmra.mrb[0].mxu0 %v746
    %v748 = vpop.f32.mrb[0].mxu0
    %v749 = vadd.f32 0.0, %v748
    %v750 = vpop.f32.mrb[0].mxu0
    %v751 = vand.u32 %v313, 4294901760
    %v752 = vsub.f32 %v313, %v751
    %v753 = vand.u32 %v752, 4294901760
    %v754 = vsub.f32 %v752, %v753
    %v755 = vand.u32 %v754, 4294901760
    %756 = vmatprep.mubr.f32.mxu0 %v755
    %v757 = vand.u32 %v312, 4294901760
    %v758 = vsub.f32 %v312, %v757
    %v759 = vand.u32 %v758, 4294901760
    %v760 = vsub.f32 %v758, %v759
    %v761 = vand.u32 %v760, 4294901760
    %762 = vmatmul.mubr.f32.gmra.mrb[0].mxu0 %v761
    %v763 = vpop.f32.mrb[0].mxu0
    %v764 = vadd.f32 0.0, %v763
    %v765 = vpop.f32.mrb[0].mxu0
    %v766 = vand.u32 %v315, 4294901760
    %v767 = vsub.f32 %v315, %v766
    %v768 = vand.u32 %v767, 4294901760
    %v769 = vsub.f32 %v767, %v768
    %v770 = vand.u32 %v769, 4294901760
    %771 = vmatprep.mubr.f32.mxu0 %v770
    %v772 = vand.u32 %v314, 4294901760
    %v773 = vsub.f32 %v314, %v772
    %v774 = vand.u32 %v773, 4294901760
    %v775 = vsub.f32 %v773, %v774
    %v776 = vand.u32 %v775, 4294901760
    %777 = vmatmul.mubr.f32.gmra.mrb[0].mxu0 %v776
    %v778 = vpop.f32.mrb[0].mxu0
    %v779 = vadd.f32 0.0, %v778
    %v780 = vpop.f32.mrb[0].mxu0
    %v781 = vand.u32 %v317, 4294901760
    %v782 = vsub.f32 %v317, %v781
    %v783 = vand.u32 %v782, 4294901760
    %v784 = vsub.f32 %v782, %v783
    %v785 = vand.u32 %v784, 4294901760
    %786 = vmatprep.mubr.f32.mxu0 %v785
    %v787 = vand.u32 %v316, 4294901760
    %v788 = vsub.f32 %v316, %v787
    %v789 = vand.u32 %v788, 4294901760
    %v790 = vsub.f32 %v788, %v789
    %v791 = vand.u32 %v790, 4294901760
    %792 = vmatmul.mubr.f32.gmra.mrb[0].mxu0 %v791
    %v793 = vpop.f32.mrb[0].mxu0
    %v794 = vadd.f32 0.0, %v793
    %v795 = vpop.f32.mrb[0].mxu0
    %v796 = vand.u32 %v319, 4294901760
    %v797 = vsub.f32 %v319, %v796
    %v798 = vand.u32 %v797, 4294901760
    %v799 = vsub.f32 %v797, %v798
    %v800 = vand.u32 %v799, 4294901760
    %801 = vmatprep.mubr.f32.mxu0 %v800
    %v802 = vand.u32 %v318, 4294901760
    %v803 = vsub.f32 %v318, %v802
    %v804 = vand.u32 %v803, 4294901760
    %v805 = vsub.f32 %v803, %v804
    %v806 = vand.u32 %v805, 4294901760
    %807 = vmatmul.mubr.f32.gmra.mrb[0].mxu0 %v806
    %v808 = vpop.f32.mrb[0].mxu0
    %v809 = vadd.f32 0.0, %v808
    %v810 = vpop.f32.mrb[0].mxu0
    %v811 = vand.u32 %v321, 4294901760
    %v812 = vsub.f32 %v321, %v811
    %v813 = vand.u32 %v812, 4294901760
    %v814 = vsub.f32 %v812, %v813
    %v815 = vand.u32 %v814, 4294901760
    %816 = vmatprep.mubr.f32.mxu0 %v815
    %v817 = vand.u32 %v320, 4294901760
    %v818 = vsub.f32 %v320, %v817
    %v819 = vand.u32 %v818, 4294901760
    %v820 = vsub.f32 %v818, %v819
    %v821 = vand.u32 %v820, 4294901760
    %822 = vmatmul.mubr.f32.gmra.mrb[0].mxu0 %v821
    %v823 = vpop.f32.mrb[0].mxu0
    %v824 = vadd.f32 0.0, %v823
    %v825 = vpop.f32.mrb[0].mxu0
    %v826 = vand.u32 %v323, 4294901760
    %v827 = vsub.f32 %v323, %v826
    %v828 = vand.u32 %v827, 4294901760
    %v829 = vsub.f32 %v827, %v828
    %v830 = vand.u32 %v829, 4294901760
    %831 = vmatprep.mubr.f32.mxu0 %v830
    %v832 = vand.u32 %v322, 4294901760
    %v833 = vsub.f32 %v322, %v832
    %v834 = vand.u32 %v833, 4294901760
    %v835 = vsub.f32 %v833, %v834
    %v836 = vand.u32 %v835, 4294901760
    %837 = vmatmul.mubr.f32.gmra.mrb[0].mxu0 %v836
    %v838 = vpop.f32.mrb[0].mxu0
    %v839 = vadd.f32 0.0, %v838
    %v840 = vpop.f32.mrb[0].mxu0
    %v841 = vand.u32 %v325, 4294901760
    %v842 = vsub.f32 %v325, %v841
    %v843 = vand.u32 %v842, 4294901760
    %v844 = vsub.f32 %v842, %v843
    %v845 = vand.u32 %v844, 4294901760
    %846 = vmatprep.mubr.f32.mxu0 %v845
    %v847 = vand.u32 %v324, 4294901760
    %v848 = vsub.f32 %v324, %v847
    %v849 = vand.u32 %v848, 4294901760
    %v850 = vsub.f32 %v848, %v849
    %v851 = vand.u32 %v850, 4294901760
    %852 = vmatmul.mubr.f32.gmra.mrb[0].mxu0 %v851
    %v853 = vpop.f32.mrb[0].mxu0
    %v854 = vadd.f32 0.0, %v853
    %v855 = vpop.f32.mrb[0].mxu0
    %v856 = vand.u32 %v327, 4294901760
    %v857 = vsub.f32 %v327, %v856
    %v858 = vand.u32 %v857, 4294901760
    %v859 = vsub.f32 %v857, %v858
    %v860 = vand.u32 %v859, 4294901760
    %861 = vmatprep.mubr.f32.mxu0 %v860
    %v862 = vand.u32 %v326, 4294901760
    %v863 = vsub.f32 %v326, %v862
    %v864 = vand.u32 %v863, 4294901760
    %v865 = vsub.f32 %v863, %v864
    %v866 = vand.u32 %v865, 4294901760
    %867 = vmatmul.mubr.f32.gmra.mrb[0].mxu0 %v866
    %v868 = vpop.f32.mrb[0].mxu0
    %v869 = vadd.f32 0.0, %v868
    %v870 = vpop.f32.mrb[0].mxu0
    %v871 = vand.u32 %v329, 4294901760
    %v872 = vsub.f32 %v329, %v871
    %v873 = vand.u32 %v872, 4294901760
    %v874 = vsub.f32 %v872, %v873
    %v875 = vand.u32 %v874, 4294901760
    %876 = vmatprep.mubr.f32.mxu0 %v875
    %v877 = vand.u32 %v328, 4294901760
    %v878 = vsub.f32 %v328, %v877
    %v879 = vand.u32 %v878, 4294901760
    %v880 = vsub.f32 %v878, %v879
    %v881 = vand.u32 %v880, 4294901760
    %882 = vmatmul.mubr.f32.gmra.mrb[0].mxu0 %v881
    %v883 = vpop.f32.mrb[0].mxu0
    %v884 = vadd.f32 0.0, %v883
    %v885 = vpop.f32.mrb[0].mxu0
    %v886 = vand.u32 %v331, 4294901760
    %v887 = vsub.f32 %v331, %v886
    %v888 = vand.u32 %v887, 4294901760
    %v889 = vsub.f32 %v887, %v888
    %v890 = vand.u32 %v889, 4294901760
    %891 = vmatprep.mubr.f32.mxu0 %v890
    %v892 = vand.u32 %v330, 4294901760
    %v893 = vsub.f32 %v330, %v892
    %v894 = vand.u32 %v893, 4294901760
    %v895 = vsub.f32 %v893, %v894
    %v896 = vand.u32 %v895, 4294901760
    %897 = vmatmul.mubr.f32.gmra.mrb[0].mxu0 %v896
    %v898 = vpop.f32.mrb[0].mxu0
    %v899 = vadd.f32 0.0, %v898
    %v900 = vpop.f32.mrb[0].mxu0
    %v901 = vand.u32 %v333, 4294901760
    %v902 = vsub.f32 %v333, %v901
    %v903 = vand.u32 %v902, 4294901760
    %v904 = vsub.f32 %v902, %v903
    %v905 = vand.u32 %v904, 4294901760
    %906 = vmatprep.mubr.f32.mxu0 %v905
    %v907 = vand.u32 %v332, 4294901760
    %v908 = vsub.f32 %v332, %v907
    %v909 = vand.u32 %v908, 4294901760
    %v910 = vsub.f32 %v908, %v909
    %v911 = vand.u32 %v910, 4294901760
    %912 = vmatmul.mubr.f32.gmra.mrb[0].mxu0 %v911
    %v913 = vpop.f32.mrb[0].mxu0
    %v914 = vadd.f32 0.0, %v913
    %v915 = vpop.f32.mrb[0].mxu0
    %v916 = vand.u32 %v335, 4294901760
    %v917 = vsub.f32 %v335, %v916
    %v918 = vand.u32 %v917, 4294901760
    %v919 = vsub.f32 %v917, %v918
    %v920 = vand.u32 %v919, 4294901760
    %921 = vmatprep.mubr.f32.mxu0 %v920
    %v922 = vand.u32 %v334, 4294901760
    %v923 = vsub.f32 %v334, %v922
    %v924 = vand.u32 %v923, 4294901760
    %v925 = vsub.f32 %v923, %v924
    %v926 = vand.u32 %v925, 4294901760
    %927 = vmatmul.mubr.f32.gmra.mrb[0].mxu0 %v926
    %v928 = vpop.f32.mrb[0].mxu0
    %v929 = vadd.f32 0.0, %v928
    %v930 = vpop.f32.mrb[0].mxu0
    %v931 = vand.u32 %v337, 4294901760
    %v932 = vsub.f32 %v337, %v931
    %v933 = vand.u32 %v932, 4294901760
    %v934 = vsub.f32 %v932, %v933
    %v935 = vand.u32 %v934, 4294901760
    %936 = vmatprep.mubr.f32.mxu0 %v935
    %v937 = vand.u32 %v336, 4294901760
    %v938 = vsub.f32 %v336, %v937
    %v939 = vand.u32 %v938, 4294901760
    %v940 = vsub.f32 %v938, %v939
    %v941 = vand.u32 %v940, 4294901760
    %942 = vmatmul.mubr.f32.gmra.mrb[0].mxu0 %v941
    %v943 = vpop.f32.mrb[0].mxu0
    %v944 = vadd.f32 0.0, %v943
    %v945 = vpop.f32.mrb[0].mxu0
    %946 = vdwg.mxu0
    %947 = vmatprep.subr.mxu0 0.0
    %v948 = vand.u32 %v338, 4294901760
    %v949 = vsub.f32 %v338, %v948
    %v950 = vand.u32 %v949, 4294901760
    %v951 = vsub.f32 %v949, %v950
    %v952 = vand.u32 %v951, 4294901760
    %953 = vmatpush1.msra.mxu0 %v952
    %954 = vmatprep.subr.mxu0 0.0
    %v955 = vand.u32 %v339, 4294901760
    %v956 = vsub.f32 %v339, %v955
    %v957 = vand.u32 %v956, 4294901760
    %v958 = vsub.f32 %v956, %v957
    %v959 = vand.u32 %v958, 4294901760
    %960 = vmatpush1.msra.mxu0 %v959
    %961 = vmatprep.subr.mxu0 0.0
    %v962 = vand.u32 %v340, 4294901760
    %v963 = vsub.f32 %v340, %v962
    %v964 = vand.u32 %v963, 4294901760
    %v965 = vsub.f32 %v963, %v964
    %v966 = vand.u32 %v965, 4294901760
    %967 = vmatpush1.msra.mxu0 %v966
    %968 = vmatprep.subr.mxu0 0.0
    %v969 = vand.u32 %v341, 4294901760
    %v970 = vsub.f32 %v341, %v969
    %v971 = vand.u32 %v970, 4294901760
    %v972 = vsub.f32 %v970, %v971
    %v973 = vand.u32 %v972, 4294901760
    %974 = vmatpush1.msra.mxu0 %v973
    %975 = vmatprep.subr.mxu0 0.0
    %v976 = vand.u32 %v342, 4294901760
    %v977 = vsub.f32 %v342, %v976
    %v978 = vand.u32 %v977, 4294901760
    %v979 = vsub.f32 %v977, %v978
    %v980 = vand.u32 %v979, 4294901760
    %981 = vmatpush1.msra.mxu0 %v980
    %982 = vmatprep.subr.mxu0 0.0
    %v983 = vand.u32 %v343, 4294901760
    %v984 = vsub.f32 %v343, %v983
    %v985 = vand.u32 %v984, 4294901760
    %v986 = vsub.f32 %v984, %v985
    %v987 = vand.u32 %v986, 4294901760
    %988 = vmatpush1.msra.mxu0 %v987
    %989 = vmatprep.subr.mxu0 0.0
    %v990 = vand.u32 %v344, 4294901760
    %v991 = vsub.f32 %v344, %v990
    %v992 = vand.u32 %v991, 4294901760
    %v993 = vsub.f32 %v991, %v992
    %v994 = vand.u32 %v993, 4294901760
    %995 = vmatpush1.msra.mxu0 %v994
    %996 = vmatprep.subr.mxu0 0.0
    %v997 = vand.u32 %v345, 4294901760
    %v998 = vsub.f32 %v345, %v997
    %v999 = vand.u32 %v998, 4294901760
    %v1000 = vsub.f32 %v998, %v999
    %v1001 = vand.u32 %v1000, 4294901760
    %1002 = vmatpush1.msra.mxu0 %v1001
    %1003 = vmatprep.subr.mxu0 0.0
    %v1004 = vand.u32 %v346, 4294901760
    %v1005 = vsub.f32 %v346, %v1004
    %v1006 = vand.u32 %v1005, 4294901760
    %v1007 = vsub.f32 %v1005, %v1006
    %v1008 = vand.u32 %v1007, 4294901760
    %1009 = vmatpush1.msra.mxu0 %v1008
    %1010 = vmatprep.subr.mxu0 0.0
    %v1011 = vand.u32 %v347, 4294901760
    %v1012 = vsub.f32 %v347, %v1011
    %v1013 = vand.u32 %v1012, 4294901760
    %v1014 = vsub.f32 %v1012, %v1013
    %v1015 = vand.u32 %v1014, 4294901760
    %1016 = vmatpush1.msra.mxu0 %v1015
    %1017 = vmatprep.subr.mxu0 0.0
    %v1018 = vand.u32 %v348, 4294901760
    %v1019 = vsub.f32 %v348, %v1018
    %v1020 = vand.u32 %v1019, 4294901760
    %v1021 = vsub.f32 %v1019, %v1020
    %v1022 = vand.u32 %v1021, 4294901760
    %1023 = vmatpush1.msra.mxu0 %v1022
    %1024 = vmatprep.subr.mxu0 0.0
    %v1025 = vand.u32 %v349, 4294901760
    %v1026 = vsub.f32 %v349, %v1025
    %v1027 = vand.u32 %v1026, 4294901760
    %v1028 = vsub.f32 %v1026, %v1027
    %v1029 = vand.u32 %v1028, 4294901760
    %1030 = vmatpush1.msra.mxu0 %v1029
    %1031 = vmatprep.subr.mxu0 0.0
    %v1032 = vand.u32 %v350, 4294901760
    %v1033 = vsub.f32 %v350, %v1032
    %v1034 = vand.u32 %v1033, 4294901760
    %v1035 = vsub.f32 %v1033, %v1034
    %v1036 = vand.u32 %v1035, 4294901760
    %1037 = vmatpush1.msra.mxu0 %v1036
    %1038 = vmatprep.subr.mxu0 0.0
    %v1039 = vand.u32 %v351, 4294901760
    %v1040 = vsub.f32 %v351, %v1039
    %v1041 = vand.u32 %v1040, 4294901760
    %v1042 = vsub.f32 %v1040, %v1041
    %v1043 = vand.u32 %v1042, 4294901760
    %1044 = vmatpush1.msra.mxu0 %v1043
    %1045 = vmatprep.subr.mxu0 0.0
    %v1046 = vand.u32 %v352, 4294901760
    %v1047 = vsub.f32 %v352, %v1046
    %v1048 = vand.u32 %v1047, 4294901760
    %v1049 = vsub.f32 %v1047, %v1048
    %v1050 = vand.u32 %v1049, 4294901760
    %1051 = vmatpush1.msra.mxu0 %v1050
    %1052 = vmatprep.subr.mxu0 0.0
    %v1053 = vand.u32 %v353, 4294901760
    %v1054 = vsub.f32 %v353, %v1053
    %v1055 = vand.u32 %v1054, 4294901760
    %v1056 = vsub.f32 %v1054, %v1055
    %v1057 = vand.u32 %v1056, 4294901760
    %1058 = vmatpush1.msra.mxu0 %v1057
    %1059 = vmatprep.subr.mxu0 0.0
    %v1060 = vand.u32 %v354, 4294901760
    %v1061 = vsub.f32 %v354, %v1060
    %v1062 = vand.u32 %v1061, 4294901760
    %v1063 = vsub.f32 %v1061, %v1062
    %v1064 = vand.u32 %v1063, 4294901760
    %1065 = vmatpush1.msra.mxu0 %v1064
    %1066 = vmatprep.subr.mxu0 0.0
    %v1067 = vand.u32 %v355, 4294901760
    %v1068 = vsub.f32 %v355, %v1067
    %v1069 = vand.u32 %v1068, 4294901760
    %v1070 = vsub.f32 %v1068, %v1069
    %v1071 = vand.u32 %v1070, 4294901760
    %1072 = vmatpush1.msra.mxu0 %v1071
    %1073 = vmatprep.subr.mxu0 0.0
    %v1074 = vand.u32 %v356, 4294901760
    %v1075 = vsub.f32 %v356, %v1074
    %v1076 = vand.u32 %v1075, 4294901760
    %v1077 = vsub.f32 %v1075, %v1076
    %v1078 = vand.u32 %v1077, 4294901760
    %1079 = vmatpush1.msra.mxu0 %v1078
    %1080 = vmatprep.subr.mxu0 0.0
    %v1081 = vand.u32 %v357, 4294901760
    %v1082 = vsub.f32 %v357, %v1081
    %v1083 = vand.u32 %v1082, 4294901760
    %v1084 = vsub.f32 %v1082, %v1083
    %v1085 = vand.u32 %v1084, 4294901760
    %1086 = vmatpush1.msra.mxu0 %v1085
    %1087 = vmatprep.subr.mxu0 0.0
    %v1088 = vand.u32 %v358, 4294901760
    %v1089 = vsub.f32 %v358, %v1088
    %v1090 = vand.u32 %v1089, 4294901760
    %v1091 = vsub.f32 %v1089, %v1090
    %v1092 = vand.u32 %v1091, 4294901760
    %1093 = vmatpush1.msra.mxu0 %v1092
    %1094 = vmatprep.subr.mxu0 0.0
    %v1095 = vand.u32 %v359, 4294901760
    %v1096 = vsub.f32 %v359, %v1095
    %v1097 = vand.u32 %v1096, 4294901760
    %v1098 = vsub.f32 %v1096, %v1097
    %v1099 = vand.u32 %v1098, 4294901760
    %1100 = vmatpush1.msra.mxu0 %v1099
    %1101 = vmatprep.subr.mxu0 0.0
    %v1102 = vand.u32 %v360, 4294901760
    %v1103 = vsub.f32 %v360, %v1102
    %v1104 = vand.u32 %v1103, 4294901760
    %v1105 = vsub.f32 %v1103, %v1104
    %v1106 = vand.u32 %v1105, 4294901760
    %1107 = vmatpush1.msra.mxu0 %v1106
    %1108 = vmatprep.subr.mxu0 0.0
    %v1109 = vand.u32 %v361, 4294901760
    %v1110 = vsub.f32 %v361, %v1109
    %v1111 = vand.u32 %v1110, 4294901760
    %v1112 = vsub.f32 %v1110, %v1111
    %v1113 = vand.u32 %v1112, 4294901760
    %1114 = vmatpush1.msra.mxu0 %v1113
    %1115 = vmatprep.subr.mxu0 0.0
    %v1116 = vand.u32 %v362, 4294901760
    %v1117 = vsub.f32 %v362, %v1116
    %v1118 = vand.u32 %v1117, 4294901760
    %v1119 = vsub.f32 %v1117, %v1118
    %v1120 = vand.u32 %v1119, 4294901760
    %1121 = vmatpush1.msra.mxu0 %v1120
    %1122 = vmatprep.subr.mxu0 0.0
    %v1123 = vand.u32 %v363, 4294901760
    %v1124 = vsub.f32 %v363, %v1123
    %v1125 = vand.u32 %v1124, 4294901760
    %v1126 = vsub.f32 %v1124, %v1125
    %v1127 = vand.u32 %v1126, 4294901760
    %1128 = vmatpush1.msra.mxu0 %v1127
    %1129 = vmatprep.subr.mxu0 0.0
    %v1130 = vand.u32 %v364, 4294901760
    %v1131 = vsub.f32 %v364, %v1130
    %v1132 = vand.u32 %v1131, 4294901760
    %v1133 = vsub.f32 %v1131, %v1132
    %v1134 = vand.u32 %v1133, 4294901760
    %1135 = vmatpush1.msra.mxu0 %v1134
    %1136 = vmatprep.subr.mxu0 0.0
    %v1137 = vand.u32 %v365, 4294901760
    %v1138 = vsub.f32 %v365, %v1137
    %v1139 = vand.u32 %v1138, 4294901760
    %v1140 = vsub.f32 %v1138, %v1139
    %v1141 = vand.u32 %v1140, 4294901760
    %1142 = vmatpush1.msra.mxu0 %v1141
    %1143 = vmatprep.subr.mxu0 0.0
    %v1144 = vand.u32 %v366, 4294901760
    %v1145 = vsub.f32 %v366, %v1144
    %v1146 = vand.u32 %v1145, 4294901760
    %v1147 = vsub.f32 %v1145, %v1146
    %v1148 = vand.u32 %v1147, 4294901760
    %1149 = vmatpush1.msra.mxu0 %v1148
    %1150 = vmatprep.subr.mxu0 0.0
    %v1151 = vand.u32 %v367, 4294901760
    %v1152 = vsub.f32 %v367, %v1151
    %v1153 = vand.u32 %v1152, 4294901760
    %v1154 = vsub.f32 %v1152, %v1153
    %v1155 = vand.u32 %v1154, 4294901760
    %1156 = vmatpush1.msra.mxu0 %v1155
    %1157 = vmatprep.subr.mxu0 0.0
    %v1158 = vand.u32 %v368, 4294901760
    %v1159 = vsub.f32 %v368, %v1158
    %v1160 = vand.u32 %v1159, 4294901760
    %v1161 = vsub.f32 %v1159, %v1160
    %v1162 = vand.u32 %v1161, 4294901760
    %1163 = vmatpush1.msra.mxu0 %v1162
    %1164 = vmatprep.subr.mxu0 0.0
    %v1165 = vand.u32 %v369, 4294901760
    %v1166 = vsub.f32 %v369, %v1165
    %v1167 = vand.u32 %v1166, 4294901760
    %v1168 = vsub.f32 %v1166, %v1167
    %v1169 = vand.u32 %v1168, 4294901760
    %1170 = vmatpush1.msra.mxu0 %v1169
    %v1171 = vand.u32 %v275, 4294901760
    %1172 = vmatprep.mubr.f32.mxu0 %v1171
    %v1173 = vand.u32 %v274, 4294901760
    %1174 = vmatmul.mubr.f32.gmra.mrb[0].mxu0 %v1173
    %v1175 = vpop.f32.mrb[0].mxu0
    %v1176 = vadd.f32 %v479, %v1175
    %v1177 = vpop.f32.mrb[0].mxu0
    %v1178 = vand.u32 %v277, 4294901760
    %1179 = vmatprep.mubr.f32.mxu0 %v1178
    %v1180 = vand.u32 %v276, 4294901760
    %1181 = vmatmul.mubr.f32.gmra.mrb[0].mxu0 %v1180
    %v1182 = vpop.f32.mrb[0].mxu0
    %v1183 = vadd.f32 %v494, %v1182
    %v1184 = vpop.f32.mrb[0].mxu0
    %v1185 = vand.u32 %v279, 4294901760
    %1186 = vmatprep.mubr.f32.mxu0 %v1185
    %v1187 = vand.u32 %v278, 4294901760
    %1188 = vmatmul.mubr.f32.gmra.mrb[0].mxu0 %v1187
    %v1189 = vpop.f32.mrb[0].mxu0
    %v1190 = vadd.f32 %v509, %v1189
    %v1191 = vpop.f32.mrb[0].mxu0
    %v1192 = vand.u32 %v281, 4294901760
    %1193 = vmatprep.mubr.f32.mxu0 %v1192
    %v1194 = vand.u32 %v280, 4294901760
    %1195 = vmatmul.mubr.f32.gmra.mrb[0].mxu0 %v1194
    %v1196 = vpop.f32.mrb[0].mxu0
    %v1197 = vadd.f32 %v524, %v1196
    %v1198 = vpop.f32.mrb[0].mxu0
    %v1199 = vand.u32 %v283, 4294901760
    %1200 = vmatprep.mubr.f32.mxu0 %v1199
    %v1201 = vand.u32 %v282, 4294901760
    %1202 = vmatmul.mubr.f32.gmra.mrb[0].mxu0 %v1201
    %v1203 = vpop.f32.mrb[0].mxu0
    %v1204 = vadd.f32 %v539, %v1203
    %v1205 = vpop.f32.mrb[0].mxu0
    %v1206 = vand.u32 %v285, 4294901760
    %1207 = vmatprep.mubr.f32.mxu0 %v1206
    %v1208 = vand.u32 %v284, 4294901760
    %1209 = vmatmul.mubr.f32.gmra.mrb[0].mxu0 %v1208
    %v1210 = vpop.f32.mrb[0].mxu0
    %v1211 = vadd.f32 %v554, %v1210
    %v1212 = vpop.f32.mrb[0].mxu0
    %v1213 = vand.u32 %v287, 4294901760
    %1214 = vmatprep.mubr.f32.mxu0 %v1213
    %v1215 = vand.u32 %v286, 4294901760
    %1216 = vmatmul.mubr.f32.gmra.mrb[0].mxu0 %v1215
    %v1217 = vpop.f32.mrb[0].mxu0
    %v1218 = vadd.f32 %v569, %v1217
    %v1219 = vpop.f32.mrb[0].mxu0
    %v1220 = vand.u32 %v289, 4294901760
    %1221 = vmatprep.mubr.f32.mxu0 %v1220
    %v1222 = vand.u32 %v288, 4294901760
    %1223 = vmatmul.mubr.f32.gmra.mrb[0].mxu0 %v1222
    %v1224 = vpop.f32.mrb[0].mxu0
    %v1225 = vadd.f32 %v584, %v1224
    %v1226 = vpop.f32.mrb[0].mxu0
    %v1227 = vand.u32 %v291, 4294901760
    %1228 = vmatprep.mubr.f32.mxu0 %v1227
    %v1229 = vand.u32 %v290, 4294901760
    %1230 = vmatmul.mubr.f32.gmra.mrb[0].mxu0 %v1229
    %v1231 = vpop.f32.mrb[0].mxu0
    %v1232 = vadd.f32 %v599, %v1231
    %v1233 = vpop.f32.mrb[0].mxu0
    %v1234 = vand.u32 %v293, 4294901760
    %1235 = vmatprep.mubr.f32.mxu0 %v1234
    %v1236 = vand.u32 %v292, 4294901760
    %1237 = vmatmul.mubr.f32.gmra.mrb[0].mxu0 %v1236
    %v1238 = vpop.f32.mrb[0].mxu0
    %v1239 = vadd.f32 %v614, %v1238
    %v1240 = vpop.f32.mrb[0].mxu0
    %v1241 = vand.u32 %v295, 4294901760
    %1242 = vmatprep.mubr.f32.mxu0 %v1241
    %v1243 = vand.u32 %v294, 4294901760
    %1244 = vmatmul.mubr.f32.gmra.mrb[0].mxu0 %v1243
    %v1245 = vpop.f32.mrb[0].mxu0
    %v1246 = vadd.f32 %v629, %v1245
    %v1247 = vpop.f32.mrb[0].mxu0
    %v1248 = vand.u32 %v297, 4294901760
    %1249 = vmatprep.mubr.f32.mxu0 %v1248
    %v1250 = vand.u32 %v296, 4294901760
    %1251 = vmatmul.mubr.f32.gmra.mrb[0].mxu0 %v1250
    %v1252 = vpop.f32.mrb[0].mxu0
    %v1253 = vadd.f32 %v644, %v1252
    %v1254 = vpop.f32.mrb[0].mxu0
    %v1255 = vand.u32 %v299, 4294901760
    %1256 = vmatprep.mubr.f32.mxu0 %v1255
    %v1257 = vand.u32 %v298, 4294901760
    %1258 = vmatmul.mubr.f32.gmra.mrb[0].mxu0 %v1257
    %v1259 = vpop.f32.mrb[0].mxu0
    %v1260 = vadd.f32 %v659, %v1259
    %v1261 = vpop.f32.mrb[0].mxu0
    %v1262 = vand.u32 %v301, 4294901760
    %1263 = vmatprep.mubr.f32.mxu0 %v1262
    %v1264 = vand.u32 %v300, 4294901760
    %1265 = vmatmul.mubr.f32.gmra.mrb[0].mxu0 %v1264
    %v1266 = vpop.f32.mrb[0].mxu0
    %v1267 = vadd.f32 %v674, %v1266
    %v1268 = vpop.f32.mrb[0].mxu0
    %v1269 = vand.u32 %v303, 4294901760
    %1270 = vmatprep.mubr.f32.mxu0 %v1269
    %v1271 = vand.u32 %v302, 4294901760
    %1272 = vmatmul.mubr.f32.gmra.mrb[0].mxu0 %v1271
    %v1273 = vpop.f32.mrb[0].mxu0
    %v1274 = vadd.f32 %v689, %v1273
    %v1275 = vpop.f32.mrb[0].mxu0
    %v1276 = vand.u32 %v305, 4294901760
    %1277 = vmatprep.mubr.f32.mxu0 %v1276
    %v1278 = vand.u32 %v304, 4294901760
    %1279 = vmatmul.mubr.f32.gmra.mrb[0].mxu0 %v1278
    %v1280 = vpop.f32.mrb[0].mxu0
    %v1281 = vadd.f32 %v704, %v1280
    %v1282 = vpop.f32.mrb[0].mxu0
    %v1283 = vand.u32 %v307, 4294901760
    %1284 = vmatprep.mubr.f32.mxu0 %v1283
    %v1285 = vand.u32 %v306, 4294901760
    %1286 = vmatmul.mubr.f32.gmra.mrb[0].mxu0 %v1285
    %v1287 = vpop.f32.mrb[0].mxu0
    %v1288 = vadd.f32 %v719, %v1287
    %v1289 = vpop.f32.mrb[0].mxu0
    %v1290 = vand.u32 %v309, 4294901760
    %1291 = vmatprep.mubr.f32.mxu0 %v1290
    %v1292 = vand.u32 %v308, 4294901760
    %1293 = vmatmul.mubr.f32.gmra.mrb[0].mxu0 %v1292
    %v1294 = vpop.f32.mrb[0].mxu0
    %v1295 = vadd.f32 %v734, %v1294
    %v1296 = vpop.f32.mrb[0].mxu0
    %v1297 = vand.u32 %v311, 4294901760
    %1298 = vmatprep.mubr.f32.mxu0 %v1297
    %v1299 = vand.u32 %v310, 4294901760
    %1300 = vmatmul.mubr.f32.gmra.mrb[0].mxu0 %v1299
    %v1301 = vpop.f32.mrb[0].mxu0
    %v1302 = vadd.f32 %v749, %v1301
    %v1303 = vpop.f32.mrb[0].mxu0
    %v1304 = vand.u32 %v313, 4294901760
    %1305 = vmatprep.mubr.f32.mxu0 %v1304
    %v1306 = vand.u32 %v312, 4294901760
    %1307 = vmatmul.mubr.f32.gmra.mrb[0].mxu0 %v1306
    %v1308 = vpop.f32.mrb[0].mxu0
    %v1309 = vadd.f32 %v764, %v1308
    %v1310 = vpop.f32.mrb[0].mxu0
    %v1311 = vand.u32 %v315, 4294901760
    %1312 = vmatprep.mubr.f32.mxu0 %v1311
    %v1313 = vand.u32 %v314, 4294901760
    %1314 = vmatmul.mubr.f32.gmra.mrb[0].mxu0 %v1313
    %v1315 = vpop.f32.mrb[0].mxu0
    %v1316 = vadd.f32 %v779, %v1315
    %v1317 = vpop.f32.mrb[0].mxu0
    %v1318 = vand.u32 %v317, 4294901760
    %1319 = vmatprep.mubr.f32.mxu0 %v1318
    %v1320 = vand.u32 %v316, 4294901760
    %1321 = vmatmul.mubr.f32.gmra.mrb[0].mxu0 %v1320
    %v1322 = vpop.f32.mrb[0].mxu0
    %v1323 = vadd.f32 %v794, %v1322
    %v1324 = vpop.f32.mrb[0].mxu0
    %v1325 = vand.u32 %v319, 4294901760
    %1326 = vmatprep.mubr.f32.mxu0 %v1325
    %v1327 = vand.u32 %v318, 4294901760
    %1328 = vmatmul.mubr.f32.gmra.mrb[0].mxu0 %v1327
    %v1329 = vpop.f32.mrb[0].mxu0
    %v1330 = vadd.f32 %v809, %v1329
    %v1331 = vpop.f32.mrb[0].mxu0
    %v1332 = vand.u32 %v321, 4294901760
    %1333 = vmatprep.mubr.f32.mxu0 %v1332
    %v1334 = vand.u32 %v320, 4294901760
    %1335 = vmatmul.mubr.f32.gmra.mrb[0].mxu0 %v1334
    %v1336 = vpop.f32.mrb[0].mxu0
    %v1337 = vadd.f32 %v824, %v1336
    %v1338 = vpop.f32.mrb[0].mxu0
    %v1339 = vand.u32 %v323, 4294901760
    %1340 = vmatprep.mubr.f32.mxu0 %v1339
    %v1341 = vand.u32 %v322, 4294901760
    %1342 = vmatmul.mubr.f32.gmra.mrb[0].mxu0 %v1341
    %v1343 = vpop.f32.mrb[0].mxu0
    %v1344 = vadd.f32 %v839, %v1343
    %v1345 = vpop.f32.mrb[0].mxu0
    %v1346 = vand.u32 %v325, 4294901760
    %1347 = vmatprep.mubr.f32.mxu0 %v1346
    %v1348 = vand.u32 %v324, 4294901760
    %1349 = vmatmul.mubr.f32.gmra.mrb[0].mxu0 %v1348
    %v1350 = vpop.f32.mrb[0].mxu0
    %v1351 = vadd.f32 %v854, %v1350
    %v1352 = vpop.f32.mrb[0].mxu0
    %v1353 = vand.u32 %v327, 4294901760
    %1354 = vmatprep.mubr.f32.mxu0 %v1353
    %v1355 = vand.u32 %v326, 4294901760
    %1356 = vmatmul.mubr.f32.gmra.mrb[0].mxu0 %v1355
    %v1357 = vpop.f32.mrb[0].mxu0
    %v1358 = vadd.f32 %v869, %v1357
    %v1359 = vpop.f32.mrb[0].mxu0
    %v1360 = vand.u32 %v329, 4294901760
    %1361 = vmatprep.mubr.f32.mxu0 %v1360
    %v1362 = vand.u32 %v328, 4294901760
    %1363 = vmatmul.mubr.f32.gmra.mrb[0].mxu0 %v1362
    %v1364 = vpop.f32.mrb[0].mxu0
    %v1365 = vadd.f32 %v884, %v1364
    %v1366 = vpop.f32.mrb[0].mxu0
    %v1367 = vand.u32 %v331, 4294901760
    %1368 = vmatprep.mubr.f32.mxu0 %v1367
    %v1369 = vand.u32 %v330, 4294901760
    %1370 = vmatmul.mubr.f32.gmra.mrb[0].mxu0 %v1369
    %v1371 = vpop.f32.mrb[0].mxu0
    %v1372 = vadd.f32 %v899, %v1371
    %v1373 = vpop.f32.mrb[0].mxu0
    %v1374 = vand.u32 %v333, 4294901760
    %1375 = vmatprep.mubr.f32.mxu0 %v1374
    %v1376 = vand.u32 %v332, 4294901760
    %1377 = vmatmul.mubr.f32.gmra.mrb[0].mxu0 %v1376
    %v1378 = vpop.f32.mrb[0].mxu0
    %v1379 = vadd.f32 %v914, %v1378
    %v1380 = vpop.f32.mrb[0].mxu0
    %v1381 = vand.u32 %v335, 4294901760
    %1382 = vmatprep.mubr.f32.mxu0 %v1381
    %v1383 = vand.u32 %v334, 4294901760
    %1384 = vmatmul.mubr.f32.gmra.mrb[0].mxu0 %v1383
    %v1385 = vpop.f32.mrb[0].mxu0
    %v1386 = vadd.f32 %v929, %v1385
    %v1387 = vpop.f32.mrb[0].mxu0
    %v1388 = vand.u32 %v337, 4294901760
    %1389 = vmatprep.mubr.f32.mxu0 %v1388
    %v1390 = vand.u32 %v336, 4294901760
    %1391 = vmatmul.mubr.f32.gmra.mrb[0].mxu0 %v1390
    %v1392 = vpop.f32.mrb[0].mxu0
    %v1393 = vadd.f32 %v944, %v1392
    %v1394 = vpop.f32.mrb[0].mxu0
    %1395 = vdwg.mxu0
    %1396 = vmatprep.subr.mxu0 0.0
    %v1397 = vand.u32 %v338, 4294901760
    %v1398 = vsub.f32 %v338, %v1397
    %1399 = vmatpush1.msra.mxu0 %v1398
    %1400 = vmatprep.subr.mxu0 0.0
    %v1401 = vand.u32 %v339, 4294901760
    %v1402 = vsub.f32 %v339, %v1401
    %1403 = vmatpush1.msra.mxu0 %v1402
    %1404 = vmatprep.subr.mxu0 0.0
    %v1405 = vand.u32 %v340, 4294901760
    %v1406 = vsub.f32 %v340, %v1405
    %1407 = vmatpush1.msra.mxu0 %v1406
    %1408 = vmatprep.subr.mxu0 0.0
    %v1409 = vand.u32 %v341, 4294901760
    %v1410 = vsub.f32 %v341, %v1409
    %1411 = vmatpush1.msra.mxu0 %v1410
    %1412 = vmatprep.subr.mxu0 0.0
    %v1413 = vand.u32 %v342, 4294901760
    %v1414 = vsub.f32 %v342, %v1413
    %1415 = vmatpush1.msra.mxu0 %v1414
    %1416 = vmatprep.subr.mxu0 0.0
    %v1417 = vand.u32 %v343, 4294901760
    %v1418 = vsub.f32 %v343, %v1417
    %1419 = vmatpush1.msra.mxu0 %v1418
    %1420 = vmatprep.subr.mxu0 0.0
    %v1421 = vand.u32 %v344, 4294901760
    %v1422 = vsub.f32 %v344, %v1421
    %1423 = vmatpush1.msra.mxu0 %v1422
    %1424 = vmatprep.subr.mxu0 0.0
    %v1425 = vand.u32 %v345, 4294901760
    %v1426 = vsub.f32 %v345, %v1425
    %1427 = vmatpush1.msra.mxu0 %v1426
    %1428 = vmatprep.subr.mxu0 0.0
    %v1429 = vand.u32 %v346, 4294901760
    %v1430 = vsub.f32 %v346, %v1429
    %1431 = vmatpush1.msra.mxu0 %v1430
    %1432 = vmatprep.subr.mxu0 0.0
    %v1433 = vand.u32 %v347, 4294901760
    %v1434 = vsub.f32 %v347, %v1433
    %1435 = vmatpush1.msra.mxu0 %v1434
    %1436 = vmatprep.subr.mxu0 0.0
    %v1437 = vand.u32 %v348, 4294901760
    %v1438 = vsub.f32 %v348, %v1437
    %1439 = vmatpush1.msra.mxu0 %v1438
    %1440 = vmatprep.subr.mxu0 0.0
    %v1441 = vand.u32 %v349, 4294901760
    %v1442 = vsub.f32 %v349, %v1441
    %1443 = vmatpush1.msra.mxu0 %v1442
    %1444 = vmatprep.subr.mxu0 0.0
    %v1445 = vand.u32 %v350, 4294901760
    %v1446 = vsub.f32 %v350, %v1445
    %1447 = vmatpush1.msra.mxu0 %v1446
    %1448 = vmatprep.subr.mxu0 0.0
    %v1449 = vand.u32 %v351, 4294901760
    %v1450 = vsub.f32 %v351, %v1449
    %1451 = vmatpush1.msra.mxu0 %v1450
    %1452 = vmatprep.subr.mxu0 0.0
    %v1453 = vand.u32 %v352, 4294901760
    %v1454 = vsub.f32 %v352, %v1453
    %1455 = vmatpush1.msra.mxu0 %v1454
    %1456 = vmatprep.subr.mxu0 0.0
    %v1457 = vand.u32 %v353, 4294901760
    %v1458 = vsub.f32 %v353, %v1457
    %1459 = vmatpush1.msra.mxu0 %v1458
    %1460 = vmatprep.subr.mxu0 0.0
    %v1461 = vand.u32 %v354, 4294901760
    %v1462 = vsub.f32 %v354, %v1461
    %1463 = vmatpush1.msra.mxu0 %v1462
    %1464 = vmatprep.subr.mxu0 0.0
    %v1465 = vand.u32 %v355, 4294901760
    %v1466 = vsub.f32 %v355, %v1465
    %1467 = vmatpush1.msra.mxu0 %v1466
    %1468 = vmatprep.subr.mxu0 0.0
    %v1469 = vand.u32 %v356, 4294901760
    %v1470 = vsub.f32 %v356, %v1469
    %1471 = vmatpush1.msra.mxu0 %v1470
    %1472 = vmatprep.subr.mxu0 0.0
    %v1473 = vand.u32 %v357, 4294901760
    %v1474 = vsub.f32 %v357, %v1473
    %1475 = vmatpush1.msra.mxu0 %v1474
    %1476 = vmatprep.subr.mxu0 0.0
    %v1477 = vand.u32 %v358, 4294901760
    %v1478 = vsub.f32 %v358, %v1477
    %1479 = vmatpush1.msra.mxu0 %v1478
    %1480 = vmatprep.subr.mxu0 0.0
    %v1481 = vand.u32 %v359, 4294901760
    %v1482 = vsub.f32 %v359, %v1481
    %1483 = vmatpush1.msra.mxu0 %v1482
    %1484 = vmatprep.subr.mxu0 0.0
    %v1485 = vand.u32 %v360, 4294901760
    %v1486 = vsub.f32 %v360, %v1485
    %1487 = vmatpush1.msra.mxu0 %v1486
    %1488 = vmatprep.subr.mxu0 0.0
    %v1489 = vand.u32 %v361, 4294901760
    %v1490 = vsub.f32 %v361, %v1489
    %1491 = vmatpush1.msra.mxu0 %v1490
    %1492 = vmatprep.subr.mxu0 0.0
    %v1493 = vand.u32 %v362, 4294901760
    %v1494 = vsub.f32 %v362, %v1493
    %1495 = vmatpush1.msra.mxu0 %v1494
    %1496 = vmatprep.subr.mxu0 0.0
    %v1497 = vand.u32 %v363, 4294901760
    %v1498 = vsub.f32 %v363, %v1497
    %1499 = vmatpush1.msra.mxu0 %v1498
    %1500 = vmatprep.subr.mxu0 0.0
    %v1501 = vand.u32 %v364, 4294901760
    %v1502 = vsub.f32 %v364, %v1501
    %1503 = vmatpush1.msra.mxu0 %v1502
    %1504 = vmatprep.subr.mxu0 0.0
    %v1505 = vand.u32 %v365, 4294901760
    %v1506 = vsub.f32 %v365, %v1505
    %1507 = vmatpush1.msra.mxu0 %v1506
    %1508 = vmatprep.subr.mxu0 0.0
    %v1509 = vand.u32 %v366, 4294901760
    %v1510 = vsub.f32 %v366, %v1509
    %1511 = vmatpush1.msra.mxu0 %v1510
    %1512 = vmatprep.subr.mxu0 0.0
    %v1513 = vand.u32 %v367, 4294901760
    %v1514 = vsub.f32 %v367, %v1513
    %1515 = vmatpush1.msra.mxu0 %v1514
    %1516 = vmatprep.subr.mxu0 0.0
    %v1517 = vand.u32 %v368, 4294901760
    %v1518 = vsub.f32 %v368, %v1517
    %1519 = vmatpush1.msra.mxu0 %v1518
    %1520 = vmatprep.subr.mxu0 0.0
    %v1521 = vand.u32 %v369, 4294901760
    %v1522 = vsub.f32 %v369, %v1521
    %1523 = vmatpush1.msra.mxu0 %v1522
    %v1524 = vand.u32 %v275, 4294901760
    %v1525 = vsub.f32 %v275, %v1524
    %1526 = vmatprep.mubr.f32.mxu0 %v1525
    %v1527 = vand.u32 %v274, 4294901760
    %v1528 = vsub.f32 %v274, %v1527
    %1529 = vmatmul.mubr.f32.gmra.mrb[0].mxu0 %v1528
    %v1530 = vpop.f32.mrb[0].mxu0
    %v1531 = vadd.f32 %v1176, %v1530
    %v1532 = vpop.f32.mrb[0].mxu0
    %v1533 = vand.u32 %v277, 4294901760
    %v1534 = vsub.f32 %v277, %v1533
    %1535 = vmatprep.mubr.f32.mxu0 %v1534
    %v1536 = vand.u32 %v276, 4294901760
    %v1537 = vsub.f32 %v276, %v1536
    %1538 = vmatmul.mubr.f32.gmra.mrb[0].mxu0 %v1537
    %v1539 = vpop.f32.mrb[0].mxu0
    %v1540 = vadd.f32 %v1183, %v1539
    %v1541 = vpop.f32.mrb[0].mxu0
    %v1542 = vand.u32 %v279, 4294901760
    %v1543 = vsub.f32 %v279, %v1542
    %1544 = vmatprep.mubr.f32.mxu0 %v1543
    %v1545 = vand.u32 %v278, 4294901760
    %v1546 = vsub.f32 %v278, %v1545
    %1547 = vmatmul.mubr.f32.gmra.mrb[0].mxu0 %v1546
    %v1548 = vpop.f32.mrb[0].mxu0
    %v1549 = vadd.f32 %v1190, %v1548
    %v1550 = vpop.f32.mrb[0].mxu0
    %v1551 = vand.u32 %v281, 4294901760
    %v1552 = vsub.f32 %v281, %v1551
    %1553 = vmatprep.mubr.f32.mxu0 %v1552
    %v1554 = vand.u32 %v280, 4294901760
    %v1555 = vsub.f32 %v280, %v1554
    %1556 = vmatmul.mubr.f32.gmra.mrb[0].mxu0 %v1555
    %v1557 = vpop.f32.mrb[0].mxu0
    %v1558 = vadd.f32 %v1197, %v1557
    %v1559 = vpop.f32.mrb[0].mxu0
    %v1560 = vand.u32 %v283, 4294901760
    %v1561 = vsub.f32 %v283, %v1560
    %1562 = vmatprep.mubr.f32.mxu0 %v1561
    %v1563 = vand.u32 %v282, 4294901760
    %v1564 = vsub.f32 %v282, %v1563
    %1565 = vmatmul.mubr.f32.gmra.mrb[0].mxu0 %v1564
    %v1566 = vpop.f32.mrb[0].mxu0
    %v1567 = vadd.f32 %v1204, %v1566
    %v1568 = vpop.f32.mrb[0].mxu0
    %v1569 = vand.u32 %v285, 4294901760
    %v1570 = vsub.f32 %v285, %v1569
    %1571 = vmatprep.mubr.f32.mxu0 %v1570
    %v1572 = vand.u32 %v284, 4294901760
    %v1573 = vsub.f32 %v284, %v1572
    %1574 = vmatmul.mubr.f32.gmra.mrb[0].mxu0 %v1573
    %v1575 = vpop.f32.mrb[0].mxu0
    %v1576 = vadd.f32 %v1211, %v1575
    %v1577 = vpop.f32.mrb[0].mxu0
    %v1578 = vand.u32 %v287, 4294901760
    %v1579 = vsub.f32 %v287, %v1578
    %1580 = vmatprep.mubr.f32.mxu0 %v1579
    %v1581 = vand.u32 %v286, 4294901760
    %v1582 = vsub.f32 %v286, %v1581
    %1583 = vmatmul.mubr.f32.gmra.mrb[0].mxu0 %v1582
    %v1584 = vpop.f32.mrb[0].mxu0
    %v1585 = vadd.f32 %v1218, %v1584
    %v1586 = vpop.f32.mrb[0].mxu0
    %v1587 = vand.u32 %v289, 4294901760
    %v1588 = vsub.f32 %v289, %v1587
    %1589 = vmatprep.mubr.f32.mxu0 %v1588
    %v1590 = vand.u32 %v288, 4294901760
    %v1591 = vsub.f32 %v288, %v1590
    %1592 = vmatmul.mubr.f32.gmra.mrb[0].mxu0 %v1591
    %v1593 = vpop.f32.mrb[0].mxu0
    %v1594 = vadd.f32 %v1225, %v1593
    %v1595 = vpop.f32.mrb[0].mxu0
    %v1596 = vand.u32 %v291, 4294901760
    %v1597 = vsub.f32 %v291, %v1596
    %1598 = vmatprep.mubr.f32.mxu0 %v1597
    %v1599 = vand.u32 %v290, 4294901760
    %v1600 = vsub.f32 %v290, %v1599
    %1601 = vmatmul.mubr.f32.gmra.mrb[0].mxu0 %v1600
    %v1602 = vpop.f32.mrb[0].mxu0
    %v1603 = vadd.f32 %v1232, %v1602
    %v1604 = vpop.f32.mrb[0].mxu0
    %v1605 = vand.u32 %v293, 4294901760
    %v1606 = vsub.f32 %v293, %v1605
    %1607 = vmatprep.mubr.f32.mxu0 %v1606
    %v1608 = vand.u32 %v292, 4294901760
    %v1609 = vsub.f32 %v292, %v1608
    %1610 = vmatmul.mubr.f32.gmra.mrb[0].mxu0 %v1609
    %v1611 = vpop.f32.mrb[0].mxu0
    %v1612 = vadd.f32 %v1239, %v1611
    %v1613 = vpop.f32.mrb[0].mxu0
    %v1614 = vand.u32 %v295, 4294901760
    %v1615 = vsub.f32 %v295, %v1614
    %1616 = vmatprep.mubr.f32.mxu0 %v1615
    %v1617 = vand.u32 %v294, 4294901760
    %v1618 = vsub.f32 %v294, %v1617
    %1619 = vmatmul.mubr.f32.gmra.mrb[0].mxu0 %v1618
    %v1620 = vpop.f32.mrb[0].mxu0
    %v1621 = vadd.f32 %v1246, %v1620
    %v1622 = vpop.f32.mrb[0].mxu0
    %v1623 = vand.u32 %v297, 4294901760
    %v1624 = vsub.f32 %v297, %v1623
    %1625 = vmatprep.mubr.f32.mxu0 %v1624
    %v1626 = vand.u32 %v296, 4294901760
    %v1627 = vsub.f32 %v296, %v1626
    %1628 = vmatmul.mubr.f32.gmra.mrb[0].mxu0 %v1627
    %v1629 = vpop.f32.mrb[0].mxu0
    %v1630 = vadd.f32 %v1253, %v1629
    %v1631 = vpop.f32.mrb[0].mxu0
    %v1632 = vand.u32 %v299, 4294901760
    %v1633 = vsub.f32 %v299, %v1632
    %1634 = vmatprep.mubr.f32.mxu0 %v1633
    %v1635 = vand.u32 %v298, 4294901760
    %v1636 = vsub.f32 %v298, %v1635
    %1637 = vmatmul.mubr.f32.gmra.mrb[0].mxu0 %v1636
    %v1638 = vpop.f32.mrb[0].mxu0
    %v1639 = vadd.f32 %v1260, %v1638
    %v1640 = vpop.f32.mrb[0].mxu0
    %v1641 = vand.u32 %v301, 4294901760
    %v1642 = vsub.f32 %v301, %v1641
    %1643 = vmatprep.mubr.f32.mxu0 %v1642
    %v1644 = vand.u32 %v300, 4294901760
    %v1645 = vsub.f32 %v300, %v1644
    %1646 = vmatmul.mubr.f32.gmra.mrb[0].mxu0 %v1645
    %v1647 = vpop.f32.mrb[0].mxu0
    %v1648 = vadd.f32 %v1267, %v1647
    %v1649 = vpop.f32.mrb[0].mxu0
    %v1650 = vand.u32 %v303, 4294901760
    %v1651 = vsub.f32 %v303, %v1650
    %1652 = vmatprep.mubr.f32.mxu0 %v1651
    %v1653 = vand.u32 %v302, 4294901760
    %v1654 = vsub.f32 %v302, %v1653
    %1655 = vmatmul.mubr.f32.gmra.mrb[0].mxu0 %v1654
    %v1656 = vpop.f32.mrb[0].mxu0
    %v1657 = vadd.f32 %v1274, %v1656
    %v1658 = vpop.f32.mrb[0].mxu0
    %v1659 = vand.u32 %v305, 4294901760
    %v1660 = vsub.f32 %v305, %v1659
    %1661 = vmatprep.mubr.f32.mxu0 %v1660
    %v1662 = vand.u32 %v304, 4294901760
    %v1663 = vsub.f32 %v304, %v1662
    %1664 = vmatmul.mubr.f32.gmra.mrb[0].mxu0 %v1663
    %v1665 = vpop.f32.mrb[0].mxu0
    %v1666 = vadd.f32 %v1281, %v1665
    %v1667 = vpop.f32.mrb[0].mxu0
    %v1668 = vand.u32 %v307, 4294901760
    %v1669 = vsub.f32 %v307, %v1668
    %1670 = vmatprep.mubr.f32.mxu0 %v1669
    %v1671 = vand.u32 %v306, 4294901760
    %v1672 = vsub.f32 %v306, %v1671
    %1673 = vmatmul.mubr.f32.gmra.mrb[0].mxu0 %v1672
    %v1674 = vpop.f32.mrb[0].mxu0
    %v1675 = vadd.f32 %v1288, %v1674
    %v1676 = vpop.f32.mrb[0].mxu0
    %v1677 = vand.u32 %v309, 4294901760
    %v1678 = vsub.f32 %v309, %v1677
    %1679 = vmatprep.mubr.f32.mxu0 %v1678
    %v1680 = vand.u32 %v308, 4294901760
    %v1681 = vsub.f32 %v308, %v1680
    %1682 = vmatmul.mubr.f32.gmra.mrb[0].mxu0 %v1681
    %v1683 = vpop.f32.mrb[0].mxu0
    %v1684 = vadd.f32 %v1295, %v1683
    %v1685 = vpop.f32.mrb[0].mxu0
    %v1686 = vand.u32 %v311, 4294901760
    %v1687 = vsub.f32 %v311, %v1686
    %1688 = vmatprep.mubr.f32.mxu0 %v1687
    %v1689 = vand.u32 %v310, 4294901760
    %v1690 = vsub.f32 %v310, %v1689
    %1691 = vmatmul.mubr.f32.gmra.mrb[0].mxu0 %v1690
    %v1692 = vpop.f32.mrb[0].mxu0
    %v1693 = vadd.f32 %v1302, %v1692
    %v1694 = vpop.f32.mrb[0].mxu0
    %v1695 = vand.u32 %v313, 4294901760
    %v1696 = vsub.f32 %v313, %v1695
    %1697 = vmatprep.mubr.f32.mxu0 %v1696
    %v1698 = vand.u32 %v312, 4294901760
    %v1699 = vsub.f32 %v312, %v1698
    %1700 = vmatmul.mubr.f32.gmra.mrb[0].mxu0 %v1699
    %v1701 = vpop.f32.mrb[0].mxu0
    %v1702 = vadd.f32 %v1309, %v1701
    %v1703 = vpop.f32.mrb[0].mxu0
    %v1704 = vand.u32 %v315, 4294901760
    %v1705 = vsub.f32 %v315, %v1704
    %1706 = vmatprep.mubr.f32.mxu0 %v1705
    %v1707 = vand.u32 %v314, 4294901760
    %v1708 = vsub.f32 %v314, %v1707
    %1709 = vmatmul.mubr.f32.gmra.mrb[0].mxu0 %v1708
    %v1710 = vpop.f32.mrb[0].mxu0
    %v1711 = vadd.f32 %v1316, %v1710
    %v1712 = vpop.f32.mrb[0].mxu0
    %v1713 = vand.u32 %v317, 4294901760
    %v1714 = vsub.f32 %v317, %v1713
    %1715 = vmatprep.mubr.f32.mxu0 %v1714
    %v1716 = vand.u32 %v316, 4294901760
    %v1717 = vsub.f32 %v316, %v1716
    %1718 = vmatmul.mubr.f32.gmra.mrb[0].mxu0 %v1717
    %v1719 = vpop.f32.mrb[0].mxu0
    %v1720 = vadd.f32 %v1323, %v1719
    %v1721 = vpop.f32.mrb[0].mxu0
    %v1722 = vand.u32 %v319, 4294901760
    %v1723 = vsub.f32 %v319, %v1722
    %1724 = vmatprep.mubr.f32.mxu0 %v1723
    %v1725 = vand.u32 %v318, 4294901760
    %v1726 = vsub.f32 %v318, %v1725
    %1727 = vmatmul.mubr.f32.gmra.mrb[0].mxu0 %v1726
    %v1728 = vpop.f32.mrb[0].mxu0
    %v1729 = vadd.f32 %v1330, %v1728
    %v1730 = vpop.f32.mrb[0].mxu0
    %v1731 = vand.u32 %v321, 4294901760
    %v1732 = vsub.f32 %v321, %v1731
    %1733 = vmatprep.mubr.f32.mxu0 %v1732
    %v1734 = vand.u32 %v320, 4294901760
    %v1735 = vsub.f32 %v320, %v1734
    %1736 = vmatmul.mubr.f32.gmra.mrb[0].mxu0 %v1735
    %v1737 = vpop.f32.mrb[0].mxu0
    %v1738 = vadd.f32 %v1337, %v1737
    %v1739 = vpop.f32.mrb[0].mxu0
    %v1740 = vand.u32 %v323, 4294901760
    %v1741 = vsub.f32 %v323, %v1740
    %1742 = vmatprep.mubr.f32.mxu0 %v1741
    %v1743 = vand.u32 %v322, 4294901760
    %v1744 = vsub.f32 %v322, %v1743
    %1745 = vmatmul.mubr.f32.gmra.mrb[0].mxu0 %v1744
    %v1746 = vpop.f32.mrb[0].mxu0
    %v1747 = vadd.f32 %v1344, %v1746
    %v1748 = vpop.f32.mrb[0].mxu0
    %v1749 = vand.u32 %v325, 4294901760
    %v1750 = vsub.f32 %v325, %v1749
    %1751 = vmatprep.mubr.f32.mxu0 %v1750
    %v1752 = vand.u32 %v324, 4294901760
    %v1753 = vsub.f32 %v324, %v1752
    %1754 = vmatmul.mubr.f32.gmra.mrb[0].mxu0 %v1753
    %v1755 = vpop.f32.mrb[0].mxu0
    %v1756 = vadd.f32 %v1351, %v1755
    %v1757 = vpop.f32.mrb[0].mxu0
    %v1758 = vand.u32 %v327, 4294901760
    %v1759 = vsub.f32 %v327, %v1758
    %1760 = vmatprep.mubr.f32.mxu0 %v1759
    %v1761 = vand.u32 %v326, 4294901760
    %v1762 = vsub.f32 %v326, %v1761
    %1763 = vmatmul.mubr.f32.gmra.mrb[0].mxu0 %v1762
    %v1764 = vpop.f32.mrb[0].mxu0
    %v1765 = vadd.f32 %v1358, %v1764
    %v1766 = vpop.f32.mrb[0].mxu0
    %v1767 = vand.u32 %v329, 4294901760
    %v1768 = vsub.f32 %v329, %v1767
    %1769 = vmatprep.mubr.f32.mxu0 %v1768
    %v1770 = vand.u32 %v328, 4294901760
    %v1771 = vsub.f32 %v328, %v1770
    %1772 = vmatmul.mubr.f32.gmra.mrb[0].mxu0 %v1771
    %v1773 = vpop.f32.mrb[0].mxu0
    %v1774 = vadd.f32 %v1365, %v1773
    %v1775 = vpop.f32.mrb[0].mxu0
    %v1776 = vand.u32 %v331, 4294901760
    %v1777 = vsub.f32 %v331, %v1776
    %1778 = vmatprep.mubr.f32.mxu0 %v1777
    %v1779 = vand.u32 %v330, 4294901760
    %v1780 = vsub.f32 %v330, %v1779
    %1781 = vmatmul.mubr.f32.gmra.mrb[0].mxu0 %v1780
    %v1782 = vpop.f32.mrb[0].mxu0
    %v1783 = vadd.f32 %v1372, %v1782
    %v1784 = vpop.f32.mrb[0].mxu0
    %v1785 = vand.u32 %v333, 4294901760
    %v1786 = vsub.f32 %v333, %v1785
    %1787 = vmatprep.mubr.f32.mxu0 %v1786
    %v1788 = vand.u32 %v332, 4294901760
    %v1789 = vsub.f32 %v332, %v1788
    %1790 = vmatmul.mubr.f32.gmra.mrb[0].mxu0 %v1789
    %v1791 = vpop.f32.mrb[0].mxu0
    %v1792 = vadd.f32 %v1379, %v1791
    %v1793 = vpop.f32.mrb[0].mxu0
    %v1794 = vand.u32 %v335, 4294901760
    %v1795 = vsub.f32 %v335, %v1794
    %1796 = vmatprep.mubr.f32.mxu0 %v1795
    %v1797 = vand.u32 %v334, 4294901760
    %v1798 = vsub.f32 %v334, %v1797
    %1799 = vmatmul.mubr.f32.gmra.mrb[0].mxu0 %v1798
    %v1800 = vpop.f32.mrb[0].mxu0
    %v1801 = vadd.f32 %v1386, %v1800
    %v1802 = vpop.f32.mrb[0].mxu0
    %v1803 = vand.u32 %v337, 4294901760
    %v1804 = vsub.f32 %v337, %v1803
    %1805 = vmatprep.mubr.f32.mxu0 %v1804
    %v1806 = vand.u32 %v336, 4294901760
    %v1807 = vsub.f32 %v336, %v1806
    %1808 = vmatmul.mubr.f32.gmra.mrb[0].mxu0 %v1807
    %v1809 = vpop.f32.mrb[0].mxu0
    %v1810 = vadd.f32 %v1393, %v1809
    %v1811 = vpop.f32.mrb[0].mxu0
    %1812 = vdwg.mxu0
    %1813 = vmatprep.subr.mxu0 0.0
    %v1814 = vand.u32 %v338, 4294901760
    %1815 = vmatpush1.msra.mxu0 %v1814
    %1816 = vmatprep.subr.mxu0 0.0
    %v1817 = vand.u32 %v339, 4294901760
    %1818 = vmatpush1.msra.mxu0 %v1817
    %1819 = vmatprep.subr.mxu0 0.0
    %v1820 = vand.u32 %v340, 4294901760
    %1821 = vmatpush1.msra.mxu0 %v1820
    %1822 = vmatprep.subr.mxu0 0.0
    %v1823 = vand.u32 %v341, 4294901760
    %1824 = vmatpush1.msra.mxu0 %v1823
    %1825 = vmatprep.subr.mxu0 0.0
    %v1826 = vand.u32 %v342, 4294901760
    %1827 = vmatpush1.msra.mxu0 %v1826
    %1828 = vmatprep.subr.mxu0 0.0
    %v1829 = vand.u32 %v343, 4294901760
    %1830 = vmatpush1.msra.mxu0 %v1829
    %1831 = vmatprep.subr.mxu0 0.0
    %v1832 = vand.u32 %v344, 4294901760
    %1833 = vmatpush1.msra.mxu0 %v1832
    %1834 = vmatprep.subr.mxu0 0.0
    %v1835 = vand.u32 %v345, 4294901760
    %1836 = vmatpush1.msra.mxu0 %v1835
    %1837 = vmatprep.subr.mxu0 0.0
    %v1838 = vand.u32 %v346, 4294901760
    %1839 = vmatpush1.msra.mxu0 %v1838
    %1840 = vmatprep.subr.mxu0 0.0
    %v1841 = vand.u32 %v347, 4294901760
    %1842 = vmatpush1.msra.mxu0 %v1841
    %1843 = vmatprep.subr.mxu0 0.0
    %v1844 = vand.u32 %v348, 4294901760
    %1845 = vmatpush1.msra.mxu0 %v1844
    %1846 = vmatprep.subr.mxu0 0.0
    %v1847 = vand.u32 %v349, 4294901760
    %1848 = vmatpush1.msra.mxu0 %v1847
    %1849 = vmatprep.subr.mxu0 0.0
    %v1850 = vand.u32 %v350, 4294901760
    %1851 = vmatpush1.msra.mxu0 %v1850
    %1852 = vmatprep.subr.mxu0 0.0
    %v1853 = vand.u32 %v351, 4294901760
    %1854 = vmatpush1.msra.mxu0 %v1853
    %1855 = vmatprep.subr.mxu0 0.0
    %v1856 = vand.u32 %v352, 4294901760
    %1857 = vmatpush1.msra.mxu0 %v1856
    %1858 = vmatprep.subr.mxu0 0.0
    %v1859 = vand.u32 %v353, 4294901760
    %1860 = vmatpush1.msra.mxu0 %v1859
    %1861 = vmatprep.subr.mxu0 0.0
    %v1862 = vand.u32 %v354, 4294901760
    %1863 = vmatpush1.msra.mxu0 %v1862
    %1864 = vmatprep.subr.mxu0 0.0
    %v1865 = vand.u32 %v355, 4294901760
    %1866 = vmatpush1.msra.mxu0 %v1865
    %1867 = vmatprep.subr.mxu0 0.0
    %v1868 = vand.u32 %v356, 4294901760
    %1869 = vmatpush1.msra.mxu0 %v1868
    %1870 = vmatprep.subr.mxu0 0.0
    %v1871 = vand.u32 %v357, 4294901760
    %1872 = vmatpush1.msra.mxu0 %v1871
    %1873 = vmatprep.subr.mxu0 0.0
    %v1874 = vand.u32 %v358, 4294901760
    %1875 = vmatpush1.msra.mxu0 %v1874
    %1876 = vmatprep.subr.mxu0 0.0
    %v1877 = vand.u32 %v359, 4294901760
    %1878 = vmatpush1.msra.mxu0 %v1877
    %1879 = vmatprep.subr.mxu0 0.0
    %v1880 = vand.u32 %v360, 4294901760
    %1881 = vmatpush1.msra.mxu0 %v1880
    %1882 = vmatprep.subr.mxu0 0.0
    %v1883 = vand.u32 %v361, 4294901760
    %1884 = vmatpush1.msra.mxu0 %v1883
    %1885 = vmatprep.subr.mxu0 0.0
    %v1886 = vand.u32 %v362, 4294901760
    %1887 = vmatpush1.msra.mxu0 %v1886
    %1888 = vmatprep.subr.mxu0 0.0
    %v1889 = vand.u32 %v363, 4294901760
    %1890 = vmatpush1.msra.mxu0 %v1889
    %1891 = vmatprep.subr.mxu0 0.0
    %v1892 = vand.u32 %v364, 4294901760
    %1893 = vmatpush1.msra.mxu0 %v1892
    %1894 = vmatprep.subr.mxu0 0.0
    %v1895 = vand.u32 %v365, 4294901760
    %1896 = vmatpush1.msra.mxu0 %v1895
    %1897 = vmatprep.subr.mxu0 0.0
    %v1898 = vand.u32 %v366, 4294901760
    %1899 = vmatpush1.msra.mxu0 %v1898
    %1900 = vmatprep.subr.mxu0 0.0
    %v1901 = vand.u32 %v367, 4294901760
    %1902 = vmatpush1.msra.mxu0 %v1901
    %1903 = vmatprep.subr.mxu0 0.0
    %v1904 = vand.u32 %v368, 4294901760
    %1905 = vmatpush1.msra.mxu0 %v1904
    %1906 = vmatprep.subr.mxu0 0.0
    %v1907 = vand.u32 %v369, 4294901760
    %1908 = vmatpush1.msra.mxu0 %v1907
    %v1909 = vand.u32 %v275, 4294901760
    %v1910 = vsub.f32 %v275, %v1909
    %v1911 = vand.u32 %v1910, 4294901760
    %1912 = vmatprep.mubr.f32.mxu0 %v1911
    %v1913 = vand.u32 %v274, 4294901760
    %v1914 = vsub.f32 %v274, %v1913
    %v1915 = vand.u32 %v1914, 4294901760
    %1916 = vmatmul.mubr.f32.gmra.mrb[0].mxu0 %v1915
    %v1917 = vpop.f32.mrb[0].mxu0
    %v1918 = vadd.f32 %v1531, %v1917
    %v1919 = vpop.f32.mrb[0].mxu0
    %v1920 = vand.u32 %v277, 4294901760
    %v1921 = vsub.f32 %v277, %v1920
    %v1922 = vand.u32 %v1921, 4294901760
    %1923 = vmatprep.mubr.f32.mxu0 %v1922
    %v1924 = vand.u32 %v276, 4294901760
    %v1925 = vsub.f32 %v276, %v1924
    %v1926 = vand.u32 %v1925, 4294901760
    %1927 = vmatmul.mubr.f32.gmra.mrb[0].mxu0 %v1926
    %v1928 = vpop.f32.mrb[0].mxu0
    %v1929 = vadd.f32 %v1540, %v1928
    %v1930 = vpop.f32.mrb[0].mxu0
    %v1931 = vand.u32 %v279, 4294901760
    %v1932 = vsub.f32 %v279, %v1931
    %v1933 = vand.u32 %v1932, 4294901760
    %1934 = vmatprep.mubr.f32.mxu0 %v1933
    %v1935 = vand.u32 %v278, 4294901760
    %v1936 = vsub.f32 %v278, %v1935
    %v1937 = vand.u32 %v1936, 4294901760
    %1938 = vmatmul.mubr.f32.gmra.mrb[0].mxu0 %v1937
    %v1939 = vpop.f32.mrb[0].mxu0
    %v1940 = vadd.f32 %v1549, %v1939
    %v1941 = vpop.f32.mrb[0].mxu0
    %v1942 = vand.u32 %v281, 4294901760
    %v1943 = vsub.f32 %v281, %v1942
    %v1944 = vand.u32 %v1943, 4294901760
    %1945 = vmatprep.mubr.f32.mxu0 %v1944
    %v1946 = vand.u32 %v280, 4294901760
    %v1947 = vsub.f32 %v280, %v1946
    %v1948 = vand.u32 %v1947, 4294901760
    %1949 = vmatmul.mubr.f32.gmra.mrb[0].mxu0 %v1948
    %v1950 = vpop.f32.mrb[0].mxu0
    %v1951 = vadd.f32 %v1558, %v1950
    %v1952 = vpop.f32.mrb[0].mxu0
    %v1953 = vand.u32 %v283, 4294901760
    %v1954 = vsub.f32 %v283, %v1953
    %v1955 = vand.u32 %v1954, 4294901760
    %1956 = vmatprep.mubr.f32.mxu0 %v1955
    %v1957 = vand.u32 %v282, 4294901760
    %v1958 = vsub.f32 %v282, %v1957
    %v1959 = vand.u32 %v1958, 4294901760
    %1960 = vmatmul.mubr.f32.gmra.mrb[0].mxu0 %v1959
    %v1961 = vpop.f32.mrb[0].mxu0
    %v1962 = vadd.f32 %v1567, %v1961
    %v1963 = vpop.f32.mrb[0].mxu0
    %v1964 = vand.u32 %v285, 4294901760
    %v1965 = vsub.f32 %v285, %v1964
    %v1966 = vand.u32 %v1965, 4294901760
    %1967 = vmatprep.mubr.f32.mxu0 %v1966
    %v1968 = vand.u32 %v284, 4294901760
    %v1969 = vsub.f32 %v284, %v1968
    %v1970 = vand.u32 %v1969, 4294901760
    %1971 = vmatmul.mubr.f32.gmra.mrb[0].mxu0 %v1970
    %v1972 = vpop.f32.mrb[0].mxu0
    %v1973 = vadd.f32 %v1576, %v1972
    %v1974 = vpop.f32.mrb[0].mxu0
    %v1975 = vand.u32 %v287, 4294901760
    %v1976 = vsub.f32 %v287, %v1975
    %v1977 = vand.u32 %v1976, 4294901760
    %1978 = vmatprep.mubr.f32.mxu0 %v1977
    %v1979 = vand.u32 %v286, 4294901760
    %v1980 = vsub.f32 %v286, %v1979
    %v1981 = vand.u32 %v1980, 4294901760
    %1982 = vmatmul.mubr.f32.gmra.mrb[0].mxu0 %v1981
    %v1983 = vpop.f32.mrb[0].mxu0
    %v1984 = vadd.f32 %v1585, %v1983
    %v1985 = vpop.f32.mrb[0].mxu0
    %v1986 = vand.u32 %v289, 4294901760
    %v1987 = vsub.f32 %v289, %v1986
    %v1988 = vand.u32 %v1987, 4294901760
    %1989 = vmatprep.mubr.f32.mxu0 %v1988
    %v1990 = vand.u32 %v288, 4294901760
    %v1991 = vsub.f32 %v288, %v1990
    %v1992 = vand.u32 %v1991, 4294901760
    %1993 = vmatmul.mubr.f32.gmra.mrb[0].mxu0 %v1992
    %v1994 = vpop.f32.mrb[0].mxu0
    %v1995 = vadd.f32 %v1594, %v1994
    %v1996 = vpop.f32.mrb[0].mxu0
    %v1997 = vand.u32 %v291, 4294901760
    %v1998 = vsub.f32 %v291, %v1997
    %v1999 = vand.u32 %v1998, 4294901760
    %2000 = vmatprep.mubr.f32.mxu0 %v1999
    %v2001 = vand.u32 %v290, 4294901760
    %v2002 = vsub.f32 %v290, %v2001
    %v2003 = vand.u32 %v2002, 4294901760
    %2004 = vmatmul.mubr.f32.gmra.mrb[0].mxu0 %v2003
    %v2005 = vpop.f32.mrb[0].mxu0
    %v2006 = vadd.f32 %v1603, %v2005
    %v2007 = vpop.f32.mrb[0].mxu0
    %v2008 = vand.u32 %v293, 4294901760
    %v2009 = vsub.f32 %v293, %v2008
    %v2010 = vand.u32 %v2009, 4294901760
    %2011 = vmatprep.mubr.f32.mxu0 %v2010
    %v2012 = vand.u32 %v292, 4294901760
    %v2013 = vsub.f32 %v292, %v2012
    %v2014 = vand.u32 %v2013, 4294901760
    %2015 = vmatmul.mubr.f32.gmra.mrb[0].mxu0 %v2014
    %v2016 = vpop.f32.mrb[0].mxu0
    %v2017 = vadd.f32 %v1612, %v2016
    %v2018 = vpop.f32.mrb[0].mxu0
    %v2019 = vand.u32 %v295, 4294901760
    %v2020 = vsub.f32 %v295, %v2019
    %v2021 = vand.u32 %v2020, 4294901760
    %2022 = vmatprep.mubr.f32.mxu0 %v2021
    %v2023 = vand.u32 %v294, 4294901760
    %v2024 = vsub.f32 %v294, %v2023
    %v2025 = vand.u32 %v2024, 4294901760
    %2026 = vmatmul.mubr.f32.gmra.mrb[0].mxu0 %v2025
    %v2027 = vpop.f32.mrb[0].mxu0
    %v2028 = vadd.f32 %v1621, %v2027
    %v2029 = vpop.f32.mrb[0].mxu0
    %v2030 = vand.u32 %v297, 4294901760
    %v2031 = vsub.f32 %v297, %v2030
    %v2032 = vand.u32 %v2031, 4294901760
    %2033 = vmatprep.mubr.f32.mxu0 %v2032
    %v2034 = vand.u32 %v296, 4294901760
    %v2035 = vsub.f32 %v296, %v2034
    %v2036 = vand.u32 %v2035, 4294901760
    %2037 = vmatmul.mubr.f32.gmra.mrb[0].mxu0 %v2036
    %v2038 = vpop.f32.mrb[0].mxu0
    %v2039 = vadd.f32 %v1630, %v2038
    %v2040 = vpop.f32.mrb[0].mxu0
    %v2041 = vand.u32 %v299, 4294901760
    %v2042 = vsub.f32 %v299, %v2041
    %v2043 = vand.u32 %v2042, 4294901760
    %2044 = vmatprep.mubr.f32.mxu0 %v2043
    %v2045 = vand.u32 %v298, 4294901760
    %v2046 = vsub.f32 %v298, %v2045
    %v2047 = vand.u32 %v2046, 4294901760
    %2048 = vmatmul.mubr.f32.gmra.mrb[0].mxu0 %v2047
    %v2049 = vpop.f32.mrb[0].mxu0
    %v2050 = vadd.f32 %v1639, %v2049
    %v2051 = vpop.f32.mrb[0].mxu0
    %v2052 = vand.u32 %v301, 4294901760
    %v2053 = vsub.f32 %v301, %v2052
    %v2054 = vand.u32 %v2053, 4294901760
    %2055 = vmatprep.mubr.f32.mxu0 %v2054
    %v2056 = vand.u32 %v300, 4294901760
    %v2057 = vsub.f32 %v300, %v2056
    %v2058 = vand.u32 %v2057, 4294901760
    %2059 = vmatmul.mubr.f32.gmra.mrb[0].mxu0 %v2058
    %v2060 = vpop.f32.mrb[0].mxu0
    %v2061 = vadd.f32 %v1648, %v2060
    %v2062 = vpop.f32.mrb[0].mxu0
    %v2063 = vand.u32 %v303, 4294901760
    %v2064 = vsub.f32 %v303, %v2063
    %v2065 = vand.u32 %v2064, 4294901760
    %2066 = vmatprep.mubr.f32.mxu0 %v2065
    %v2067 = vand.u32 %v302, 4294901760
    %v2068 = vsub.f32 %v302, %v2067
    %v2069 = vand.u32 %v2068, 4294901760
    %2070 = vmatmul.mubr.f32.gmra.mrb[0].mxu0 %v2069
    %v2071 = vpop.f32.mrb[0].mxu0
    %v2072 = vadd.f32 %v1657, %v2071
    %v2073 = vpop.f32.mrb[0].mxu0
    %v2074 = vand.u32 %v305, 4294901760
    %v2075 = vsub.f32 %v305, %v2074
    %v2076 = vand.u32 %v2075, 4294901760
    %2077 = vmatprep.mubr.f32.mxu0 %v2076
    %v2078 = vand.u32 %v304, 4294901760
    %v2079 = vsub.f32 %v304, %v2078
    %v2080 = vand.u32 %v2079, 4294901760
    %2081 = vmatmul.mubr.f32.gmra.mrb[0].mxu0 %v2080
    %v2082 = vpop.f32.mrb[0].mxu0
    %v2083 = vadd.f32 %v1666, %v2082
    %v2084 = vpop.f32.mrb[0].mxu0
    %v2085 = vand.u32 %v307, 4294901760
    %v2086 = vsub.f32 %v307, %v2085
    %v2087 = vand.u32 %v2086, 4294901760
    %2088 = vmatprep.mubr.f32.mxu0 %v2087
    %v2089 = vand.u32 %v306, 4294901760
    %v2090 = vsub.f32 %v306, %v2089
    %v2091 = vand.u32 %v2090, 4294901760
    %2092 = vmatmul.mubr.f32.gmra.mrb[0].mxu0 %v2091
    %v2093 = vpop.f32.mrb[0].mxu0
    %v2094 = vadd.f32 %v1675, %v2093
    %v2095 = vpop.f32.mrb[0].mxu0
    %v2096 = vand.u32 %v309, 4294901760
    %v2097 = vsub.f32 %v309, %v2096
    %v2098 = vand.u32 %v2097, 4294901760
    %2099 = vmatprep.mubr.f32.mxu0 %v2098
    %v2100 = vand.u32 %v308, 4294901760
    %v2101 = vsub.f32 %v308, %v2100
    %v2102 = vand.u32 %v2101, 4294901760
    %2103 = vmatmul.mubr.f32.gmra.mrb[0].mxu0 %v2102
    %v2104 = vpop.f32.mrb[0].mxu0
    %v2105 = vadd.f32 %v1684, %v2104
    %v2106 = vpop.f32.mrb[0].mxu0
    %v2107 = vand.u32 %v311, 4294901760
    %v2108 = vsub.f32 %v311, %v2107
    %v2109 = vand.u32 %v2108, 4294901760
    %2110 = vmatprep.mubr.f32.mxu0 %v2109
    %v2111 = vand.u32 %v310, 4294901760
    %v2112 = vsub.f32 %v310, %v2111
    %v2113 = vand.u32 %v2112, 4294901760
    %2114 = vmatmul.mubr.f32.gmra.mrb[0].mxu0 %v2113
    %v2115 = vpop.f32.mrb[0].mxu0
    %v2116 = vadd.f32 %v1693, %v2115
    %v2117 = vpop.f32.mrb[0].mxu0
    %v2118 = vand.u32 %v313, 4294901760
    %v2119 = vsub.f32 %v313, %v2118
    %v2120 = vand.u32 %v2119, 4294901760
    %2121 = vmatprep.mubr.f32.mxu0 %v2120
    %v2122 = vand.u32 %v312, 4294901760
    %v2123 = vsub.f32 %v312, %v2122
    %v2124 = vand.u32 %v2123, 4294901760
    %2125 = vmatmul.mubr.f32.gmra.mrb[0].mxu0 %v2124
    %v2126 = vpop.f32.mrb[0].mxu0
    %v2127 = vadd.f32 %v1702, %v2126
    %v2128 = vpop.f32.mrb[0].mxu0
    %v2129 = vand.u32 %v315, 4294901760
    %v2130 = vsub.f32 %v315, %v2129
    %v2131 = vand.u32 %v2130, 4294901760
    %2132 = vmatprep.mubr.f32.mxu0 %v2131
    %v2133 = vand.u32 %v314, 4294901760
    %v2134 = vsub.f32 %v314, %v2133
    %v2135 = vand.u32 %v2134, 4294901760
    %2136 = vmatmul.mubr.f32.gmra.mrb[0].mxu0 %v2135
    %v2137 = vpop.f32.mrb[0].mxu0
    %v2138 = vadd.f32 %v1711, %v2137
    %v2139 = vpop.f32.mrb[0].mxu0
    %v2140 = vand.u32 %v317, 4294901760
    %v2141 = vsub.f32 %v317, %v2140
    %v2142 = vand.u32 %v2141, 4294901760
    %2143 = vmatprep.mubr.f32.mxu0 %v2142
    %v2144 = vand.u32 %v316, 4294901760
    %v2145 = vsub.f32 %v316, %v2144
    %v2146 = vand.u32 %v2145, 4294901760
    %2147 = vmatmul.mubr.f32.gmra.mrb[0].mxu0 %v2146
    %v2148 = vpop.f32.mrb[0].mxu0
    %v2149 = vadd.f32 %v1720, %v2148
    %v2150 = vpop.f32.mrb[0].mxu0
    %v2151 = vand.u32 %v319, 4294901760
    %v2152 = vsub.f32 %v319, %v2151
    %v2153 = vand.u32 %v2152, 4294901760
    %2154 = vmatprep.mubr.f32.mxu0 %v2153
    %v2155 = vand.u32 %v318, 4294901760
    %v2156 = vsub.f32 %v318, %v2155
    %v2157 = vand.u32 %v2156, 4294901760
    %2158 = vmatmul.mubr.f32.gmra.mrb[0].mxu0 %v2157
    %v2159 = vpop.f32.mrb[0].mxu0
    %v2160 = vadd.f32 %v1729, %v2159
    %v2161 = vpop.f32.mrb[0].mxu0
    %v2162 = vand.u32 %v321, 4294901760
    %v2163 = vsub.f32 %v321, %v2162
    %v2164 = vand.u32 %v2163, 4294901760
    %2165 = vmatprep.mubr.f32.mxu0 %v2164
    %v2166 = vand.u32 %v320, 4294901760
    %v2167 = vsub.f32 %v320, %v2166
    %v2168 = vand.u32 %v2167, 4294901760
    %2169 = vmatmul.mubr.f32.gmra.mrb[0].mxu0 %v2168
    %v2170 = vpop.f32.mrb[0].mxu0
    %v2171 = vadd.f32 %v1738, %v2170
    %v2172 = vpop.f32.mrb[0].mxu0
    %v2173 = vand.u32 %v323, 4294901760
    %v2174 = vsub.f32 %v323, %v2173
    %v2175 = vand.u32 %v2174, 4294901760
    %2176 = vmatprep.mubr.f32.mxu0 %v2175
    %v2177 = vand.u32 %v322, 4294901760
    %v2178 = vsub.f32 %v322, %v2177
    %v2179 = vand.u32 %v2178, 4294901760
    %2180 = vmatmul.mubr.f32.gmra.mrb[0].mxu0 %v2179
    %v2181 = vpop.f32.mrb[0].mxu0
    %v2182 = vadd.f32 %v1747, %v2181
    %v2183 = vpop.f32.mrb[0].mxu0
    %v2184 = vand.u32 %v325, 4294901760
    %v2185 = vsub.f32 %v325, %v2184
    %v2186 = vand.u32 %v2185, 4294901760
    %2187 = vmatprep.mubr.f32.mxu0 %v2186
    %v2188 = vand.u32 %v324, 4294901760
    %v2189 = vsub.f32 %v324, %v2188
    %v2190 = vand.u32 %v2189, 4294901760
    %2191 = vmatmul.mubr.f32.gmra.mrb[0].mxu0 %v2190
    %v2192 = vpop.f32.mrb[0].mxu0
    %v2193 = vadd.f32 %v1756, %v2192
    %v2194 = vpop.f32.mrb[0].mxu0
    %v2195 = vand.u32 %v327, 4294901760
    %v2196 = vsub.f32 %v327, %v2195
    %v2197 = vand.u32 %v2196, 4294901760
    %2198 = vmatprep.mubr.f32.mxu0 %v2197
    %v2199 = vand.u32 %v326, 4294901760
    %v2200 = vsub.f32 %v326, %v2199
    %v2201 = vand.u32 %v2200, 4294901760
    %2202 = vmatmul.mubr.f32.gmra.mrb[0].mxu0 %v2201
    %v2203 = vpop.f32.mrb[0].mxu0
    %v2204 = vadd.f32 %v1765, %v2203
    %v2205 = vpop.f32.mrb[0].mxu0
    %v2206 = vand.u32 %v329, 4294901760
    %v2207 = vsub.f32 %v329, %v2206
    %v2208 = vand.u32 %v2207, 4294901760
    %2209 = vmatprep.mubr.f32.mxu0 %v2208
    %v2210 = vand.u32 %v328, 4294901760
    %v2211 = vsub.f32 %v328, %v2210
    %v2212 = vand.u32 %v2211, 4294901760
    %2213 = vmatmul.mubr.f32.gmra.mrb[0].mxu0 %v2212
    %v2214 = vpop.f32.mrb[0].mxu0
    %v2215 = vadd.f32 %v1774, %v2214
    %v2216 = vpop.f32.mrb[0].mxu0
    %v2217 = vand.u32 %v331, 4294901760
    %v2218 = vsub.f32 %v331, %v2217
    %v2219 = vand.u32 %v2218, 4294901760
    %2220 = vmatprep.mubr.f32.mxu0 %v2219
    %v2221 = vand.u32 %v330, 4294901760
    %v2222 = vsub.f32 %v330, %v2221
    %v2223 = vand.u32 %v2222, 4294901760
    %2224 = vmatmul.mubr.f32.gmra.mrb[0].mxu0 %v2223
    %v2225 = vpop.f32.mrb[0].mxu0
    %v2226 = vadd.f32 %v1783, %v2225
    %v2227 = vpop.f32.mrb[0].mxu0
    %v2228 = vand.u32 %v333, 4294901760
    %v2229 = vsub.f32 %v333, %v2228
    %v2230 = vand.u32 %v2229, 4294901760
    %2231 = vmatprep.mubr.f32.mxu0 %v2230
    %v2232 = vand.u32 %v332, 4294901760
    %v2233 = vsub.f32 %v332, %v2232
    %v2234 = vand.u32 %v2233, 4294901760
    %2235 = vmatmul.mubr.f32.gmra.mrb[0].mxu0 %v2234
    %v2236 = vpop.f32.mrb[0].mxu0
    %v2237 = vadd.f32 %v1792, %v2236
    %v2238 = vpop.f32.mrb[0].mxu0
    %v2239 = vand.u32 %v335, 4294901760
    %v2240 = vsub.f32 %v335, %v2239
    %v2241 = vand.u32 %v2240, 4294901760
    %2242 = vmatprep.mubr.f32.mxu0 %v2241
    %v2243 = vand.u32 %v334, 4294901760
    %v2244 = vsub.f32 %v334, %v2243
    %v2245 = vand.u32 %v2244, 4294901760
    %2246 = vmatmul.mubr.f32.gmra.mrb[0].mxu0 %v2245
    %v2247 = vpop.f32.mrb[0].mxu0
    %v2248 = vadd.f32 %v1801, %v2247
    %v2249 = vpop.f32.mrb[0].mxu0
    %v2250 = vand.u32 %v337, 4294901760
    %v2251 = vsub.f32 %v337, %v2250
    %v2252 = vand.u32 %v2251, 4294901760
    %2253 = vmatprep.mubr.f32.mxu0 %v2252
    %v2254 = vand.u32 %v336, 4294901760
    %v2255 = vsub.f32 %v336, %v2254
    %v2256 = vand.u32 %v2255, 4294901760
    %2257 = vmatmul.mubr.f32.gmra.mrb[0].mxu0 %v2256
    %v2258 = vpop.f32.mrb[0].mxu0
    %v2259 = vadd.f32 %v1810, %v2258
    %v2260 = vpop.f32.mrb[0].mxu0
    %2261 = vdwg.mxu0
    %2262 = vmatprep.subr.mxu0 0.0
    %v2263 = vand.u32 %v338, 4294901760
    %v2264 = vsub.f32 %v338, %v2263
    %v2265 = vand.u32 %v2264, 4294901760
    %2266 = vmatpush1.msra.mxu0 %v2265
    %2267 = vmatprep.subr.mxu0 0.0
    %v2268 = vand.u32 %v339, 4294901760
    %v2269 = vsub.f32 %v339, %v2268
    %v2270 = vand.u32 %v2269, 4294901760
    %2271 = vmatpush1.msra.mxu0 %v2270
    %2272 = vmatprep.subr.mxu0 0.0
    %v2273 = vand.u32 %v340, 4294901760
    %v2274 = vsub.f32 %v340, %v2273
    %v2275 = vand.u32 %v2274, 4294901760
    %2276 = vmatpush1.msra.mxu0 %v2275
    %2277 = vmatprep.subr.mxu0 0.0
    %v2278 = vand.u32 %v341, 4294901760
    %v2279 = vsub.f32 %v341, %v2278
    %v2280 = vand.u32 %v2279, 4294901760
    %2281 = vmatpush1.msra.mxu0 %v2280
    %2282 = vmatprep.subr.mxu0 0.0
    %v2283 = vand.u32 %v342, 4294901760
    %v2284 = vsub.f32 %v342, %v2283
    %v2285 = vand.u32 %v2284, 4294901760
    %2286 = vmatpush1.msra.mxu0 %v2285
    %2287 = vmatprep.subr.mxu0 0.0
    %v2288 = vand.u32 %v343, 4294901760
    %v2289 = vsub.f32 %v343, %v2288
    %v2290 = vand.u32 %v2289, 4294901760
    %2291 = vmatpush1.msra.mxu0 %v2290
    %2292 = vmatprep.subr.mxu0 0.0
    %v2293 = vand.u32 %v344, 4294901760
    %v2294 = vsub.f32 %v344, %v2293
    %v2295 = vand.u32 %v2294, 4294901760
    %2296 = vmatpush1.msra.mxu0 %v2295
    %2297 = vmatprep.subr.mxu0 0.0
    %v2298 = vand.u32 %v345, 4294901760
    %v2299 = vsub.f32 %v345, %v2298
    %v2300 = vand.u32 %v2299, 4294901760
    %2301 = vmatpush1.msra.mxu0 %v2300
    %2302 = vmatprep.subr.mxu0 0.0
    %v2303 = vand.u32 %v346, 4294901760
    %v2304 = vsub.f32 %v346, %v2303
    %v2305 = vand.u32 %v2304, 4294901760
    %2306 = vmatpush1.msra.mxu0 %v2305
    %2307 = vmatprep.subr.mxu0 0.0
    %v2308 = vand.u32 %v347, 4294901760
    %v2309 = vsub.f32 %v347, %v2308
    %v2310 = vand.u32 %v2309, 4294901760
    %2311 = vmatpush1.msra.mxu0 %v2310
    %2312 = vmatprep.subr.mxu0 0.0
    %v2313 = vand.u32 %v348, 4294901760
    %v2314 = vsub.f32 %v348, %v2313
    %v2315 = vand.u32 %v2314, 4294901760
    %2316 = vmatpush1.msra.mxu0 %v2315
    %2317 = vmatprep.subr.mxu0 0.0
    %v2318 = vand.u32 %v349, 4294901760
    %v2319 = vsub.f32 %v349, %v2318
    %v2320 = vand.u32 %v2319, 4294901760
    %2321 = vmatpush1.msra.mxu0 %v2320
    %2322 = vmatprep.subr.mxu0 0.0
    %v2323 = vand.u32 %v350, 4294901760
    %v2324 = vsub.f32 %v350, %v2323
    %v2325 = vand.u32 %v2324, 4294901760
    %2326 = vmatpush1.msra.mxu0 %v2325
    %2327 = vmatprep.subr.mxu0 0.0
    %v2328 = vand.u32 %v351, 4294901760
    %v2329 = vsub.f32 %v351, %v2328
    %v2330 = vand.u32 %v2329, 4294901760
    %2331 = vmatpush1.msra.mxu0 %v2330
    %2332 = vmatprep.subr.mxu0 0.0
    %v2333 = vand.u32 %v352, 4294901760
    %v2334 = vsub.f32 %v352, %v2333
    %v2335 = vand.u32 %v2334, 4294901760
    %2336 = vmatpush1.msra.mxu0 %v2335
    %2337 = vmatprep.subr.mxu0 0.0
    %v2338 = vand.u32 %v353, 4294901760
    %v2339 = vsub.f32 %v353, %v2338
    %v2340 = vand.u32 %v2339, 4294901760
    %2341 = vmatpush1.msra.mxu0 %v2340
    %2342 = vmatprep.subr.mxu0 0.0
    %v2343 = vand.u32 %v354, 4294901760
    %v2344 = vsub.f32 %v354, %v2343
    %v2345 = vand.u32 %v2344, 4294901760
    %2346 = vmatpush1.msra.mxu0 %v2345
    %2347 = vmatprep.subr.mxu0 0.0
    %v2348 = vand.u32 %v355, 4294901760
    %v2349 = vsub.f32 %v355, %v2348
    %v2350 = vand.u32 %v2349, 4294901760
    %2351 = vmatpush1.msra.mxu0 %v2350
    %2352 = vmatprep.subr.mxu0 0.0
    %v2353 = vand.u32 %v356, 4294901760
    %v2354 = vsub.f32 %v356, %v2353
    %v2355 = vand.u32 %v2354, 4294901760
    %2356 = vmatpush1.msra.mxu0 %v2355
    %2357 = vmatprep.subr.mxu0 0.0
    %v2358 = vand.u32 %v357, 4294901760
    %v2359 = vsub.f32 %v357, %v2358
    %v2360 = vand.u32 %v2359, 4294901760
    %2361 = vmatpush1.msra.mxu0 %v2360
    %2362 = vmatprep.subr.mxu0 0.0
    %v2363 = vand.u32 %v358, 4294901760
    %v2364 = vsub.f32 %v358, %v2363
    %v2365 = vand.u32 %v2364, 4294901760
    %2366 = vmatpush1.msra.mxu0 %v2365
    %2367 = vmatprep.subr.mxu0 0.0
    %v2368 = vand.u32 %v359, 4294901760
    %v2369 = vsub.f32 %v359, %v2368
    %v2370 = vand.u32 %v2369, 4294901760
    %2371 = vmatpush1.msra.mxu0 %v2370
    %2372 = vmatprep.subr.mxu0 0.0
    %v2373 = vand.u32 %v360, 4294901760
    %v2374 = vsub.f32 %v360, %v2373
    %v2375 = vand.u32 %v2374, 4294901760
    %2376 = vmatpush1.msra.mxu0 %v2375
    %2377 = vmatprep.subr.mxu0 0.0
    %v2378 = vand.u32 %v361, 4294901760
    %v2379 = vsub.f32 %v361, %v2378
    %v2380 = vand.u32 %v2379, 4294901760
    %2381 = vmatpush1.msra.mxu0 %v2380
    %2382 = vmatprep.subr.mxu0 0.0
    %v2383 = vand.u32 %v362, 4294901760
    %v2384 = vsub.f32 %v362, %v2383
    %v2385 = vand.u32 %v2384, 4294901760
    %2386 = vmatpush1.msra.mxu0 %v2385
    %2387 = vmatprep.subr.mxu0 0.0
    %v2388 = vand.u32 %v363, 4294901760
    %v2389 = vsub.f32 %v363, %v2388
    %v2390 = vand.u32 %v2389, 4294901760
    %2391 = vmatpush1.msra.mxu0 %v2390
    %2392 = vmatprep.subr.mxu0 0.0
    %v2393 = vand.u32 %v364, 4294901760
    %v2394 = vsub.f32 %v364, %v2393
    %v2395 = vand.u32 %v2394, 4294901760
    %2396 = vmatpush1.msra.mxu0 %v2395
    %2397 = vmatprep.subr.mxu0 0.0
    %v2398 = vand.u32 %v365, 4294901760
    %v2399 = vsub.f32 %v365, %v2398
    %v2400 = vand.u32 %v2399, 4294901760
    %2401 = vmatpush1.msra.mxu0 %v2400
    %2402 = vmatprep.subr.mxu0 0.0
    %v2403 = vand.u32 %v366, 4294901760
    %v2404 = vsub.f32 %v366, %v2403
    %v2405 = vand.u32 %v2404, 4294901760
    %2406 = vmatpush1.msra.mxu0 %v2405
    %2407 = vmatprep.subr.mxu0 0.0
    %v2408 = vand.u32 %v367, 4294901760
    %v2409 = vsub.f32 %v367, %v2408
    %v2410 = vand.u32 %v2409, 4294901760
    %2411 = vmatpush1.msra.mxu0 %v2410
    %2412 = vmatprep.subr.mxu0 0.0
    %v2413 = vand.u32 %v368, 4294901760
    %v2414 = vsub.f32 %v368, %v2413
    %v2415 = vand.u32 %v2414, 4294901760
    %2416 = vmatpush1.msra.mxu0 %v2415
    %2417 = vmatprep.subr.mxu0 0.0
    %v2418 = vand.u32 %v369, 4294901760
    %v2419 = vsub.f32 %v369, %v2418
    %v2420 = vand.u32 %v2419, 4294901760
    %2421 = vmatpush1.msra.mxu0 %v2420
    %v2422 = vand.u32 %v275, 4294901760
    %2423 = vmatprep.mubr.f32.mxu0 %v2422
    %v2424 = vand.u32 %v274, 4294901760
    %2425 = vmatmul.mubr.f32.gmra.mrb[0].mxu0 %v2424
    %v2426 = vpop.f32.mrb[0].mxu0
    %v2427 = vadd.f32 %v1918, %v2426
    %v2428 = vpop.f32.mrb[0].mxu0
    %v2429 = vand.u32 %v277, 4294901760
    %2430 = vmatprep.mubr.f32.mxu0 %v2429
    %v2431 = vand.u32 %v276, 4294901760
    %2432 = vmatmul.mubr.f32.gmra.mrb[0].mxu0 %v2431
    %v2433 = vpop.f32.mrb[0].mxu0
    %v2434 = vadd.f32 %v1929, %v2433
    %v2435 = vpop.f32.mrb[0].mxu0
    %v2436 = vand.u32 %v279, 4294901760
    %2437 = vmatprep.mubr.f32.mxu0 %v2436
    %v2438 = vand.u32 %v278, 4294901760
    %2439 = vmatmul.mubr.f32.gmra.mrb[0].mxu0 %v2438
    %v2440 = vpop.f32.mrb[0].mxu0
    %v2441 = vadd.f32 %v1940, %v2440
    %v2442 = vpop.f32.mrb[0].mxu0
    %v2443 = vand.u32 %v281, 4294901760
    %2444 = vmatprep.mubr.f32.mxu0 %v2443
    %v2445 = vand.u32 %v280, 4294901760
    %2446 = vmatmul.mubr.f32.gmra.mrb[0].mxu0 %v2445
    %v2447 = vpop.f32.mrb[0].mxu0
    %v2448 = vadd.f32 %v1951, %v2447
    %v2449 = vpop.f32.mrb[0].mxu0
    %v2450 = vand.u32 %v283, 4294901760
    %2451 = vmatprep.mubr.f32.mxu0 %v2450
    %v2452 = vand.u32 %v282, 4294901760
    %2453 = vmatmul.mubr.f32.gmra.mrb[0].mxu0 %v2452
    %v2454 = vpop.f32.mrb[0].mxu0
    %v2455 = vadd.f32 %v1962, %v2454
    %v2456 = vpop.f32.mrb[0].mxu0
    %v2457 = vand.u32 %v285, 4294901760
    %2458 = vmatprep.mubr.f32.mxu0 %v2457
    %v2459 = vand.u32 %v284, 4294901760
    %2460 = vmatmul.mubr.f32.gmra.mrb[0].mxu0 %v2459
    %v2461 = vpop.f32.mrb[0].mxu0
    %v2462 = vadd.f32 %v1973, %v2461
    %v2463 = vpop.f32.mrb[0].mxu0
    %v2464 = vand.u32 %v287, 4294901760
    %2465 = vmatprep.mubr.f32.mxu0 %v2464
    %v2466 = vand.u32 %v286, 4294901760
    %2467 = vmatmul.mubr.f32.gmra.mrb[0].mxu0 %v2466
    %v2468 = vpop.f32.mrb[0].mxu0
    %v2469 = vadd.f32 %v1984, %v2468
    %v2470 = vpop.f32.mrb[0].mxu0
    %v2471 = vand.u32 %v289, 4294901760
    %2472 = vmatprep.mubr.f32.mxu0 %v2471
    %v2473 = vand.u32 %v288, 4294901760
    %2474 = vmatmul.mubr.f32.gmra.mrb[0].mxu0 %v2473
    %v2475 = vpop.f32.mrb[0].mxu0
    %v2476 = vadd.f32 %v1995, %v2475
    %v2477 = vpop.f32.mrb[0].mxu0
    %v2478 = vand.u32 %v291, 4294901760
    %2479 = vmatprep.mubr.f32.mxu0 %v2478
    %v2480 = vand.u32 %v290, 4294901760
    %2481 = vmatmul.mubr.f32.gmra.mrb[0].mxu0 %v2480
    %v2482 = vpop.f32.mrb[0].mxu0
    %v2483 = vadd.f32 %v2006, %v2482
    %v2484 = vpop.f32.mrb[0].mxu0
    %v2485 = vand.u32 %v293, 4294901760
    %2486 = vmatprep.mubr.f32.mxu0 %v2485
    %v2487 = vand.u32 %v292, 4294901760
    %2488 = vmatmul.mubr.f32.gmra.mrb[0].mxu0 %v2487
    %v2489 = vpop.f32.mrb[0].mxu0
    %v2490 = vadd.f32 %v2017, %v2489
    %v2491 = vpop.f32.mrb[0].mxu0
    %v2492 = vand.u32 %v295, 4294901760
    %2493 = vmatprep.mubr.f32.mxu0 %v2492
    %v2494 = vand.u32 %v294, 4294901760
    %2495 = vmatmul.mubr.f32.gmra.mrb[0].mxu0 %v2494
    %v2496 = vpop.f32.mrb[0].mxu0
    %v2497 = vadd.f32 %v2028, %v2496
    %v2498 = vpop.f32.mrb[0].mxu0
    %v2499 = vand.u32 %v297, 4294901760
    %2500 = vmatprep.mubr.f32.mxu0 %v2499
    %v2501 = vand.u32 %v296, 4294901760
    %2502 = vmatmul.mubr.f32.gmra.mrb[0].mxu0 %v2501
    %v2503 = vpop.f32.mrb[0].mxu0
    %v2504 = vadd.f32 %v2039, %v2503
    %v2505 = vpop.f32.mrb[0].mxu0
    %v2506 = vand.u32 %v299, 4294901760
    %2507 = vmatprep.mubr.f32.mxu0 %v2506
    %v2508 = vand.u32 %v298, 4294901760
    %2509 = vmatmul.mubr.f32.gmra.mrb[0].mxu0 %v2508
    %v2510 = vpop.f32.mrb[0].mxu0
    %v2511 = vadd.f32 %v2050, %v2510
    %v2512 = vpop.f32.mrb[0].mxu0
    %v2513 = vand.u32 %v301, 4294901760
    %2514 = vmatprep.mubr.f32.mxu0 %v2513
    %v2515 = vand.u32 %v300, 4294901760
    %2516 = vmatmul.mubr.f32.gmra.mrb[0].mxu0 %v2515
    %v2517 = vpop.f32.mrb[0].mxu0
    %v2518 = vadd.f32 %v2061, %v2517
    %v2519 = vpop.f32.mrb[0].mxu0
    %v2520 = vand.u32 %v303, 4294901760
    %2521 = vmatprep.mubr.f32.mxu0 %v2520
    %v2522 = vand.u32 %v302, 4294901760
    %2523 = vmatmul.mubr.f32.gmra.mrb[0].mxu0 %v2522
    %v2524 = vpop.f32.mrb[0].mxu0
    %v2525 = vadd.f32 %v2072, %v2524
    %v2526 = vpop.f32.mrb[0].mxu0
    %v2527 = vand.u32 %v305, 4294901760
    %2528 = vmatprep.mubr.f32.mxu0 %v2527
    %v2529 = vand.u32 %v304, 4294901760
    %2530 = vmatmul.mubr.f32.gmra.mrb[0].mxu0 %v2529
    %v2531 = vpop.f32.mrb[0].mxu0
    %v2532 = vadd.f32 %v2083, %v2531
    %v2533 = vpop.f32.mrb[0].mxu0
    %v2534 = vand.u32 %v307, 4294901760
    %2535 = vmatprep.mubr.f32.mxu0 %v2534
    %v2536 = vand.u32 %v306, 4294901760
    %2537 = vmatmul.mubr.f32.gmra.mrb[0].mxu0 %v2536
    %v2538 = vpop.f32.mrb[0].mxu0
    %v2539 = vadd.f32 %v2094, %v2538
    %v2540 = vpop.f32.mrb[0].mxu0
    %v2541 = vand.u32 %v309, 4294901760
    %2542 = vmatprep.mubr.f32.mxu0 %v2541
    %v2543 = vand.u32 %v308, 4294901760
    %2544 = vmatmul.mubr.f32.gmra.mrb[0].mxu0 %v2543
    %v2545 = vpop.f32.mrb[0].mxu0
    %v2546 = vadd.f32 %v2105, %v2545
    %v2547 = vpop.f32.mrb[0].mxu0
    %v2548 = vand.u32 %v311, 4294901760
    %2549 = vmatprep.mubr.f32.mxu0 %v2548
    %v2550 = vand.u32 %v310, 4294901760
    %2551 = vmatmul.mubr.f32.gmra.mrb[0].mxu0 %v2550
    %v2552 = vpop.f32.mrb[0].mxu0
    %v2553 = vadd.f32 %v2116, %v2552
    %v2554 = vpop.f32.mrb[0].mxu0
    %v2555 = vand.u32 %v313, 4294901760
    %2556 = vmatprep.mubr.f32.mxu0 %v2555
    %v2557 = vand.u32 %v312, 4294901760
    %2558 = vmatmul.mubr.f32.gmra.mrb[0].mxu0 %v2557
    %v2559 = vpop.f32.mrb[0].mxu0
    %v2560 = vadd.f32 %v2127, %v2559
    %v2561 = vpop.f32.mrb[0].mxu0
    %v2562 = vand.u32 %v315, 4294901760
    %2563 = vmatprep.mubr.f32.mxu0 %v2562
    %v2564 = vand.u32 %v314, 4294901760
    %2565 = vmatmul.mubr.f32.gmra.mrb[0].mxu0 %v2564
    %v2566 = vpop.f32.mrb[0].mxu0
    %v2567 = vadd.f32 %v2138, %v2566
    %v2568 = vpop.f32.mrb[0].mxu0
    %v2569 = vand.u32 %v317, 4294901760
    %2570 = vmatprep.mubr.f32.mxu0 %v2569
    %v2571 = vand.u32 %v316, 4294901760
    %2572 = vmatmul.mubr.f32.gmra.mrb[0].mxu0 %v2571
    %v2573 = vpop.f32.mrb[0].mxu0
    %v2574 = vadd.f32 %v2149, %v2573
    %v2575 = vpop.f32.mrb[0].mxu0
    %v2576 = vand.u32 %v319, 4294901760
    %2577 = vmatprep.mubr.f32.mxu0 %v2576
    %v2578 = vand.u32 %v318, 4294901760
    %2579 = vmatmul.mubr.f32.gmra.mrb[0].mxu0 %v2578
    %v2580 = vpop.f32.mrb[0].mxu0
    %v2581 = vadd.f32 %v2160, %v2580
    %v2582 = vpop.f32.mrb[0].mxu0
    %v2583 = vand.u32 %v321, 4294901760
    %2584 = vmatprep.mubr.f32.mxu0 %v2583
    %v2585 = vand.u32 %v320, 4294901760
    %2586 = vmatmul.mubr.f32.gmra.mrb[0].mxu0 %v2585
    %v2587 = vpop.f32.mrb[0].mxu0
    %v2588 = vadd.f32 %v2171, %v2587
    %v2589 = vpop.f32.mrb[0].mxu0
    %v2590 = vand.u32 %v323, 4294901760
    %2591 = vmatprep.mubr.f32.mxu0 %v2590
    %v2592 = vand.u32 %v322, 4294901760
    %2593 = vmatmul.mubr.f32.gmra.mrb[0].mxu0 %v2592
    %v2594 = vpop.f32.mrb[0].mxu0
    %v2595 = vadd.f32 %v2182, %v2594
    %v2596 = vpop.f32.mrb[0].mxu0
    %v2597 = vand.u32 %v325, 4294901760
    %2598 = vmatprep.mubr.f32.mxu0 %v2597
    %v2599 = vand.u32 %v324, 4294901760
    %2600 = vmatmul.mubr.f32.gmra.mrb[0].mxu0 %v2599
    %v2601 = vpop.f32.mrb[0].mxu0
    %v2602 = vadd.f32 %v2193, %v2601
    %v2603 = vpop.f32.mrb[0].mxu0
    %v2604 = vand.u32 %v327, 4294901760
    %2605 = vmatprep.mubr.f32.mxu0 %v2604
    %v2606 = vand.u32 %v326, 4294901760
    %2607 = vmatmul.mubr.f32.gmra.mrb[0].mxu0 %v2606
    %v2608 = vpop.f32.mrb[0].mxu0
    %v2609 = vadd.f32 %v2204, %v2608
    %v2610 = vpop.f32.mrb[0].mxu0
    %v2611 = vand.u32 %v329, 4294901760
    %2612 = vmatprep.mubr.f32.mxu0 %v2611
    %v2613 = vand.u32 %v328, 4294901760
    %2614 = vmatmul.mubr.f32.gmra.mrb[0].mxu0 %v2613
    %v2615 = vpop.f32.mrb[0].mxu0
    %v2616 = vadd.f32 %v2215, %v2615
    %v2617 = vpop.f32.mrb[0].mxu0
    %v2618 = vand.u32 %v331, 4294901760
    %2619 = vmatprep.mubr.f32.mxu0 %v2618
    %v2620 = vand.u32 %v330, 4294901760
    %2621 = vmatmul.mubr.f32.gmra.mrb[0].mxu0 %v2620
    %v2622 = vpop.f32.mrb[0].mxu0
    %v2623 = vadd.f32 %v2226, %v2622
    %v2624 = vpop.f32.mrb[0].mxu0
    %v2625 = vand.u32 %v333, 4294901760
    %2626 = vmatprep.mubr.f32.mxu0 %v2625
    %v2627 = vand.u32 %v332, 4294901760
    %2628 = vmatmul.mubr.f32.gmra.mrb[0].mxu0 %v2627
    %v2629 = vpop.f32.mrb[0].mxu0
    %v2630 = vadd.f32 %v2237, %v2629
    %v2631 = vpop.f32.mrb[0].mxu0
    %v2632 = vand.u32 %v335, 4294901760
    %2633 = vmatprep.mubr.f32.mxu0 %v2632
    %v2634 = vand.u32 %v334, 4294901760
    %2635 = vmatmul.mubr.f32.gmra.mrb[0].mxu0 %v2634
    %v2636 = vpop.f32.mrb[0].mxu0
    %v2637 = vadd.f32 %v2248, %v2636
    %v2638 = vpop.f32.mrb[0].mxu0
    %v2639 = vand.u32 %v337, 4294901760
    %2640 = vmatprep.mubr.f32.mxu0 %v2639
    %v2641 = vand.u32 %v336, 4294901760
    %2642 = vmatmul.mubr.f32.gmra.mrb[0].mxu0 %v2641
    %v2643 = vpop.f32.mrb[0].mxu0
    %v2644 = vadd.f32 %v2259, %v2643
    %v2645 = vpop.f32.mrb[0].mxu0
    %2646 = vdwg.mxu0
    %2647 = vmatprep.subr.mxu0 0.0
    %v2648 = vand.u32 %v338, 4294901760
    %2649 = vmatpush1.msra.mxu0 %v2648
    %2650 = vmatprep.subr.mxu0 0.0
    %v2651 = vand.u32 %v339, 4294901760
    %2652 = vmatpush1.msra.mxu0 %v2651
    %2653 = vmatprep.subr.mxu0 0.0
    %v2654 = vand.u32 %v340, 4294901760
    %2655 = vmatpush1.msra.mxu0 %v2654
    %2656 = vmatprep.subr.mxu0 0.0
    %v2657 = vand.u32 %v341, 4294901760
    %2658 = vmatpush1.msra.mxu0 %v2657
    %2659 = vmatprep.subr.mxu0 0.0
    %v2660 = vand.u32 %v342, 4294901760
    %2661 = vmatpush1.msra.mxu0 %v2660
    %2662 = vmatprep.subr.mxu0 0.0
    %v2663 = vand.u32 %v343, 4294901760
    %2664 = vmatpush1.msra.mxu0 %v2663
    %2665 = vmatprep.subr.mxu0 0.0
    %v2666 = vand.u32 %v344, 4294901760
    %2667 = vmatpush1.msra.mxu0 %v2666
    %2668 = vmatprep.subr.mxu0 0.0
    %v2669 = vand.u32 %v345, 4294901760
    %2670 = vmatpush1.msra.mxu0 %v2669
    %2671 = vmatprep.subr.mxu0 0.0
    %v2672 = vand.u32 %v346, 4294901760
    %2673 = vmatpush1.msra.mxu0 %v2672
    %2674 = vmatprep.subr.mxu0 0.0
    %v2675 = vand.u32 %v347, 4294901760
    %2676 = vmatpush1.msra.mxu0 %v2675
    %2677 = vmatprep.subr.mxu0 0.0
    %v2678 = vand.u32 %v348, 4294901760
    %2679 = vmatpush1.msra.mxu0 %v2678
    %2680 = vmatprep.subr.mxu0 0.0
    %v2681 = vand.u32 %v349, 4294901760
    %2682 = vmatpush1.msra.mxu0 %v2681
    %2683 = vmatprep.subr.mxu0 0.0
    %v2684 = vand.u32 %v350, 4294901760
    %2685 = vmatpush1.msra.mxu0 %v2684
    %2686 = vmatprep.subr.mxu0 0.0
    %v2687 = vand.u32 %v351, 4294901760
    %2688 = vmatpush1.msra.mxu0 %v2687
    %2689 = vmatprep.subr.mxu0 0.0
    %v2690 = vand.u32 %v352, 4294901760
    %2691 = vmatpush1.msra.mxu0 %v2690
    %2692 = vmatprep.subr.mxu0 0.0
    %v2693 = vand.u32 %v353, 4294901760
    %2694 = vmatpush1.msra.mxu0 %v2693
    %2695 = vmatprep.subr.mxu0 0.0
    %v2696 = vand.u32 %v354, 4294901760
    %2697 = vmatpush1.msra.mxu0 %v2696
    %2698 = vmatprep.subr.mxu0 0.0
    %v2699 = vand.u32 %v355, 4294901760
    %2700 = vmatpush1.msra.mxu0 %v2699
    %2701 = vmatprep.subr.mxu0 0.0
    %v2702 = vand.u32 %v356, 4294901760
    %2703 = vmatpush1.msra.mxu0 %v2702
    %2704 = vmatprep.subr.mxu0 0.0
    %v2705 = vand.u32 %v357, 4294901760
    %2706 = vmatpush1.msra.mxu0 %v2705
    %2707 = vmatprep.subr.mxu0 0.0
    %v2708 = vand.u32 %v358, 4294901760
    %2709 = vmatpush1.msra.mxu0 %v2708
    %2710 = vmatprep.subr.mxu0 0.0
    %v2711 = vand.u32 %v359, 4294901760
    %2712 = vmatpush1.msra.mxu0 %v2711
    %2713 = vmatprep.subr.mxu0 0.0
    %v2714 = vand.u32 %v360, 4294901760
    %2715 = vmatpush1.msra.mxu0 %v2714
    %2716 = vmatprep.subr.mxu0 0.0
    %v2717 = vand.u32 %v361, 4294901760
    %2718 = vmatpush1.msra.mxu0 %v2717
    %2719 = vmatprep.subr.mxu0 0.0
    %v2720 = vand.u32 %v362, 4294901760
    %2721 = vmatpush1.msra.mxu0 %v2720
    %2722 = vmatprep.subr.mxu0 0.0
    %v2723 = vand.u32 %v363, 4294901760
    %2724 = vmatpush1.msra.mxu0 %v2723
    %2725 = vmatprep.subr.mxu0 0.0
    %v2726 = vand.u32 %v364, 4294901760
    %2727 = vmatpush1.msra.mxu0 %v2726
    %2728 = vmatprep.subr.mxu0 0.0
    %v2729 = vand.u32 %v365, 4294901760
    %2730 = vmatpush1.msra.mxu0 %v2729
    %2731 = vmatprep.subr.mxu0 0.0
    %v2732 = vand.u32 %v366, 4294901760
    %2733 = vmatpush1.msra.mxu0 %v2732
    %2734 = vmatprep.subr.mxu0 0.0
    %v2735 = vand.u32 %v367, 4294901760
    %2736 = vmatpush1.msra.mxu0 %v2735
    %2737 = vmatprep.subr.mxu0 0.0
    %v2738 = vand.u32 %v368, 4294901760
    %2739 = vmatpush1.msra.mxu0 %v2738
    %2740 = vmatprep.subr.mxu0 0.0
    %v2741 = vand.u32 %v369, 4294901760
    %2742 = vmatpush1.msra.mxu0 %v2741
    %v2743 = vand.u32 %v275, 4294901760
    %2744 = vmatprep.mubr.f32.mxu0 %v2743
    %v2745 = vand.u32 %v274, 4294901760
    %2746 = vmatmul.mubr.f32.gmra.mrb[0].mxu0 %v2745
    %v2747 = vpop.f32.mrb[0].mxu0
    %v2748 = vadd.f32 %v2427, %v2747
    %v2749 = vpop.f32.mrb[0].mxu0
    %v2750 = vand.u32 %v277, 4294901760
    %2751 = vmatprep.mubr.f32.mxu0 %v2750
    %v2752 = vand.u32 %v276, 4294901760
    %2753 = vmatmul.mubr.f32.gmra.mrb[0].mxu0 %v2752
    %v2754 = vpop.f32.mrb[0].mxu0
    %v2755 = vadd.f32 %v2434, %v2754
    %v2756 = vpop.f32.mrb[0].mxu0
    %v2757 = vand.u32 %v279, 4294901760
    %2758 = vmatprep.mubr.f32.mxu0 %v2757
    %v2759 = vand.u32 %v278, 4294901760
    %2760 = vmatmul.mubr.f32.gmra.mrb[0].mxu0 %v2759
    %v2761 = vpop.f32.mrb[0].mxu0
    %v2762 = vadd.f32 %v2441, %v2761
    %v2763 = vpop.f32.mrb[0].mxu0
    %v2764 = vand.u32 %v281, 4294901760
    %2765 = vmatprep.mubr.f32.mxu0 %v2764
    %v2766 = vand.u32 %v280, 4294901760
    %2767 = vmatmul.mubr.f32.gmra.mrb[0].mxu0 %v2766
    %v2768 = vpop.f32.mrb[0].mxu0
    %v2769 = vadd.f32 %v2448, %v2768
    %v2770 = vpop.f32.mrb[0].mxu0
    %v2771 = vand.u32 %v283, 4294901760
    %2772 = vmatprep.mubr.f32.mxu0 %v2771
    %v2773 = vand.u32 %v282, 4294901760
    %2774 = vmatmul.mubr.f32.gmra.mrb[0].mxu0 %v2773
    %v2775 = vpop.f32.mrb[0].mxu0
    %v2776 = vadd.f32 %v2455, %v2775
    %v2777 = vpop.f32.mrb[0].mxu0
    %v2778 = vand.u32 %v285, 4294901760
    %2779 = vmatprep.mubr.f32.mxu0 %v2778
    %v2780 = vand.u32 %v284, 4294901760
    %2781 = vmatmul.mubr.f32.gmra.mrb[0].mxu0 %v2780
    %v2782 = vpop.f32.mrb[0].mxu0
    %v2783 = vadd.f32 %v2462, %v2782
    %v2784 = vpop.f32.mrb[0].mxu0
    %v2785 = vand.u32 %v287, 4294901760
    %2786 = vmatprep.mubr.f32.mxu0 %v2785
    %v2787 = vand.u32 %v286, 4294901760
    %2788 = vmatmul.mubr.f32.gmra.mrb[0].mxu0 %v2787
    %v2789 = vpop.f32.mrb[0].mxu0
    %v2790 = vadd.f32 %v2469, %v2789
    %v2791 = vpop.f32.mrb[0].mxu0
    %v2792 = vand.u32 %v289, 4294901760
    %2793 = vmatprep.mubr.f32.mxu0 %v2792
    %v2794 = vand.u32 %v288, 4294901760
    %2795 = vmatmul.mubr.f32.gmra.mrb[0].mxu0 %v2794
    %v2796 = vpop.f32.mrb[0].mxu0
    %v2797 = vadd.f32 %v2476, %v2796
    %v2798 = vpop.f32.mrb[0].mxu0
    %v2799 = vand.u32 %v291, 4294901760
    %2800 = vmatprep.mubr.f32.mxu0 %v2799
    %v2801 = vand.u32 %v290, 4294901760
    %2802 = vmatmul.mubr.f32.gmra.mrb[0].mxu0 %v2801
    %v2803 = vpop.f32.mrb[0].mxu0
    %v2804 = vadd.f32 %v2483, %v2803
    %v2805 = vpop.f32.mrb[0].mxu0
    %v2806 = vand.u32 %v293, 4294901760
    %2807 = vmatprep.mubr.f32.mxu0 %v2806
    %v2808 = vand.u32 %v292, 4294901760
    %2809 = vmatmul.mubr.f32.gmra.mrb[0].mxu0 %v2808
    %v2810 = vpop.f32.mrb[0].mxu0
    %v2811 = vadd.f32 %v2490, %v2810
    %v2812 = vpop.f32.mrb[0].mxu0
    %v2813 = vand.u32 %v295, 4294901760
    %2814 = vmatprep.mubr.f32.mxu0 %v2813
    %v2815 = vand.u32 %v294, 4294901760
    %2816 = vmatmul.mubr.f32.gmra.mrb[0].mxu0 %v2815
    %v2817 = vpop.f32.mrb[0].mxu0
    %v2818 = vadd.f32 %v2497, %v2817
    %v2819 = vpop.f32.mrb[0].mxu0
    %v2820 = vand.u32 %v297, 4294901760
    %2821 = vmatprep.mubr.f32.mxu0 %v2820
    %v2822 = vand.u32 %v296, 4294901760
    %2823 = vmatmul.mubr.f32.gmra.mrb[0].mxu0 %v2822
    %v2824 = vpop.f32.mrb[0].mxu0
    %v2825 = vadd.f32 %v2504, %v2824
    %v2826 = vpop.f32.mrb[0].mxu0
    %v2827 = vand.u32 %v299, 4294901760
    %2828 = vmatprep.mubr.f32.mxu0 %v2827
    %v2829 = vand.u32 %v298, 4294901760
    %2830 = vmatmul.mubr.f32.gmra.mrb[0].mxu0 %v2829
    %v2831 = vpop.f32.mrb[0].mxu0
    %v2832 = vadd.f32 %v2511, %v2831
    %v2833 = vpop.f32.mrb[0].mxu0
    %v2834 = vand.u32 %v301, 4294901760
    %2835 = vmatprep.mubr.f32.mxu0 %v2834
    %v2836 = vand.u32 %v300, 4294901760
    %2837 = vmatmul.mubr.f32.gmra.mrb[0].mxu0 %v2836
    %v2838 = vpop.f32.mrb[0].mxu0
    %v2839 = vadd.f32 %v2518, %v2838
    %v2840 = vpop.f32.mrb[0].mxu0
    %v2841 = vand.u32 %v303, 4294901760
    %2842 = vmatprep.mubr.f32.mxu0 %v2841
    %v2843 = vand.u32 %v302, 4294901760
    %2844 = vmatmul.mubr.f32.gmra.mrb[0].mxu0 %v2843
    %v2845 = vpop.f32.mrb[0].mxu0
    %v2846 = vadd.f32 %v2525, %v2845
    %v2847 = vpop.f32.mrb[0].mxu0
    %v2848 = vand.u32 %v305, 4294901760
    %2849 = vmatprep.mubr.f32.mxu0 %v2848
    %v2850 = vand.u32 %v304, 4294901760
    %2851 = vmatmul.mubr.f32.gmra.mrb[0].mxu0 %v2850
    %v2852 = vpop.f32.mrb[0].mxu0
    %v2853 = vadd.f32 %v2532, %v2852
    %v2854 = vpop.f32.mrb[0].mxu0
    %v2855 = vand.u32 %v307, 4294901760
    %2856 = vmatprep.mubr.f32.mxu0 %v2855
    %v2857 = vand.u32 %v306, 4294901760
    %2858 = vmatmul.mubr.f32.gmra.mrb[0].mxu0 %v2857
    %v2859 = vpop.f32.mrb[0].mxu0
    %v2860 = vadd.f32 %v2539, %v2859
    %v2861 = vpop.f32.mrb[0].mxu0
    %v2862 = vand.u32 %v309, 4294901760
    %2863 = vmatprep.mubr.f32.mxu0 %v2862
    %v2864 = vand.u32 %v308, 4294901760
    %2865 = vmatmul.mubr.f32.gmra.mrb[0].mxu0 %v2864
    %v2866 = vpop.f32.mrb[0].mxu0
    %v2867 = vadd.f32 %v2546, %v2866
    %v2868 = vpop.f32.mrb[0].mxu0
    %v2869 = vand.u32 %v311, 4294901760
    %2870 = vmatprep.mubr.f32.mxu0 %v2869
    %v2871 = vand.u32 %v310, 4294901760
    %2872 = vmatmul.mubr.f32.gmra.mrb[0].mxu0 %v2871
    %v2873 = vpop.f32.mrb[0].mxu0
    %v2874 = vadd.f32 %v2553, %v2873
    %v2875 = vpop.f32.mrb[0].mxu0
    %v2876 = vand.u32 %v313, 4294901760
    %2877 = vmatprep.mubr.f32.mxu0 %v2876
    %v2878 = vand.u32 %v312, 4294901760
    %2879 = vmatmul.mubr.f32.gmra.mrb[0].mxu0 %v2878
    %v2880 = vpop.f32.mrb[0].mxu0
    %v2881 = vadd.f32 %v2560, %v2880
    %v2882 = vpop.f32.mrb[0].mxu0
    %v2883 = vand.u32 %v315, 4294901760
    %2884 = vmatprep.mubr.f32.mxu0 %v2883
    %v2885 = vand.u32 %v314, 4294901760
    %2886 = vmatmul.mubr.f32.gmra.mrb[0].mxu0 %v2885
    %v2887 = vpop.f32.mrb[0].mxu0
    %v2888 = vadd.f32 %v2567, %v2887
    %v2889 = vpop.f32.mrb[0].mxu0
    %v2890 = vand.u32 %v317, 4294901760
    %2891 = vmatprep.mubr.f32.mxu0 %v2890
    %v2892 = vand.u32 %v316, 4294901760
    %2893 = vmatmul.mubr.f32.gmra.mrb[0].mxu0 %v2892
    %v2894 = vpop.f32.mrb[0].mxu0
    %v2895 = vadd.f32 %v2574, %v2894
    %v2896 = vpop.f32.mrb[0].mxu0
    %v2897 = vand.u32 %v319, 4294901760
    %2898 = vmatprep.mubr.f32.mxu0 %v2897
    %v2899 = vand.u32 %v318, 4294901760
    %2900 = vmatmul.mubr.f32.gmra.mrb[0].mxu0 %v2899
    %v2901 = vpop.f32.mrb[0].mxu0
    %v2902 = vadd.f32 %v2581, %v2901
    %v2903 = vpop.f32.mrb[0].mxu0
    %v2904 = vand.u32 %v321, 4294901760
    %2905 = vmatprep.mubr.f32.mxu0 %v2904
    %v2906 = vand.u32 %v320, 4294901760
    %2907 = vmatmul.mubr.f32.gmra.mrb[0].mxu0 %v2906
    %v2908 = vpop.f32.mrb[0].mxu0
    %v2909 = vadd.f32 %v2588, %v2908
    %v2910 = vpop.f32.mrb[0].mxu0
    %v2911 = vand.u32 %v323, 4294901760
    %2912 = vmatprep.mubr.f32.mxu0 %v2911
    %v2913 = vand.u32 %v322, 4294901760
    %2914 = vmatmul.mubr.f32.gmra.mrb[0].mxu0 %v2913
    %v2915 = vpop.f32.mrb[0].mxu0
    %v2916 = vadd.f32 %v2595, %v2915
    %v2917 = vpop.f32.mrb[0].mxu0
    %v2918 = vand.u32 %v325, 4294901760
    %2919 = vmatprep.mubr.f32.mxu0 %v2918
    %v2920 = vand.u32 %v324, 4294901760
    %2921 = vmatmul.mubr.f32.gmra.mrb[0].mxu0 %v2920
    %v2922 = vpop.f32.mrb[0].mxu0
    %v2923 = vadd.f32 %v2602, %v2922
    %v2924 = vpop.f32.mrb[0].mxu0
    %v2925 = vand.u32 %v327, 4294901760
    %2926 = vmatprep.mubr.f32.mxu0 %v2925
    %v2927 = vand.u32 %v326, 4294901760
    %2928 = vmatmul.mubr.f32.gmra.mrb[0].mxu0 %v2927
    %v2929 = vpop.f32.mrb[0].mxu0
    %v2930 = vadd.f32 %v2609, %v2929
    %v2931 = vpop.f32.mrb[0].mxu0
    %v2932 = vand.u32 %v329, 4294901760
    %2933 = vmatprep.mubr.f32.mxu0 %v2932
    %v2934 = vand.u32 %v328, 4294901760
    %2935 = vmatmul.mubr.f32.gmra.mrb[0].mxu0 %v2934
    %v2936 = vpop.f32.mrb[0].mxu0
    %v2937 = vadd.f32 %v2616, %v2936
    %v2938 = vpop.f32.mrb[0].mxu0
    %v2939 = vand.u32 %v331, 4294901760
    %2940 = vmatprep.mubr.f32.mxu0 %v2939
    %v2941 = vand.u32 %v330, 4294901760
    %2942 = vmatmul.mubr.f32.gmra.mrb[0].mxu0 %v2941
    %v2943 = vpop.f32.mrb[0].mxu0
    %v2944 = vadd.f32 %v2623, %v2943
    %v2945 = vpop.f32.mrb[0].mxu0
    %v2946 = vand.u32 %v333, 4294901760
    %2947 = vmatprep.mubr.f32.mxu0 %v2946
    %v2948 = vand.u32 %v332, 4294901760
    %2949 = vmatmul.mubr.f32.gmra.mrb[0].mxu0 %v2948
    %v2950 = vpop.f32.mrb[0].mxu0
    %v2951 = vadd.f32 %v2630, %v2950
    %v2952 = vpop.f32.mrb[0].mxu0
    %v2953 = vand.u32 %v335, 4294901760
    %2954 = vmatprep.mubr.f32.mxu0 %v2953
    %v2955 = vand.u32 %v334, 4294901760
    %2956 = vmatmul.mubr.f32.gmra.mrb[0].mxu0 %v2955
    %v2957 = vpop.f32.mrb[0].mxu0
    %v2958 = vadd.f32 %v2637, %v2957
    %v2959 = vpop.f32.mrb[0].mxu0
    %v2960 = vand.u32 %v337, 4294901760
    %2961 = vmatprep.mubr.f32.mxu0 %v2960
    %v2962 = vand.u32 %v336, 4294901760
    %2963 = vmatmul.mubr.f32.gmra.mrb[0].mxu0 %v2962
    %v2964 = vpop.f32.mrb[0].mxu0
    %v2965 = vadd.f32 %v2644, %v2964
    %v2966 = vpop.f32.mrb[0].mxu0
    %2967 = vdwg.mxu0
    %2968 = vst [vmem:[#allocation2] sm:$0xff] %v2748
    %2969 = vst [vmem:[#allocation2 + $0x8] sm:$0xff] %v2755
    %2970 = vst [vmem:[#allocation2 + $0x10] sm:$0xff] %v2762
    %2971 = vst [vmem:[#allocation2 + $0x18] sm:$0xff] %v2769
    %2972 = vst [vmem:[#allocation2 + $0x20] sm:$0xff] %v2776
    %2973 = vst [vmem:[#allocation2 + $0x28] sm:$0xff] %v2783
    %2974 = vst [vmem:[#allocation2 + $0x30] sm:$0xff] %v2790
    %2975 = vst [vmem:[#allocation2 + $0x38] sm:$0xff] %v2797
    %2976 = vst [vmem:[#allocation2 + $0x40] sm:$0xff] %v2804
    %2977 = vst [vmem:[#allocation2 + $0x48] sm:$0xff] %v2811
    %2978 = vst [vmem:[#allocation2 + $0x50] sm:$0xff] %v2818
    %2979 = vst [vmem:[#allocation2 + $0x58] sm:$0xff] %v2825
    %2980 = vst [vmem:[#allocation2 + $0x60] sm:$0xff] %v2832
    %2981 = vst [vmem:[#allocation2 + $0x68] sm:$0xff] %v2839
    %2982 = vst [vmem:[#allocation2 + $0x70] sm:$0xff] %v2846
    %2983 = vst [vmem:[#allocation2 + $0x78] sm:$0xff] %v2853
    %2984 = vst [vmem:[#allocation2 + $0x80] sm:$0xff] %v2860
    %2985 = vst [vmem:[#allocation2 + $0x88] sm:$0xff] %v2867
    %2986 = vst [vmem:[#allocation2 + $0x90] sm:$0xff] %v2874
    %2987 = vst [vmem:[#allocation2 + $0x98] sm:$0xff] %v2881
    %2988 = vst [vmem:[#allocation2 + $0xa0] sm:$0xff] %v2888
    %2989 = vst [vmem:[#allocation2 + $0xa8] sm:$0xff] %v2895
    %2990 = vst [vmem:[#allocation2 + $0xb0] sm:$0xff] %v2902
    %2991 = vst [vmem:[#allocation2 + $0xb8] sm:$0xff] %v2909
    %2992 = vst [vmem:[#allocation2 + $0xc0] sm:$0xff] %v2916
    %2993 = vst [vmem:[#allocation2 + $0xc8] sm:$0xff] %v2923
    %2994 = vst [vmem:[#allocation2 + $0xd0] sm:$0xff] %v2930
    %2995 = vst [vmem:[#allocation2 + $0xd8] sm:$0xff] %v2937
    %2996 = vst [vmem:[#allocation2 + $0xe0] sm:$0xff] %v2944
    %2997 = vst [vmem:[#allocation2 + $0xe8] sm:$0xff] %v2951
    %2998 = vst [vmem:[#allocation2 + $0xf0] sm:$0xff] %v2958
    %2999 = vst [vmem:[#allocation2 + $0xf8] sm:$0xff] %v2965
    %v3000 = vrot.slane %v2748, 4
    %v3001 = vadd.f32 %v2748, %v3000
    %v3002 = vrot.slane %v3001, 2
    %v3003 = vadd.f32 %v3001, %v3002
    %v3004 = vrot.slane %v3003, 1
    %v3005 = vadd.f32 %v3003, %v3004
    %v3006 = vrot.slane %v2755, 4
    %v3007 = vadd.f32 %v2755, %v3006
    %v3008 = vrot.slane %v3007, 2
    %v3009 = vadd.f32 %v3007, %v3008
    %v3010 = vrot.slane %v3009, 1
    %v3011 = vadd.f32 %v3009, %v3010
    %v3012 = vrot.slane %v2762, 4
    %v3013 = vadd.f32 %v2762, %v3012
    %v3014 = vrot.slane %v3013, 2
    %v3015 = vadd.f32 %v3013, %v3014
    %v3016 = vrot.slane %v3015, 1
    %v3017 = vadd.f32 %v3015, %v3016
    %v3018 = vrot.slane %v2769, 4
    %v3019 = vadd.f32 %v2769, %v3018
    %v3020 = vrot.slane %v3019, 2
    %v3021 = vadd.f32 %v3019, %v3020
    %v3022 = vrot.slane %v3021, 1
    %v3023 = vadd.f32 %v3021, %v3022
    %v3024 = vrot.slane %v2776, 4
    %v3025 = vadd.f32 %v2776, %v3024
    %v3026 = vrot.slane %v3025, 2
    %v3027 = vadd.f32 %v3025, %v3026
    %v3028 = vrot.slane %v3027, 1
    %v3029 = vadd.f32 %v3027, %v3028
    %v3030 = vrot.slane %v2783, 4
    %v3031 = vadd.f32 %v2783, %v3030
    %v3032 = vrot.slane %v3031, 2
    %v3033 = vadd.f32 %v3031, %v3032
    %v3034 = vrot.slane %v3033, 1
    %v3035 = vadd.f32 %v3033, %v3034
    %v3036 = vrot.slane %v2790, 4
    %v3037 = vadd.f32 %v2790, %v3036
    %v3038 = vrot.slane %v3037, 2
    %v3039 = vadd.f32 %v3037, %v3038
    %v3040 = vrot.slane %v3039, 1
    %v3041 = vadd.f32 %v3039, %v3040
    %v3042 = vrot.slane %v2797, 4
    %v3043 = vadd.f32 %v2797, %v3042
    %v3044 = vrot.slane %v3043, 2
    %v3045 = vadd.f32 %v3043, %v3044
    %v3046 = vrot.slane %v3045, 1
    %v3047 = vadd.f32 %v3045, %v3046
    %v3048 = vrot.slane %v2804, 4
    %v3049 = vadd.f32 %v2804, %v3048
    %v3050 = vrot.slane %v3049, 2
    %v3051 = vadd.f32 %v3049, %v3050
    %v3052 = vrot.slane %v3051, 1
    %v3053 = vadd.f32 %v3051, %v3052
    %v3054 = vrot.slane %v2811, 4
    %v3055 = vadd.f32 %v2811, %v3054
    %v3056 = vrot.slane %v3055, 2
    %v3057 = vadd.f32 %v3055, %v3056
    %v3058 = vrot.slane %v3057, 1
    %v3059 = vadd.f32 %v3057, %v3058
    %v3060 = vrot.slane %v2818, 4
    %v3061 = vadd.f32 %v2818, %v3060
    %v3062 = vrot.slane %v3061, 2
    %v3063 = vadd.f32 %v3061, %v3062
    %v3064 = vrot.slane %v3063, 1
    %v3065 = vadd.f32 %v3063, %v3064
    %v3066 = vrot.slane %v2825, 4
    %v3067 = vadd.f32 %v2825, %v3066
    %v3068 = vrot.slane %v3067, 2
    %v3069 = vadd.f32 %v3067, %v3068
    %v3070 = vrot.slane %v3069, 1
    %v3071 = vadd.f32 %v3069, %v3070
    %v3072 = vrot.slane %v2832, 4
    %v3073 = vadd.f32 %v2832, %v3072
    %v3074 = vrot.slane %v3073, 2
    %v3075 = vadd.f32 %v3073, %v3074
    %v3076 = vrot.slane %v3075, 1
    %v3077 = vadd.f32 %v3075, %v3076
    %v3078 = vrot.slane %v2839, 4
    %v3079 = vadd.f32 %v2839, %v3078
    %v3080 = vrot.slane %v3079, 2
    %v3081 = vadd.f32 %v3079, %v3080
    %v3082 = vrot.slane %v3081, 1
    %v3083 = vadd.f32 %v3081, %v3082
    %v3084 = vrot.slane %v2846, 4
    %v3085 = vadd.f32 %v2846, %v3084
    %v3086 = vrot.slane %v3085, 2
    %v3087 = vadd.f32 %v3085, %v3086
    %v3088 = vrot.slane %v3087, 1
    %v3089 = vadd.f32 %v3087, %v3088
    %v3090 = vrot.slane %v2853, 4
    %v3091 = vadd.f32 %v2853, %v3090
    %v3092 = vrot.slane %v3091, 2
    %v3093 = vadd.f32 %v3091, %v3092
    %v3094 = vrot.slane %v3093, 1
    %v3095 = vadd.f32 %v3093, %v3094
    %v3096 = vrot.slane %v2860, 4
    %v3097 = vadd.f32 %v2860, %v3096
    %v3098 = vrot.slane %v3097, 2
    %v3099 = vadd.f32 %v3097, %v3098
    %v3100 = vrot.slane %v3099, 1
    %v3101 = vadd.f32 %v3099, %v3100
    %v3102 = vrot.slane %v2867, 4
    %v3103 = vadd.f32 %v2867, %v3102
    %v3104 = vrot.slane %v3103, 2
    %v3105 = vadd.f32 %v3103, %v3104
    %v3106 = vrot.slane %v3105, 1
    %v3107 = vadd.f32 %v3105, %v3106
    %v3108 = vrot.slane %v2874, 4
    %v3109 = vadd.f32 %v2874, %v3108
    %v3110 = vrot.slane %v3109, 2
    %v3111 = vadd.f32 %v3109, %v3110
    %v3112 = vrot.slane %v3111, 1
    %v3113 = vadd.f32 %v3111, %v3112
    %v3114 = vrot.slane %v2881, 4
    %v3115 = vadd.f32 %v2881, %v3114
    %v3116 = vrot.slane %v3115, 2
    %v3117 = vadd.f32 %v3115, %v3116
    %v3118 = vrot.slane %v3117, 1
    %v3119 = vadd.f32 %v3117, %v3118
    %v3120 = vrot.slane %v2888, 4
    %v3121 = vadd.f32 %v2888, %v3120
    %v3122 = vrot.slane %v3121, 2
    %v3123 = vadd.f32 %v3121, %v3122
    %v3124 = vrot.slane %v3123, 1
    %v3125 = vadd.f32 %v3123, %v3124
    %v3126 = vrot.slane %v2895, 4
    %v3127 = vadd.f32 %v2895, %v3126
    %v3128 = vrot.slane %v3127, 2
    %v3129 = vadd.f32 %v3127, %v3128
    %v3130 = vrot.slane %v3129, 1
    %v3131 = vadd.f32 %v3129, %v3130
    %v3132 = vrot.slane %v2902, 4
    %v3133 = vadd.f32 %v2902, %v3132
    %v3134 = vrot.slane %v3133, 2
    %v3135 = vadd.f32 %v3133, %v3134
    %v3136 = vrot.slane %v3135, 1
    %v3137 = vadd.f32 %v3135, %v3136
    %v3138 = vrot.slane %v2909, 4
    %v3139 = vadd.f32 %v2909, %v3138
    %v3140 = vrot.slane %v3139, 2
    %v3141 = vadd.f32 %v3139, %v3140
    %v3142 = vrot.slane %v3141, 1
    %v3143 = vadd.f32 %v3141, %v3142
    %v3144 = vrot.slane %v2916, 4
    %v3145 = vadd.f32 %v2916, %v3144
    %v3146 = vrot.slane %v3145, 2
    %v3147 = vadd.f32 %v3145, %v3146
    %v3148 = vrot.slane %v3147, 1
    %v3149 = vadd.f32 %v3147, %v3148
    %v3150 = vrot.slane %v2923, 4
    %v3151 = vadd.f32 %v2923, %v3150
    %v3152 = vrot.slane %v3151, 2
    %v3153 = vadd.f32 %v3151, %v3152
    %v3154 = vrot.slane %v3153, 1
    %v3155 = vadd.f32 %v3153, %v3154
    %v3156 = vrot.slane %v2930, 4
    %v3157 = vadd.f32 %v2930, %v3156
    %v3158 = vrot.slane %v3157, 2
    %v3159 = vadd.f32 %v3157, %v3158
    %v3160 = vrot.slane %v3159, 1
    %v3161 = vadd.f32 %v3159, %v3160
    %v3162 = vrot.slane %v2937, 4
    %v3163 = vadd.f32 %v2937, %v3162
    %v3164 = vrot.slane %v3163, 2
    %v3165 = vadd.f32 %v3163, %v3164
    %v3166 = vrot.slane %v3165, 1
    %v3167 = vadd.f32 %v3165, %v3166
    %v3168 = vrot.slane %v2944, 4
    %v3169 = vadd.f32 %v2944, %v3168
    %v3170 = vrot.slane %v3169, 2
    %v3171 = vadd.f32 %v3169, %v3170
    %v3172 = vrot.slane %v3171, 1
    %v3173 = vadd.f32 %v3171, %v3172
    %v3174 = vrot.slane %v2951, 4
    %v3175 = vadd.f32 %v2951, %v3174
    %v3176 = vrot.slane %v3175, 2
    %v3177 = vadd.f32 %v3175, %v3176
    %v3178 = vrot.slane %v3177, 1
    %v3179 = vadd.f32 %v3177, %v3178
    %v3180 = vrot.slane %v2958, 4
    %v3181 = vadd.f32 %v2958, %v3180
    %v3182 = vrot.slane %v3181, 2
    %v3183 = vadd.f32 %v3181, %v3182
    %v3184 = vrot.slane %v3183, 1
    %v3185 = vadd.f32 %v3183, %v3184
    %v3186 = vrot.slane %v2965, 4
    %v3187 = vadd.f32 %v2965, %v3186
    %v3188 = vrot.slane %v3187, 2
    %v3189 = vadd.f32 %v3187, %v3188
    %v3190 = vrot.slane %v3189, 1
    %v3191 = vadd.f32 %v3189, %v3190
    %v3192 = vmul.f32 %v3005, 0.125
    %v3193 = vmul.f32 %v3011, 0.125
    %v3194 = vmul.f32 %v3017, 0.125
    %v3195 = vmul.f32 %v3023, 0.125
    %v3196 = vmul.f32 %v3029, 0.125
    %v3197 = vmul.f32 %v3035, 0.125
    %v3198 = vmul.f32 %v3041, 0.125
    %v3199 = vmul.f32 %v3047, 0.125
    %v3200 = vmul.f32 %v3053, 0.125
    %v3201 = vmul.f32 %v3059, 0.125
    %v3202 = vmul.f32 %v3065, 0.125
    %v3203 = vmul.f32 %v3071, 0.125
    %v3204 = vmul.f32 %v3077, 0.125
    %v3205 = vmul.f32 %v3083, 0.125
    %v3206 = vmul.f32 %v3089, 0.125
    %v3207 = vmul.f32 %v3095, 0.125
    %v3208 = vmul.f32 %v3101, 0.125
    %v3209 = vmul.f32 %v3107, 0.125
    %v3210 = vmul.f32 %v3113, 0.125
    %v3211 = vmul.f32 %v3119, 0.125
    %v3212 = vmul.f32 %v3125, 0.125
    %v3213 = vmul.f32 %v3131, 0.125
    %v3214 = vmul.f32 %v3137, 0.125
    %v3215 = vmul.f32 %v3143, 0.125
    %v3216 = vmul.f32 %v3149, 0.125
    %v3217 = vmul.f32 %v3155, 0.125
    %v3218 = vmul.f32 %v3161, 0.125
    %v3219 = vmul.f32 %v3167, 0.125
    %v3220 = vmul.f32 %v3173, 0.125
    %v3221 = vmul.f32 %v3179, 0.125
    %v3222 = vmul.f32 %v3185, 0.125
    %v3223 = vmul.f32 %v3191, 0.125
    %vm3256 = vcmask 1041409
    %v3257 = vsel %vm3256, %v3193, %v3192
    %vm3258 = vcmask 1042434
    %v3259 = vsel %vm3258, %v3194, %v3257
    %vm3260 = vcmask 1043459
    %v3261 = vsel %vm3260, %v3195, %v3259
    %vm3262 = vcmask 1044484
    %v3263 = vsel %vm3262, %v3196, %v3261
    %vm3264 = vcmask 1045509
    %v3265 = vsel %vm3264, %v3197, %v3263
    %vm3266 = vcmask 1046534
    %v3267 = vsel %vm3266, %v3198, %v3265
    %vm3268 = vcmask 1047559
    %v3269 = vsel %vm3268, %v3199, %v3267
    %v3270 = vsel %vm3256, %v3201, %v3200
    %v3271 = vsel %vm3258, %v3202, %v3270
    %v3272 = vsel %vm3260, %v3203, %v3271
    %v3273 = vsel %vm3262, %v3204, %v3272
    %v3274 = vsel %vm3264, %v3205, %v3273
    %v3275 = vsel %vm3266, %v3206, %v3274
    %v3276 = vsel %vm3268, %v3207, %v3275
    %v3277 = vsel %vm3256, %v3209, %v3208
    %v3278 = vsel %vm3258, %v3210, %v3277
    %v3279 = vsel %vm3260, %v3211, %v3278
    %v3280 = vsel %vm3262, %v3212, %v3279
    %v3281 = vsel %vm3264, %v3213, %v3280
    %v3282 = vsel %vm3266, %v3214, %v3281
    %v3283 = vsel %vm3268, %v3215, %v3282
    %v3284 = vsel %vm3256, %v3217, %v3216
    %v3285 = vsel %vm3258, %v3218, %v3284
    %v3286 = vsel %vm3260, %v3219, %v3285
    %v3287 = vsel %vm3262, %v3220, %v3286
    %v3288 = vsel %vm3264, %v3221, %v3287
    %v3289 = vsel %vm3266, %v3222, %v3288
    %v3290 = vsel %vm3268, %v3223, %v3289
    %3295 = vst [vmem:[#allocation4] sm:$0xff] %v3269
    %3296 = vst [vmem:[#allocation4 + $0x8] sm:$0xff] %v3276
    %3297 = vst [vmem:[#allocation4 + $0x10] sm:$0xff] %v3283
    %3298 = vst [vmem:[#allocation4 + $0x18] sm:$0xff] %v3290
    // Predicated region
    $region10: #{tpu_custom_call.1} parent=1 // pred_check
      _
    $region11: #{tpu_custom_call.1} parent=1 // pred_check_branch
      %3300 = sbr.rel (0) target = $region13
    $region12: #{tpu_custom_call.1} parent=1 // pred_region
      %s3302 = ssub.s32 4096, 4096
      %3303 = vsyncadd [#allocation3], %s3302
      %s3304 = sshll.u32 [#allocation2], 4
      %s3305 = int_to_ptr.vmem [resolvable:$true] %s3304
      %3310 = dma.vmem_to_hbm [thread:$0]  %s3305, 4096, %s2, [#allocation3], 128, 128, 8
    $region13: #{tpu_custom_call.1} parent=1 // pred_fallthru
      _
    // Predicated region
    $region14: #{tpu_custom_call.1} parent=1 // pred_check
      _
    $region15: #{tpu_custom_call.1} parent=1 // pred_check_branch
      %3312 = sbr.rel (0) target = $region17
    $region16: #{tpu_custom_call.1} parent=1 // pred_region
      %s3314 = ssub.s32 512, 512
      %3315 = vsyncadd [#allocation5], %s3314
      %s3316 = sshll.u32 [#allocation4], 4
      %s3317 = int_to_ptr.vmem [resolvable:$true] %s3316
      %3322 = dma.vmem_to_hbm [thread:$0]  %s3317, 512, %s3, [#allocation5], 128, 128, 8
    $region17: #{tpu_custom_call.1} parent=1 // pred_fallthru
      _
    // Predicated region
    $region18: #{tpu_custom_call.1} parent=1 // pred_check
      _
    $region19: #{tpu_custom_call.1} parent=1 // pred_check_branch
      %3324 = sbr.rel (0) target = $region21
    $region20: #{tpu_custom_call.1} parent=1 // pred_region
      %3325 = dma.done [#allocation3], 4096
    $region21: #{tpu_custom_call.1} parent=1 // pred_fallthru
      _
    // Predicated region
    $region22: #{tpu_custom_call.1} parent=1 // pred_check
      _
    $region23: #{tpu_custom_call.1} parent=1 // pred_check_branch
      %3327 = sbr.rel (0) target = $region25
    $region24: #{tpu_custom_call.1} parent=1 // pred_region
      %3328 = dma.done [#allocation5], 512
    $region25: #{tpu_custom_call.1} parent=1 // pred_fallthru
      _
    %3329 = vsyncpa [#allocation3], 1
    %3330 = vsyncpa [#allocation5], 1

</llo_original>
